<compile_context>
chip_gen: v7x
topology: tpu7x:2x2x1
jax: 0.10.0
libtpu: 0.0.40
codegen_flags: <defaults>
</compile_context>

<pallas_src>
import functools

import jax
import jax.numpy as jnp
import numpy as np
from jax import lax
from jax.experimental import pallas as pl
from jax.experimental.pallas import tpu as pltpu

EPS = 1e-5


def _round_up(v, m):
    return (v + m - 1) // m * m


# ----------------------------------------------------------------------------
# Static per-tap boundary masks (zero padding), built with numpy at trace time.
# Tap order t = (dd+1)*9 + (dh+1)*3 + (dw+1).  Lanes >= DHW (flat padding) are 0.
# ----------------------------------------------------------------------------
def _build_tap_masks(D, H, W, DHWp):
    DHW = D * H * W
    d = np.arange(D)[:, None, None]
    h = np.arange(H)[None, :, None]
    w = np.arange(W)[None, None, :]
    rows = []
    for dd in (-1, 0, 1):
        for dh in (-1, 0, 1):
            for dw in (-1, 0, 1):
                valid = ((d + dd >= 0) & (d + dd < D) &
                         (h + dh >= 0) & (h + dh < H) &
                         (w + dw >= 0) & (w + dw < W))
                rows.append(valid.reshape(DHW))
    m = np.zeros((27, DHWp), np.float32)
    m[:, :DHW] = np.stack(rows, axis=0)
    return m


def _vmem_limit_bytes(Cpad, DHWp, compute_dtype):
    cb = jnp.dtype(compute_dtype).itemsize
    col = 2 * 9 * Cpad * DHWp * cb              # double-buffered K-chunk slabs
    hbuf = Cpad * DHWp * cb                     # intermediate h
    io = 2 * 2 * Cpad * DHWp * 4                # x + out blocks (pipeline 2x), f32
    masks = 2 * 27 * DHWp * 4
    weights = 2 * 2 * 3 * Cpad * 9 * Cpad * cb
    need = col + hbuf + io + masks + weights + (4 << 20)   # + compiler headroom
    try:
        cap = int(0.85 * pltpu.get_tpu_info().vmem_capacity_bytes)
    except Exception:
        cap = 48 << 20                          # safe on v7x's 64 MiB per TC
    return int(min(max(need, 16 << 20), cap))


# ----------------------------------------------------------------------------
# Fused kernel: one batch element per grid step, channels-first (Cpad, DHWp).
# ----------------------------------------------------------------------------
def _resnet_block_kernel(masks_ref, x_ref, w1_ref, w2_ref, o_ref,
                         col_ref, h_ref, *, H, W, DHW, Cpad, compute_dtype):
    HW = H * W
    DHWp = x_ref.shape[-1]
    inv_n = 1.0 / DHW                       # real element count (lanes>=DHW are 0)

    def build_chunk(src_f32, g, buf):
        """col[i9*Cpad + c, p] = src[c, p + off] * mask[t, p] for tap group g.

        Full-row pltpu.roll (XLU) + full-width mask multiply + aligned
        full-tile stores; the mask zeroes wrap-around and out-of-volume lanes.
        """
        dd = g - 1
        for i9 in range(9):
            dh = i9 // 3 - 1
            dw = i9 % 3 - 1
            off = dd * HW + dh * W + dw
            t = g * 9 + i9
            if off != 0:
                shifted = pltpu.roll(src_f32, shift=(-off) % DHWp, axis=1)
            else:
                shifted = src_f32
            buf[i9 * Cpad:(i9 + 1) * Cpad, :] = (
                shifted * masks_ref[t:t + 1, :]).astype(compute_dtype)

    def conv(src_f32, w_ref):
        """3x3x3 'same' conv: 3 chunked MXU matmuls (Cpad,9Cpad)@(9Cpad,DHWp),
        f32 accumulation; chunk build overlaps the previous chunk's matmul."""
        acc = None
        for g in range(3):
            buf = col_ref.at[g % 2]
            build_chunk(src_f32, g, buf)
            part = jnp.dot(w_ref[g], buf[...],
                           preferred_element_type=jnp.float32)
            acc = part if acc is None else acc + part
        return acc

    def instance_norm(y):
        """InstanceNorm3d (affine=False), single pass over the lane axis."""
        s = jnp.sum(y, axis=1, keepdims=True)
        sq = jnp.sum(y * y, axis=1, keepdims=True)
        mu = s * inv_n
        var = jnp.maximum(sq * inv_n - mu * mu, 0.0)
        return (y - mu) * lax.rsqrt(var + EPS)

    # conv1 -> IN -> ReLU    (h never leaves the chip; stored in compute dtype)
    h = jnp.maximum(instance_norm(conv(x_ref[...], w1_ref)), 0.0)
    h_ref[...] = h.astype(compute_dtype)

    # conv2 -> IN -> residual add
    y = instance_norm(conv(h_ref[...].astype(jnp.float32), w2_ref))
    o_ref[...] = x_ref[...] + y


# ----------------------------------------------------------------------------
# Wrapper: NCDHW in / NCDHW out, PyTorch-layout weights (Cout, Cin, 3, 3, 3).
# ----------------------------------------------------------------------------
@functools.partial(jax.jit, static_argnames=("compute_dtype",))
def resnet_block_forward(x_ncdhw, w1, b1, w2, b2, *, compute_dtype=jnp.bfloat16):
    # Conv biases cancel exactly under affine-free InstanceNorm (mean is
    # subtracted per channel); accepted for API parity, never enter the kernel.
    del b1, b2

    N, C, D, H, W = x_ncdhw.shape
    DHW = D * H * W
    sub = 8 if jnp.dtype(compute_dtype).itemsize == 4 else 16   # sublane packing
    Cpad = _round_up(C, sub)                                    # aligned tap blocks
    DHWp = _round_up(DHW, 128)                                  # lane-dense minor dim

    x_flat = x_ncdhw.astype(jnp.float32).reshape(N, C, DHW)
    x_pad = jnp.pad(x_flat, ((0, 0), (0, Cpad - C), (0, DHWp - DHW)))

    def pack_weight(w):
        wp = jnp.pad(w.astype(jnp.float32),
                     ((0, Cpad - C), (0, Cpad - C), (0, 0), (0, 0), (0, 0)))
        # (Cout,Cin,kd,kh,kw) -> (kd,Cout,kh,kw,Cin) -> (3, Cpad, 9*Cpad)
        return jnp.transpose(wp, (2, 0, 3, 4, 1)).reshape(
            3, Cpad, 9 * Cpad).astype(compute_dtype)

    w1c, w2c = pack_weight(w1), pack_weight(w2)
    masks = jnp.asarray(_build_tap_masks(D, H, W, DHWp))        # (27, DHWp) const

    kernel = functools.partial(_resnet_block_kernel, H=H, W=W, DHW=DHW,
                               Cpad=Cpad, compute_dtype=compute_dtype)

    out = pl.pallas_call(
        kernel,
        out_shape=jax.ShapeDtypeStruct((N, Cpad, DHWp), jnp.float32),
        grid=(N,),
        in_specs=[
            pl.BlockSpec((27, DHWp), lambda n: (0, 0)),             # tap masks
            pl.BlockSpec((None, Cpad, DHWp), lambda n: (n, 0, 0)),  # x (1 sample)
            pl.BlockSpec((3, Cpad, 9 * Cpad), lambda n: (0, 0, 0)), # conv1 weights
            pl.BlockSpec((3, Cpad, 9 * Cpad), lambda n: (0, 0, 0)), # conv2 weights
        ],
        out_specs=pl.BlockSpec((None, Cpad, DHWp), lambda n: (n, 0, 0)),
        scratch_shapes=[
            pltpu.VMEM((2, 9 * Cpad, DHWp), compute_dtype),   # K-chunk col slabs
            pltpu.VMEM((Cpad, DHWp), compute_dtype),          # intermediate h
        ],
        compiler_params=pltpu.CompilerParams(
            dimension_semantics=("parallel",),
            vmem_limit_bytes=_vmem_limit_bytes(Cpad, DHWp, compute_dtype)),
    )(masks, x_pad, w1c, w2c)

    return out[:, :C, :DHW].reshape(N, C, D, H, W)


# ----------------------------------------------------------------------------
# Pure-JAX reference (numerical validation only; keeps the biases to show they
# cancel under affine-free InstanceNorm).
# ----------------------------------------------------------------------------
def _reference(x, w1, b1, w2, b2):
    dn = ("NCDHW", "OIDHW", "NCDHW")

    def conv(z, w, b):
        y = lax.conv_general_dilated(z, w, window_strides=(1, 1, 1),
                                     padding=[(1, 1)] * 3,
                                     dimension_numbers=dn)
        return y + b.reshape(1, -1, 1, 1, 1)

    def inorm(z):
        mu = jnp.mean(z, axis=(2, 3, 4), keepdims=True)
        var = jnp.mean((z - mu) ** 2, axis=(2, 3, 4), keepdims=True)
        return (z - mu) * lax.rsqrt(var + EPS)

    h = jnp.maximum(inorm(conv(x, w1, b1)), 0.0)
    return x + inorm(conv(h, w2, b2))


# ----------------------------------------------------------------------------
if __name__ == "__main__":
    key = jax.random.PRNGKey(0)
    k_x, k_w1, k_b1, k_w2, k_b2 = jax.random.split(key, 5)

    N, C, D, H, W = 2, 4, 8, 8, 8                      # small NCDHW input
    x = jax.random.normal(k_x, (N, C, D, H, W), jnp.float32)

    # Conv3d(dim, dim, kernel_size=3) params, PyTorch layout (Cout, Cin, 3,3,3)
    w1 = 0.1 * jax.random.normal(k_w1, (C, C, 3, 3, 3), jnp.float32)
    b1 = 0.1 * jax.random.normal(k_b1, (C,), jnp.float32)
    w2 = 0.1 * jax.random.normal(k_w2, (C, C, 3, 3, 3), jnp.float32)
    b2 = 0.1 * jax.random.normal(k_b2, (C,), jnp.float32)

    ref = jax.block_until_ready(_reference(x, w1, b1, w2, b2))

    # f32 MXU operands: tight numerical check of the kernel logic.
    out_f32 = jax.block_until_ready(
        resnet_block_forward(x, w1, b1, w2, b2, compute_dtype=jnp.float32))
    np.testing.assert_allclose(np.asarray(out_f32), np.asarray(ref),
                               rtol=1e-4, atol=1e-4)

    # bf16 MXU operands / f32 accumulate: the fast (default) path.
    out_bf16 = jax.block_until_ready(
        resnet_block_forward(x, w1, b1, w2, b2, compute_dtype=jnp.bfloat16))
    np.testing.assert_allclose(np.asarray(out_bf16), np.asarray(ref),
                               rtol=2e-2, atol=5e-2)

    print("KERNEL_OK")
</pallas_src>

<mosaic_0001>
module attributes {stable_mosaic.version = 11 : i64} {
  func.func @_resnet_block_kernel(%arg0: i32, %arg1: memref<27x512xf32, #tpu.memory_space<vmem>>, %arg2: memref<1x8x512xf32, #tpu.memory_space<vmem>>, %arg3: memref<3x8x72xf32, #tpu.memory_space<vmem>>, %arg4: memref<3x8x72xf32, #tpu.memory_space<vmem>>, %arg5: memref<1x8x512xf32, #tpu.memory_space<vmem>>, %arg6: memref<2x72x512xf32, #tpu.memory_space<vmem>>, %arg7: memref<8x512xf32, #tpu.memory_space<vmem>>) attributes {dimension_semantics = [#tpu.dimension_semantics<parallel>], iteration_bounds = array<i64: 2>, scalar_prefetch = 0 : i64, scratch_operands = 2 : i64, tpu.core_type = #tpu.core_type<tc>, window_params = [{pipeline_mode = #tpu.pipeline_mode<synchronous>, transform_indices = @transform_0, window_bounds = array<i64: 27, 512>}, {transform_indices = @transform_1, window_bounds = array<i64: 1, 8, 512>}, {pipeline_mode = #tpu.pipeline_mode<synchronous>, transform_indices = @transform_2, window_bounds = array<i64: 3, 8, 72>}, {pipeline_mode = #tpu.pipeline_mode<synchronous>, transform_indices = @transform_3, window_bounds = array<i64: 3, 8, 72>}, {transform_indices = @transform_4, window_bounds = array<i64: 1, 8, 512>}]} {
    %c0 = arith.constant 0 : index
    %c0_0 = arith.constant 0 : index
    %c0_1 = arith.constant 0 : index
    %0 = vector.load %arg2[%c0, %c0_0, %c0_1] : memref<1x8x512xf32, #tpu.memory_space<vmem>>, vector<1x8x512xf32>
    %1 = vector.shape_cast %0 : vector<1x8x512xf32> to vector<8x512xf32>
    %c73_i32 = arith.constant 73 : i32
    %2 = tpu.dynamic_rotate %1 by %c73_i32 dim 1 : vector<8x512xf32>, i32 -> vector<8x512xf32>
    %c0_2 = arith.constant 0 : index
    %c0_3 = arith.constant 0 : index
    %3 = vector.load %arg1[%c0_2, %c0_3] : memref<27x512xf32, #tpu.memory_space<vmem>>, vector<1x512xf32>
    %4 = vector.broadcast %3 : vector<1x512xf32> to vector<8x512xf32>
    %5 = arith.mulf %2, %4 : vector<8x512xf32>
    %c0_i32 = arith.constant 0 : i32
    %c0_i32_4 = arith.constant 0 : i32
    %c0_i32_5 = arith.constant 0 : i32
    %6 = tpu.memref_slice %arg6[%c0_i32, %c0_i32_4, %c0_i32_5] : memref<2x72x512xf32, #tpu.memory_space<vmem>> -> memref<1x72x512xf32, #tpu.memory_space<vmem>>
    %7 = tpu.memref_squeeze %6 : memref<1x72x512xf32, #tpu.memory_space<vmem>> -> memref<72x512xf32, #tpu.memory_space<vmem>>
    %c0_6 = arith.constant 0 : index
    %c0_7 = arith.constant 0 : index
    %8 = vector.load %7[%c0_6, %c0_7] : memref<72x512xf32, #tpu.memory_space<vmem>>, vector<8x512xf32>
    tpu.vector_store %7[%c0_6, %c0_7], %5 {strides = array<i32>} : memref<72x512xf32, #tpu.memory_space<vmem>>, vector<8x512xf32>,
    %c72_i32 = arith.constant 72 : i32
    %9 = tpu.dynamic_rotate %1 by %c72_i32 dim 1 : vector<8x512xf32>, i32 -> vector<8x512xf32>
    %c1 = arith.constant 1 : index
    %c0_8 = arith.constant 0 : index
    %10 = vector.load %arg1[%c1, %c0_8] : memref<27x512xf32, #tpu.memory_space<vmem>>, vector<1x512xf32>
    %11 = vector.broadcast %10 : vector<1x512xf32> to vector<8x512xf32>
    %12 = arith.mulf %9, %11 : vector<8x512xf32>
    %c0_i32_9 = arith.constant 0 : i32
    %c0_i32_10 = arith.constant 0 : i32
    %c0_i32_11 = arith.constant 0 : i32
    %13 = tpu.memref_slice %arg6[%c0_i32_9, %c0_i32_10, %c0_i32_11] : memref<2x72x512xf32, #tpu.memory_space<vmem>> -> memref<1x72x512xf32, #tpu.memory_space<vmem>>
    %14 = tpu.memref_squeeze %13 : memref<1x72x512xf32, #tpu.memory_space<vmem>> -> memref<72x512xf32, #tpu.memory_space<vmem>>
    %c8 = arith.constant 8 : index
    %c0_12 = arith.constant 0 : index
    %15 = vector.load %14[%c8, %c0_12] : memref<72x512xf32, #tpu.memory_space<vmem>>, vector<8x512xf32>
    tpu.vector_store %14[%c8, %c0_12], %12 {strides = array<i32>} : memref<72x512xf32, #tpu.memory_space<vmem>>, vector<8x512xf32>,
    %c71_i32 = arith.constant 71 : i32
    %16 = tpu.dynamic_rotate %1 by %c71_i32 dim 1 : vector<8x512xf32>, i32 -> vector<8x512xf32>
    %c2 = arith.constant 2 : index
    %c0_13 = arith.constant 0 : index
    %17 = vector.load %arg1[%c2, %c0_13] : memref<27x512xf32, #tpu.memory_space<vmem>>, vector<1x512xf32>
    %18 = vector.broadcast %17 : vector<1x512xf32> to vector<8x512xf32>
    %19 = arith.mulf %16, %18 : vector<8x512xf32>
    %c0_i32_14 = arith.constant 0 : i32
    %c0_i32_15 = arith.constant 0 : i32
    %c0_i32_16 = arith.constant 0 : i32
    %20 = tpu.memref_slice %arg6[%c0_i32_14, %c0_i32_15, %c0_i32_16] : memref<2x72x512xf32, #tpu.memory_space<vmem>> -> memref<1x72x512xf32, #tpu.memory_space<vmem>>
    %21 = tpu.memref_squeeze %20 : memref<1x72x512xf32, #tpu.memory_space<vmem>> -> memref<72x512xf32, #tpu.memory_space<vmem>>
    %c16 = arith.constant 16 : index
    %c0_17 = arith.constant 0 : index
    %22 = vector.load %21[%c16, %c0_17] : memref<72x512xf32, #tpu.memory_space<vmem>>, vector<8x512xf32>
    tpu.vector_store %21[%c16, %c0_17], %19 {strides = array<i32>} : memref<72x512xf32, #tpu.memory_space<vmem>>, vector<8x512xf32>,
    %c65_i32 = arith.constant 65 : i32
    %23 = tpu.dynamic_rotate %1 by %c65_i32 dim 1 : vector<8x512xf32>, i32 -> vector<8x512xf32>
    %c3 = arith.constant 3 : index
    %c0_18 = arith.constant 0 : index
    %24 = vector.load %arg1[%c3, %c0_18] : memref<27x512xf32, #tpu.memory_space<vmem>>, vector<1x512xf32>
    %25 = vector.broadcast %24 : vector<1x512xf32> to vector<8x512xf32>
    %26 = arith.mulf %23, %25 : vector<8x512xf32>
    %c0_i32_19 = arith.constant 0 : i32
    %c0_i32_20 = arith.constant 0 : i32
    %c0_i32_21 = arith.constant 0 : i32
    %27 = tpu.memref_slice %arg6[%c0_i32_19, %c0_i32_20, %c0_i32_21] : memref<2x72x512xf32, #tpu.memory_space<vmem>> -> memref<1x72x512xf32, #tpu.memory_space<vmem>>
    %28 = tpu.memref_squeeze %27 : memref<1x72x512xf32, #tpu.memory_space<vmem>> -> memref<72x512xf32, #tpu.memory_space<vmem>>
    %c24 = arith.constant 24 : index
    %c0_22 = arith.constant 0 : index
    %29 = vector.load %28[%c24, %c0_22] : memref<72x512xf32, #tpu.memory_space<vmem>>, vector<8x512xf32>
    tpu.vector_store %28[%c24, %c0_22], %26 {strides = array<i32>} : memref<72x512xf32, #tpu.memory_space<vmem>>, vector<8x512xf32>,
    %c64_i32 = arith.constant 64 : i32
    %30 = tpu.dynamic_rotate %1 by %c64_i32 dim 1 : vector<8x512xf32>, i32 -> vector<8x512xf32>
    %c4 = arith.constant 4 : index
    %c0_23 = arith.constant 0 : index
    %31 = vector.load %arg1[%c4, %c0_23] : memref<27x512xf32, #tpu.memory_space<vmem>>, vector<1x512xf32>
    %32 = vector.broadcast %31 : vector<1x512xf32> to vector<8x512xf32>
    %33 = arith.mulf %30, %32 : vector<8x512xf32>
    %c0_i32_24 = arith.constant 0 : i32
    %c0_i32_25 = arith.constant 0 : i32
    %c0_i32_26 = arith.constant 0 : i32
    %34 = tpu.memref_slice %arg6[%c0_i32_24, %c0_i32_25, %c0_i32_26] : memref<2x72x512xf32, #tpu.memory_space<vmem>> -> memref<1x72x512xf32, #tpu.memory_space<vmem>>
    %35 = tpu.memref_squeeze %34 : memref<1x72x512xf32, #tpu.memory_space<vmem>> -> memref<72x512xf32, #tpu.memory_space<vmem>>
    %c32 = arith.constant 32 : index
    %c0_27 = arith.constant 0 : index
    %36 = vector.load %35[%c32, %c0_27] : memref<72x512xf32, #tpu.memory_space<vmem>>, vector<8x512xf32>
    tpu.vector_store %35[%c32, %c0_27], %33 {strides = array<i32>} : memref<72x512xf32, #tpu.memory_space<vmem>>, vector<8x512xf32>,
    %c63_i32 = arith.constant 63 : i32
    %37 = tpu.dynamic_rotate %1 by %c63_i32 dim 1 : vector<8x512xf32>, i32 -> vector<8x512xf32>
    %c5 = arith.constant 5 : index
    %c0_28 = arith.constant 0 : index
    %38 = vector.load %arg1[%c5, %c0_28] : memref<27x512xf32, #tpu.memory_space<vmem>>, vector<1x512xf32>
    %39 = vector.broadcast %38 : vector<1x512xf32> to vector<8x512xf32>
    %40 = arith.mulf %37, %39 : vector<8x512xf32>
    %c0_i32_29 = arith.constant 0 : i32
    %c0_i32_30 = arith.constant 0 : i32
    %c0_i32_31 = arith.constant 0 : i32
    %41 = tpu.memref_slice %arg6[%c0_i32_29, %c0_i32_30, %c0_i32_31] : memref<2x72x512xf32, #tpu.memory_space<vmem>> -> memref<1x72x512xf32, #tpu.memory_space<vmem>>
    %42 = tpu.memref_squeeze %41 : memref<1x72x512xf32, #tpu.memory_space<vmem>> -> memref<72x512xf32, #tpu.memory_space<vmem>>
    %c40 = arith.constant 40 : index
    %c0_32 = arith.constant 0 : index
    %43 = vector.load %42[%c40, %c0_32] : memref<72x512xf32, #tpu.memory_space<vmem>>, vector<8x512xf32>
    tpu.vector_store %42[%c40, %c0_32], %40 {strides = array<i32>} : memref<72x512xf32, #tpu.memory_space<vmem>>, vector<8x512xf32>,
    %c57_i32 = arith.constant 57 : i32
    %44 = tpu.dynamic_rotate %1 by %c57_i32 dim 1 : vector<8x512xf32>, i32 -> vector<8x512xf32>
    %c6 = arith.constant 6 : index
    %c0_33 = arith.constant 0 : index
    %45 = vector.load %arg1[%c6, %c0_33] : memref<27x512xf32, #tpu.memory_space<vmem>>, vector<1x512xf32>
    %46 = vector.broadcast %45 : vector<1x512xf32> to vector<8x512xf32>
    %47 = arith.mulf %44, %46 : vector<8x512xf32>
    %c0_i32_34 = arith.constant 0 : i32
    %c0_i32_35 = arith.constant 0 : i32
    %c0_i32_36 = arith.constant 0 : i32
    %48 = tpu.memref_slice %arg6[%c0_i32_34, %c0_i32_35, %c0_i32_36] : memref<2x72x512xf32, #tpu.memory_space<vmem>> -> memref<1x72x512xf32, #tpu.memory_space<vmem>>
    %49 = tpu.memref_squeeze %48 : memref<1x72x512xf32, #tpu.memory_space<vmem>> -> memref<72x512xf32, #tpu.memory_space<vmem>>
    %c48 = arith.constant 48 : index
    %c0_37 = arith.constant 0 : index
    %50 = vector.load %49[%c48, %c0_37] : memref<72x512xf32, #tpu.memory_space<vmem>>, vector<8x512xf32>
    tpu.vector_store %49[%c48, %c0_37], %47 {strides = array<i32>} : memref<72x512xf32, #tpu.memory_space<vmem>>, vector<8x512xf32>,
    %c56_i32 = arith.constant 56 : i32
    %51 = tpu.dynamic_rotate %1 by %c56_i32 dim 1 : vector<8x512xf32>, i32 -> vector<8x512xf32>
    %c7 = arith.constant 7 : index
    %c0_38 = arith.constant 0 : index
    %52 = vector.load %arg1[%c7, %c0_38] : memref<27x512xf32, #tpu.memory_space<vmem>>, vector<1x512xf32>
    %53 = vector.broadcast %52 : vector<1x512xf32> to vector<8x512xf32>
    %54 = arith.mulf %51, %53 : vector<8x512xf32>
    %c0_i32_39 = arith.constant 0 : i32
    %c0_i32_40 = arith.constant 0 : i32
    %c0_i32_41 = arith.constant 0 : i32
    %55 = tpu.memref_slice %arg6[%c0_i32_39, %c0_i32_40, %c0_i32_41] : memref<2x72x512xf32, #tpu.memory_space<vmem>> -> memref<1x72x512xf32, #tpu.memory_space<vmem>>
    %56 = tpu.memref_squeeze %55 : memref<1x72x512xf32, #tpu.memory_space<vmem>> -> memref<72x512xf32, #tpu.memory_space<vmem>>
    %c56 = arith.constant 56 : index
    %c0_42 = arith.constant 0 : index
    %57 = vector.load %56[%c56, %c0_42] : memref<72x512xf32, #tpu.memory_space<vmem>>, vector<8x512xf32>
    tpu.vector_store %56[%c56, %c0_42], %54 {strides = array<i32>} : memref<72x512xf32, #tpu.memory_space<vmem>>, vector<8x512xf32>,
    %c55_i32 = arith.constant 55 : i32
    %58 = tpu.dynamic_rotate %1 by %c55_i32 dim 1 : vector<8x512xf32>, i32 -> vector<8x512xf32>
    %c8_43 = arith.constant 8 : index
    %c0_44 = arith.constant 0 : index
    %59 = vector.load %arg1[%c8_43, %c0_44] : memref<27x512xf32, #tpu.memory_space<vmem>>, vector<1x512xf32>
    %60 = vector.broadcast %59 : vector<1x512xf32> to vector<8x512xf32>
    %61 = arith.mulf %58, %60 : vector<8x512xf32>
    %c0_i32_45 = arith.constant 0 : i32
    %c0_i32_46 = arith.constant 0 : i32
    %c0_i32_47 = arith.constant 0 : i32
    %62 = tpu.memref_slice %arg6[%c0_i32_45, %c0_i32_46, %c0_i32_47] : memref<2x72x512xf32, #tpu.memory_space<vmem>> -> memref<1x72x512xf32, #tpu.memory_space<vmem>>
    %63 = tpu.memref_squeeze %62 : memref<1x72x512xf32, #tpu.memory_space<vmem>> -> memref<72x512xf32, #tpu.memory_space<vmem>>
    %c64 = arith.constant 64 : index
    %c0_48 = arith.constant 0 : index
    %64 = vector.load %63[%c64, %c0_48] : memref<72x512xf32, #tpu.memory_space<vmem>>, vector<8x512xf32>
    tpu.vector_store %63[%c64, %c0_48], %61 {strides = array<i32>} : memref<72x512xf32, #tpu.memory_space<vmem>>, vector<8x512xf32>,
    %c0_49 = arith.constant 0 : index
    %c0_50 = arith.constant 0 : index
    %c0_51 = arith.constant 0 : index
    %65 = vector.load %arg3[%c0_49, %c0_50, %c0_51] : memref<3x8x72xf32, #tpu.memory_space<vmem>>, vector<1x8x72xf32>
    %66 = vector.shape_cast %65 : vector<1x8x72xf32> to vector<8x72xf32>
    %c0_52 = arith.constant 0 : index
    %c0_53 = arith.constant 0 : index
    %c0_54 = arith.constant 0 : index
    %67 = vector.load %arg6[%c0_52, %c0_53, %c0_54] : memref<2x72x512xf32, #tpu.memory_space<vmem>>, vector<1x72x512xf32>
    %68 = vector.shape_cast %67 : vector<1x72x512xf32> to vector<72x512xf32>
    %cst = arith.constant dense<0.000000e+00> : vector<8x512xf32>
    %69 = tpu.matmul %66, %68, %cst {dimension_numbers = #tpu.dot_dimension_numbers<[1], [0], [0], [1], [0, 0, 1, 1], [], []>} : vector<8x72xf32>, vector<72x512xf32>, vector<8x512xf32> -> vector<8x512xf32>
    %c9_i32 = arith.constant 9 : i32
    %70 = tpu.dynamic_rotate %1 by %c9_i32 dim 1 : vector<8x512xf32>, i32 -> vector<8x512xf32>
    %c9 = arith.constant 9 : index
    %c0_55 = arith.constant 0 : index
    %71 = vector.load %arg1[%c9, %c0_55] : memref<27x512xf32, #tpu.memory_space<vmem>>, vector<1x512xf32>
    %72 = vector.broadcast %71 : vector<1x512xf32> to vector<8x512xf32>
    %73 = arith.mulf %70, %72 : vector<8x512xf32>
    %c1_i32 = arith.constant 1 : i32
    %c0_i32_56 = arith.constant 0 : i32
    %c0_i32_57 = arith.constant 0 : i32
    %74 = tpu.memref_slice %arg6[%c1_i32, %c0_i32_56, %c0_i32_57] : memref<2x72x512xf32, #tpu.memory_space<vmem>> -> memref<1x72x512xf32, #tpu.memory_space<vmem>>
    %75 = tpu.memref_squeeze %74 : memref<1x72x512xf32, #tpu.memory_space<vmem>> -> memref<72x512xf32, #tpu.memory_space<vmem>>
    %c0_58 = arith.constant 0 : index
    %c0_59 = arith.constant 0 : index
    %76 = vector.load %75[%c0_58, %c0_59] : memref<72x512xf32, #tpu.memory_space<vmem>>, vector<8x512xf32>
    tpu.vector_store %75[%c0_58, %c0_59], %73 {strides = array<i32>} : memref<72x512xf32, #tpu.memory_space<vmem>>, vector<8x512xf32>,
    %c8_i32 = arith.constant 8 : i32
    %77 = tpu.dynamic_rotate %1 by %c8_i32 dim 1 : vector<8x512xf32>, i32 -> vector<8x512xf32>
    %c10 = arith.constant 10 : index
    %c0_60 = arith.constant 0 : index
    %78 = vector.load %arg1[%c10, %c0_60] : memref<27x512xf32, #tpu.memory_space<vmem>>, vector<1x512xf32>
    %79 = vector.broadcast %78 : vector<1x512xf32> to vector<8x512xf32>
    %80 = arith.mulf %77, %79 : vector<8x512xf32>
    %c1_i32_61 = arith.constant 1 : i32
    %c0_i32_62 = arith.constant 0 : i32
    %c0_i32_63 = arith.constant 0 : i32
    %81 = tpu.memref_slice %arg6[%c1_i32_61, %c0_i32_62, %c0_i32_63] : memref<2x72x512xf32, #tpu.memory_space<vmem>> -> memref<1x72x512xf32, #tpu.memory_space<vmem>>
    %82 = tpu.memref_squeeze %81 : memref<1x72x512xf32, #tpu.memory_space<vmem>> -> memref<72x512xf32, #tpu.memory_space<vmem>>
    %c8_64 = arith.constant 8 : index
    %c0_65 = arith.constant 0 : index
    %83 = vector.load %82[%c8_64, %c0_65] : memref<72x512xf32, #tpu.memory_space<vmem>>, vector<8x512xf32>
    tpu.vector_store %82[%c8_64, %c0_65], %80 {strides = array<i32>} : memref<72x512xf32, #tpu.memory_space<vmem>>, vector<8x512xf32>,
    %c7_i32 = arith.constant 7 : i32
    %84 = tpu.dynamic_rotate %1 by %c7_i32 dim 1 : vector<8x512xf32>, i32 -> vector<8x512xf32>
    %c11 = arith.constant 11 : index
    %c0_66 = arith.constant 0 : index
    %85 = vector.load %arg1[%c11, %c0_66] : memref<27x512xf32, #tpu.memory_space<vmem>>, vector<1x512xf32>
    %86 = vector.broadcast %85 : vector<1x512xf32> to vector<8x512xf32>
    %87 = arith.mulf %84, %86 : vector<8x512xf32>
    %c1_i32_67 = arith.constant 1 : i32
    %c0_i32_68 = arith.constant 0 : i32
    %c0_i32_69 = arith.constant 0 : i32
    %88 = tpu.memref_slice %arg6[%c1_i32_67, %c0_i32_68, %c0_i32_69] : memref<2x72x512xf32, #tpu.memory_space<vmem>> -> memref<1x72x512xf32, #tpu.memory_space<vmem>>
    %89 = tpu.memref_squeeze %88 : memref<1x72x512xf32, #tpu.memory_space<vmem>> -> memref<72x512xf32, #tpu.memory_space<vmem>>
    %c16_70 = arith.constant 16 : index
    %c0_71 = arith.constant 0 : index
    %90 = vector.load %89[%c16_70, %c0_71] : memref<72x512xf32, #tpu.memory_space<vmem>>, vector<8x512xf32>
    tpu.vector_store %89[%c16_70, %c0_71], %87 {strides = array<i32>} : memref<72x512xf32, #tpu.memory_space<vmem>>, vector<8x512xf32>,
    %c1_i32_72 = arith.constant 1 : i32
    %91 = tpu.dynamic_rotate %1 by %c1_i32_72 dim 1 : vector<8x512xf32>, i32 -> vector<8x512xf32>
    %c12 = arith.constant 12 : index
    %c0_73 = arith.constant 0 : index
    %92 = vector.load %arg1[%c12, %c0_73] : memref<27x512xf32, #tpu.memory_space<vmem>>, vector<1x512xf32>
    %93 = vector.broadcast %92 : vector<1x512xf32> to vector<8x512xf32>
    %94 = arith.mulf %91, %93 : vector<8x512xf32>
    %c1_i32_74 = arith.constant 1 : i32
    %c0_i32_75 = arith.constant 0 : i32
    %c0_i32_76 = arith.constant 0 : i32
    %95 = tpu.memref_slice %arg6[%c1_i32_74, %c0_i32_75, %c0_i32_76] : memref<2x72x512xf32, #tpu.memory_space<vmem>> -> memref<1x72x512xf32, #tpu.memory_space<vmem>>
    %96 = tpu.memref_squeeze %95 : memref<1x72x512xf32, #tpu.memory_space<vmem>> -> memref<72x512xf32, #tpu.memory_space<vmem>>
    %c24_77 = arith.constant 24 : index
    %c0_78 = arith.constant 0 : index
    %97 = vector.load %96[%c24_77, %c0_78] : memref<72x512xf32, #tpu.memory_space<vmem>>, vector<8x512xf32>
    tpu.vector_store %96[%c24_77, %c0_78], %94 {strides = array<i32>} : memref<72x512xf32, #tpu.memory_space<vmem>>, vector<8x512xf32>,
    %c13 = arith.constant 13 : index
    %c0_79 = arith.constant 0 : index
    %98 = vector.load %arg1[%c13, %c0_79] : memref<27x512xf32, #tpu.memory_space<vmem>>, vector<1x512xf32>
    %99 = vector.broadcast %98 : vector<1x512xf32> to vector<8x512xf32>
    %100 = arith.mulf %1, %99 : vector<8x512xf32>
    %c1_i32_80 = arith.constant 1 : i32
    %c0_i32_81 = arith.constant 0 : i32
    %c0_i32_82 = arith.constant 0 : i32
    %101 = tpu.memref_slice %arg6[%c1_i32_80, %c0_i32_81, %c0_i32_82] : memref<2x72x512xf32, #tpu.memory_space<vmem>> -> memref<1x72x512xf32, #tpu.memory_space<vmem>>
    %102 = tpu.memref_squeeze %101 : memref<1x72x512xf32, #tpu.memory_space<vmem>> -> memref<72x512xf32, #tpu.memory_space<vmem>>
    %c32_83 = arith.constant 32 : index
    %c0_84 = arith.constant 0 : index
    %103 = vector.load %102[%c32_83, %c0_84] : memref<72x512xf32, #tpu.memory_space<vmem>>, vector<8x512xf32>
    tpu.vector_store %102[%c32_83, %c0_84], %100 {strides = array<i32>} : memref<72x512xf32, #tpu.memory_space<vmem>>, vector<8x512xf32>,
    %c511_i32 = arith.constant 511 : i32
    %104 = tpu.dynamic_rotate %1 by %c511_i32 dim 1 : vector<8x512xf32>, i32 -> vector<8x512xf32>
    %c14 = arith.constant 14 : index
    %c0_85 = arith.constant 0 : index
    %105 = vector.load %arg1[%c14, %c0_85] : memref<27x512xf32, #tpu.memory_space<vmem>>, vector<1x512xf32>
    %106 = vector.broadcast %105 : vector<1x512xf32> to vector<8x512xf32>
    %107 = arith.mulf %104, %106 : vector<8x512xf32>
    %c1_i32_86 = arith.constant 1 : i32
    %c0_i32_87 = arith.constant 0 : i32
    %c0_i32_88 = arith.constant 0 : i32
    %108 = tpu.memref_slice %arg6[%c1_i32_86, %c0_i32_87, %c0_i32_88] : memref<2x72x512xf32, #tpu.memory_space<vmem>> -> memref<1x72x512xf32, #tpu.memory_space<vmem>>
    %109 = tpu.memref_squeeze %108 : memref<1x72x512xf32, #tpu.memory_space<vmem>> -> memref<72x512xf32, #tpu.memory_space<vmem>>
    %c40_89 = arith.constant 40 : index
    %c0_90 = arith.constant 0 : index
    %110 = vector.load %109[%c40_89, %c0_90] : memref<72x512xf32, #tpu.memory_space<vmem>>, vector<8x512xf32>
    tpu.vector_store %109[%c40_89, %c0_90], %107 {strides = array<i32>} : memref<72x512xf32, #tpu.memory_space<vmem>>, vector<8x512xf32>,
    %c505_i32 = arith.constant 505 : i32
    %111 = tpu.dynamic_rotate %1 by %c505_i32 dim 1 : vector<8x512xf32>, i32 -> vector<8x512xf32>
    %c15 = arith.constant 15 : index
    %c0_91 = arith.constant 0 : index
    %112 = vector.load %arg1[%c15, %c0_91] : memref<27x512xf32, #tpu.memory_space<vmem>>, vector<1x512xf32>
    %113 = vector.broadcast %112 : vector<1x512xf32> to vector<8x512xf32>
    %114 = arith.mulf %111, %113 : vector<8x512xf32>
    %c1_i32_92 = arith.constant 1 : i32
    %c0_i32_93 = arith.constant 0 : i32
    %c0_i32_94 = arith.constant 0 : i32
    %115 = tpu.memref_slice %arg6[%c1_i32_92, %c0_i32_93, %c0_i32_94] : memref<2x72x512xf32, #tpu.memory_space<vmem>> -> memref<1x72x512xf32, #tpu.memory_space<vmem>>
    %116 = tpu.memref_squeeze %115 : memref<1x72x512xf32, #tpu.memory_space<vmem>> -> memref<72x512xf32, #tpu.memory_space<vmem>>
    %c48_95 = arith.constant 48 : index
    %c0_96 = arith.constant 0 : index
    %117 = vector.load %116[%c48_95, %c0_96] : memref<72x512xf32, #tpu.memory_space<vmem>>, vector<8x512xf32>
    tpu.vector_store %116[%c48_95, %c0_96], %114 {strides = array<i32>} : memref<72x512xf32, #tpu.memory_space<vmem>>, vector<8x512xf32>,
    %c504_i32 = arith.constant 504 : i32
    %118 = tpu.dynamic_rotate %1 by %c504_i32 dim 1 : vector<8x512xf32>, i32 -> vector<8x512xf32>
    %c16_97 = arith.constant 16 : index
    %c0_98 = arith.constant 0 : index
    %119 = vector.load %arg1[%c16_97, %c0_98] : memref<27x512xf32, #tpu.memory_space<vmem>>, vector<1x512xf32>
    %120 = vector.broadcast %119 : vector<1x512xf32> to vector<8x512xf32>
    %121 = arith.mulf %118, %120 : vector<8x512xf32>
    %c1_i32_99 = arith.constant 1 : i32
    %c0_i32_100 = arith.constant 0 : i32
    %c0_i32_101 = arith.constant 0 : i32
    %122 = tpu.memref_slice %arg6[%c1_i32_99, %c0_i32_100, %c0_i32_101] : memref<2x72x512xf32, #tpu.memory_space<vmem>> -> memref<1x72x512xf32, #tpu.memory_space<vmem>>
    %123 = tpu.memref_squeeze %122 : memref<1x72x512xf32, #tpu.memory_space<vmem>> -> memref<72x512xf32, #tpu.memory_space<vmem>>
    %c56_102 = arith.constant 56 : index
    %c0_103 = arith.constant 0 : index
    %124 = vector.load %123[%c56_102, %c0_103] : memref<72x512xf32, #tpu.memory_space<vmem>>, vector<8x512xf32>
    tpu.vector_store %123[%c56_102, %c0_103], %121 {strides = array<i32>} : memref<72x512xf32, #tpu.memory_space<vmem>>, vector<8x512xf32>,
    %c503_i32 = arith.constant 503 : i32
    %125 = tpu.dynamic_rotate %1 by %c503_i32 dim 1 : vector<8x512xf32>, i32 -> vector<8x512xf32>
    %c17 = arith.constant 17 : index
    %c0_104 = arith.constant 0 : index
    %126 = vector.load %arg1[%c17, %c0_104] : memref<27x512xf32, #tpu.memory_space<vmem>>, vector<1x512xf32>
    %127 = vector.broadcast %126 : vector<1x512xf32> to vector<8x512xf32>
    %128 = arith.mulf %125, %127 : vector<8x512xf32>
    %c1_i32_105 = arith.constant 1 : i32
    %c0_i32_106 = arith.constant 0 : i32
    %c0_i32_107 = arith.constant 0 : i32
    %129 = tpu.memref_slice %arg6[%c1_i32_105, %c0_i32_106, %c0_i32_107] : memref<2x72x512xf32, #tpu.memory_space<vmem>> -> memref<1x72x512xf32, #tpu.memory_space<vmem>>
    %130 = tpu.memref_squeeze %129 : memref<1x72x512xf32, #tpu.memory_space<vmem>> -> memref<72x512xf32, #tpu.memory_space<vmem>>
    %c64_108 = arith.constant 64 : index
    %c0_109 = arith.constant 0 : index
    %131 = vector.load %130[%c64_108, %c0_109] : memref<72x512xf32, #tpu.memory_space<vmem>>, vector<8x512xf32>
    tpu.vector_store %130[%c64_108, %c0_109], %128 {strides = array<i32>} : memref<72x512xf32, #tpu.memory_space<vmem>>, vector<8x512xf32>,
    %c1_110 = arith.constant 1 : index
    %c0_111 = arith.constant 0 : index
    %c0_112 = arith.constant 0 : index
    %132 = vector.load %arg3[%c1_110, %c0_111, %c0_112] : memref<3x8x72xf32, #tpu.memory_space<vmem>>, vector<1x8x72xf32>
    %133 = vector.shape_cast %132 : vector<1x8x72xf32> to vector<8x72xf32>
    %c1_113 = arith.constant 1 : index
    %c0_114 = arith.constant 0 : index
    %c0_115 = arith.constant 0 : index
    %134 = vector.load %arg6[%c1_113, %c0_114, %c0_115] : memref<2x72x512xf32, #tpu.memory_space<vmem>>, vector<1x72x512xf32>
    %135 = vector.shape_cast %134 : vector<1x72x512xf32> to vector<72x512xf32>
    %cst_116 = arith.constant dense<0.000000e+00> : vector<8x512xf32>
    %136 = tpu.matmul %133, %135, %cst_116 {dimension_numbers = #tpu.dot_dimension_numbers<[1], [0], [0], [1], [0, 0, 1, 1], [], []>} : vector<8x72xf32>, vector<72x512xf32>, vector<8x512xf32> -> vector<8x512xf32>
    %137 = arith.addf %69, %136 : vector<8x512xf32>
    %c457_i32 = arith.constant 457 : i32
    %138 = tpu.dynamic_rotate %1 by %c457_i32 dim 1 : vector<8x512xf32>, i32 -> vector<8x512xf32>
    %c18 = arith.constant 18 : index
    %c0_117 = arith.constant 0 : index
    %139 = vector.load %arg1[%c18, %c0_117] : memref<27x512xf32, #tpu.memory_space<vmem>>, vector<1x512xf32>
    %140 = vector.broadcast %139 : vector<1x512xf32> to vector<8x512xf32>
    %141 = arith.mulf %138, %140 : vector<8x512xf32>
    %c0_i32_118 = arith.constant 0 : i32
    %c0_i32_119 = arith.constant 0 : i32
    %c0_i32_120 = arith.constant 0 : i32
    %142 = tpu.memref_slice %arg6[%c0_i32_118, %c0_i32_119, %c0_i32_120] : memref<2x72x512xf32, #tpu.memory_space<vmem>> -> memref<1x72x512xf32, #tpu.memory_space<vmem>>
    %143 = tpu.memref_squeeze %142 : memref<1x72x512xf32, #tpu.memory_space<vmem>> -> memref<72x512xf32, #tpu.memory_space<vmem>>
    %c0_121 = arith.constant 0 : index
    %c0_122 = arith.constant 0 : index
    %144 = vector.load %143[%c0_121, %c0_122] : memref<72x512xf32, #tpu.memory_space<vmem>>, vector<8x512xf32>
    tpu.vector_store %143[%c0_121, %c0_122], %141 {strides = array<i32>} : memref<72x512xf32, #tpu.memory_space<vmem>>, vector<8x512xf32>,
    %c456_i32 = arith.constant 456 : i32
    %145 = tpu.dynamic_rotate %1 by %c456_i32 dim 1 : vector<8x512xf32>, i32 -> vector<8x512xf32>
    %c19 = arith.constant 19 : index
    %c0_123 = arith.constant 0 : index
    %146 = vector.load %arg1[%c19, %c0_123] : memref<27x512xf32, #tpu.memory_space<vmem>>, vector<1x512xf32>
    %147 = vector.broadcast %146 : vector<1x512xf32> to vector<8x512xf32>
    %148 = arith.mulf %145, %147 : vector<8x512xf32>
    %c0_i32_124 = arith.constant 0 : i32
    %c0_i32_125 = arith.constant 0 : i32
    %c0_i32_126 = arith.constant 0 : i32
    %149 = tpu.memref_slice %arg6[%c0_i32_124, %c0_i32_125, %c0_i32_126] : memref<2x72x512xf32, #tpu.memory_space<vmem>> -> memref<1x72x512xf32, #tpu.memory_space<vmem>>
    %150 = tpu.memref_squeeze %149 : memref<1x72x512xf32, #tpu.memory_space<vmem>> -> memref<72x512xf32, #tpu.memory_space<vmem>>
    %c8_127 = arith.constant 8 : index
    %c0_128 = arith.constant 0 : index
    %151 = vector.load %150[%c8_127, %c0_128] : memref<72x512xf32, #tpu.memory_space<vmem>>, vector<8x512xf32>
    tpu.vector_store %150[%c8_127, %c0_128], %148 {strides = array<i32>} : memref<72x512xf32, #tpu.memory_space<vmem>>, vector<8x512xf32>,
    %c455_i32 = arith.constant 455 : i32
    %152 = tpu.dynamic_rotate %1 by %c455_i32 dim 1 : vector<8x512xf32>, i32 -> vector<8x512xf32>
    %c20 = arith.constant 20 : index
    %c0_129 = arith.constant 0 : index
    %153 = vector.load %arg1[%c20, %c0_129] : memref<27x512xf32, #tpu.memory_space<vmem>>, vector<1x512xf32>
    %154 = vector.broadcast %153 : vector<1x512xf32> to vector<8x512xf32>
    %155 = arith.mulf %152, %154 : vector<8x512xf32>
    %c0_i32_130 = arith.constant 0 : i32
    %c0_i32_131 = arith.constant 0 : i32
    %c0_i32_132 = arith.constant 0 : i32
    %156 = tpu.memref_slice %arg6[%c0_i32_130, %c0_i32_131, %c0_i32_132] : memref<2x72x512xf32, #tpu.memory_space<vmem>> -> memref<1x72x512xf32, #tpu.memory_space<vmem>>
    %157 = tpu.memref_squeeze %156 : memref<1x72x512xf32, #tpu.memory_space<vmem>> -> memref<72x512xf32, #tpu.memory_space<vmem>>
    %c16_133 = arith.constant 16 : index
    %c0_134 = arith.constant 0 : index
    %158 = vector.load %157[%c16_133, %c0_134] : memref<72x512xf32, #tpu.memory_space<vmem>>, vector<8x512xf32>
    tpu.vector_store %157[%c16_133, %c0_134], %155 {strides = array<i32>} : memref<72x512xf32, #tpu.memory_space<vmem>>, vector<8x512xf32>,
    %c449_i32 = arith.constant 449 : i32
    %159 = tpu.dynamic_rotate %1 by %c449_i32 dim 1 : vector<8x512xf32>, i32 -> vector<8x512xf32>
    %c21 = arith.constant 21 : index
    %c0_135 = arith.constant 0 : index
    %160 = vector.load %arg1[%c21, %c0_135] : memref<27x512xf32, #tpu.memory_space<vmem>>, vector<1x512xf32>
    %161 = vector.broadcast %160 : vector<1x512xf32> to vector<8x512xf32>
    %162 = arith.mulf %159, %161 : vector<8x512xf32>
    %c0_i32_136 = arith.constant 0 : i32
    %c0_i32_137 = arith.constant 0 : i32
    %c0_i32_138 = arith.constant 0 : i32
    %163 = tpu.memref_slice %arg6[%c0_i32_136, %c0_i32_137, %c0_i32_138] : memref<2x72x512xf32, #tpu.memory_space<vmem>> -> memref<1x72x512xf32, #tpu.memory_space<vmem>>
    %164 = tpu.memref_squeeze %163 : memref<1x72x512xf32, #tpu.memory_space<vmem>> -> memref<72x512xf32, #tpu.memory_space<vmem>>
    %c24_139 = arith.constant 24 : index
    %c0_140 = arith.constant 0 : index
    %165 = vector.load %164[%c24_139, %c0_140] : memref<72x512xf32, #tpu.memory_space<vmem>>, vector<8x512xf32>
    tpu.vector_store %164[%c24_139, %c0_140], %162 {strides = array<i32>} : memref<72x512xf32, #tpu.memory_space<vmem>>, vector<8x512xf32>,
    %c448_i32 = arith.constant 448 : i32
    %166 = tpu.dynamic_rotate %1 by %c448_i32 dim 1 : vector<8x512xf32>, i32 -> vector<8x512xf32>
    %c22 = arith.constant 22 : index
    %c0_141 = arith.constant 0 : index
    %167 = vector.load %arg1[%c22, %c0_141] : memref<27x512xf32, #tpu.memory_space<vmem>>, vector<1x512xf32>
    %168 = vector.broadcast %167 : vector<1x512xf32> to vector<8x512xf32>
    %169 = arith.mulf %166, %168 : vector<8x512xf32>
    %c0_i32_142 = arith.constant 0 : i32
    %c0_i32_143 = arith.constant 0 : i32
    %c0_i32_144 = arith.constant 0 : i32
    %170 = tpu.memref_slice %arg6[%c0_i32_142, %c0_i32_143, %c0_i32_144] : memref<2x72x512xf32, #tpu.memory_space<vmem>> -> memref<1x72x512xf32, #tpu.memory_space<vmem>>
    %171 = tpu.memref_squeeze %170 : memref<1x72x512xf32, #tpu.memory_space<vmem>> -> memref<72x512xf32, #tpu.memory_space<vmem>>
    %c32_145 = arith.constant 32 : index
    %c0_146 = arith.constant 0 : index
    %172 = vector.load %171[%c32_145, %c0_146] : memref<72x512xf32, #tpu.memory_space<vmem>>, vector<8x512xf32>
    tpu.vector_store %171[%c32_145, %c0_146], %169 {strides = array<i32>} : memref<72x512xf32, #tpu.memory_space<vmem>>, vector<8x512xf32>,
    %c447_i32 = arith.constant 447 : i32
    %173 = tpu.dynamic_rotate %1 by %c447_i32 dim 1 : vector<8x512xf32>, i32 -> vector<8x512xf32>
    %c23 = arith.constant 23 : index
    %c0_147 = arith.constant 0 : index
    %174 = vector.load %arg1[%c23, %c0_147] : memref<27x512xf32, #tpu.memory_space<vmem>>, vector<1x512xf32>
    %175 = vector.broadcast %174 : vector<1x512xf32> to vector<8x512xf32>
    %176 = arith.mulf %173, %175 : vector<8x512xf32>
    %c0_i32_148 = arith.constant 0 : i32
    %c0_i32_149 = arith.constant 0 : i32
    %c0_i32_150 = arith.constant 0 : i32
    %177 = tpu.memref_slice %arg6[%c0_i32_148, %c0_i32_149, %c0_i32_150] : memref<2x72x512xf32, #tpu.memory_space<vmem>> -> memref<1x72x512xf32, #tpu.memory_space<vmem>>
    %178 = tpu.memref_squeeze %177 : memref<1x72x512xf32, #tpu.memory_space<vmem>> -> memref<72x512xf32, #tpu.memory_space<vmem>>
    %c40_151 = arith.constant 40 : index
    %c0_152 = arith.constant 0 : index
    %179 = vector.load %178[%c40_151, %c0_152] : memref<72x512xf32, #tpu.memory_space<vmem>>, vector<8x512xf32>
    tpu.vector_store %178[%c40_151, %c0_152], %176 {strides = array<i32>} : memref<72x512xf32, #tpu.memory_space<vmem>>, vector<8x512xf32>,
    %c441_i32 = arith.constant 441 : i32
    %180 = tpu.dynamic_rotate %1 by %c441_i32 dim 1 : vector<8x512xf32>, i32 -> vector<8x512xf32>
    %c24_153 = arith.constant 24 : index
    %c0_154 = arith.constant 0 : index
    %181 = vector.load %arg1[%c24_153, %c0_154] : memref<27x512xf32, #tpu.memory_space<vmem>>, vector<1x512xf32>
    %182 = vector.broadcast %181 : vector<1x512xf32> to vector<8x512xf32>
    %183 = arith.mulf %180, %182 : vector<8x512xf32>
    %c0_i32_155 = arith.constant 0 : i32
    %c0_i32_156 = arith.constant 0 : i32
    %c0_i32_157 = arith.constant 0 : i32
    %184 = tpu.memref_slice %arg6[%c0_i32_155, %c0_i32_156, %c0_i32_157] : memref<2x72x512xf32, #tpu.memory_space<vmem>> -> memref<1x72x512xf32, #tpu.memory_space<vmem>>
    %185 = tpu.memref_squeeze %184 : memref<1x72x512xf32, #tpu.memory_space<vmem>> -> memref<72x512xf32, #tpu.memory_space<vmem>>
    %c48_158 = arith.constant 48 : index
    %c0_159 = arith.constant 0 : index
    %186 = vector.load %185[%c48_158, %c0_159] : memref<72x512xf32, #tpu.memory_space<vmem>>, vector<8x512xf32>
    tpu.vector_store %185[%c48_158, %c0_159], %183 {strides = array<i32>} : memref<72x512xf32, #tpu.memory_space<vmem>>, vector<8x512xf32>,
    %c440_i32 = arith.constant 440 : i32
    %187 = tpu.dynamic_rotate %1 by %c440_i32 dim 1 : vector<8x512xf32>, i32 -> vector<8x512xf32>
    %c25 = arith.constant 25 : index
    %c0_160 = arith.constant 0 : index
    %188 = vector.load %arg1[%c25, %c0_160] : memref<27x512xf32, #tpu.memory_space<vmem>>, vector<1x512xf32>
    %189 = vector.broadcast %188 : vector<1x512xf32> to vector<8x512xf32>
    %190 = arith.mulf %187, %189 : vector<8x512xf32>
    %c0_i32_161 = arith.constant 0 : i32
    %c0_i32_162 = arith.constant 0 : i32
    %c0_i32_163 = arith.constant 0 : i32
    %191 = tpu.memref_slice %arg6[%c0_i32_161, %c0_i32_162, %c0_i32_163] : memref<2x72x512xf32, #tpu.memory_space<vmem>> -> memref<1x72x512xf32, #tpu.memory_space<vmem>>
    %192 = tpu.memref_squeeze %191 : memref<1x72x512xf32, #tpu.memory_space<vmem>> -> memref<72x512xf32, #tpu.memory_space<vmem>>
    %c56_164 = arith.constant 56 : index
    %c0_165 = arith.constant 0 : index
    %193 = vector.load %192[%c56_164, %c0_165] : memref<72x512xf32, #tpu.memory_space<vmem>>, vector<8x512xf32>
    tpu.vector_store %192[%c56_164, %c0_165], %190 {strides = array<i32>} : memref<72x512xf32, #tpu.memory_space<vmem>>, vector<8x512xf32>,
    %c439_i32 = arith.constant 439 : i32
    %194 = tpu.dynamic_rotate %1 by %c439_i32 dim 1 : vector<8x512xf32>, i32 -> vector<8x512xf32>
    %c26 = arith.constant 26 : index
    %c0_166 = arith.constant 0 : index
    %195 = vector.load %arg1[%c26, %c0_166] : memref<27x512xf32, #tpu.memory_space<vmem>>, vector<1x512xf32>
    %196 = vector.broadcast %195 : vector<1x512xf32> to vector<8x512xf32>
    %197 = arith.mulf %194, %196 : vector<8x512xf32>
    %c0_i32_167 = arith.constant 0 : i32
    %c0_i32_168 = arith.constant 0 : i32
    %c0_i32_169 = arith.constant 0 : i32
    %198 = tpu.memref_slice %arg6[%c0_i32_167, %c0_i32_168, %c0_i32_169] : memref<2x72x512xf32, #tpu.memory_space<vmem>> -> memref<1x72x512xf32, #tpu.memory_space<vmem>>
    %199 = tpu.memref_squeeze %198 : memref<1x72x512xf32, #tpu.memory_space<vmem>> -> memref<72x512xf32, #tpu.memory_space<vmem>>
    %c64_170 = arith.constant 64 : index
    %c0_171 = arith.constant 0 : index
    %200 = vector.load %199[%c64_170, %c0_171] : memref<72x512xf32, #tpu.memory_space<vmem>>, vector<8x512xf32>
    tpu.vector_store %199[%c64_170, %c0_171], %197 {strides = array<i32>} : memref<72x512xf32, #tpu.memory_space<vmem>>, vector<8x512xf32>,
    %c2_172 = arith.constant 2 : index
    %c0_173 = arith.constant 0 : index
    %c0_174 = arith.constant 0 : index
    %201 = vector.load %arg3[%c2_172, %c0_173, %c0_174] : memref<3x8x72xf32, #tpu.memory_space<vmem>>, vector<1x8x72xf32>
    %202 = vector.shape_cast %201 : vector<1x8x72xf32> to vector<8x72xf32>
    %c0_175 = arith.constant 0 : index
    %c0_176 = arith.constant 0 : index
    %c0_177 = arith.constant 0 : index
    %203 = vector.load %arg6[%c0_175, %c0_176, %c0_177] : memref<2x72x512xf32, #tpu.memory_space<vmem>>, vector<1x72x512xf32>
    %204 = vector.shape_cast %203 : vector<1x72x512xf32> to vector<72x512xf32>
    %cst_178 = arith.constant dense<0.000000e+00> : vector<8x512xf32>
    %205 = tpu.matmul %202, %204, %cst_178 {dimension_numbers = #tpu.dot_dimension_numbers<[1], [0], [0], [1], [0, 0, 1, 1], [], []>} : vector<8x72xf32>, vector<72x512xf32>, vector<8x512xf32> -> vector<8x512xf32>
    %206 = arith.addf %137, %205 : vector<8x512xf32>
    %cst_179 = arith.constant dense<0.000000e+00> : vector<8xf32>
    %207 = vector.multi_reduction <add>, %206, %cst_179 [1] : vector<8x512xf32> to vector<8xf32>
    %208 = vector.shape_cast %207 : vector<8xf32> to vector<8x1xf32>
    %209 = arith.mulf %206, %206 : vector<8x512xf32>
    %cst_180 = arith.constant dense<0.000000e+00> : vector<8xf32>
    %210 = vector.multi_reduction <add>, %209, %cst_180 [1] : vector<8x512xf32> to vector<8xf32>
    %211 = vector.shape_cast %210 : vector<8xf32> to vector<8x1xf32>
    %cst_181 = arith.constant 0.001953125 : f32
    %212 = vector.broadcast %cst_181 : f32 to vector<8x1xf32>
    %213 = arith.mulf %208, %212 : vector<8x1xf32>
    %cst_182 = arith.constant 0.001953125 : f32
    %214 = vector.broadcast %cst_182 : f32 to vector<8x1xf32>
    %215 = arith.mulf %211, %214 : vector<8x1xf32>
    %216 = arith.mulf %213, %213 : vector<8x1xf32>
    %217 = arith.subf %215, %216 : vector<8x1xf32>
    %cst_183 = arith.constant 0.000000e+00 : f32
    %218 = vector.broadcast %cst_183 : f32 to vector<8x1xf32>
    %219 = arith.maximumf %217, %218 : vector<8x1xf32>
    %220 = vector.broadcast %213 : vector<8x1xf32> to vector<8x512xf32>
    %221 = arith.subf %206, %220 : vector<8x512xf32>
    %cst_184 = arith.constant 9.99999974E-6 : f32
    %222 = vector.broadcast %cst_184 : f32 to vector<8x1xf32>
    %223 = arith.addf %219, %222 : vector<8x1xf32>
    %224 = math.rsqrt %223 : vector<8x1xf32>
    %225 = vector.broadcast %224 : vector<8x1xf32> to vector<8x512xf32>
    %226 = arith.mulf %221, %225 : vector<8x512xf32>
    %cst_185 = arith.constant 0.000000e+00 : f32
    %227 = vector.broadcast %cst_185 : f32 to vector<8x512xf32>
    %228 = arith.maximumf %226, %227 : vector<8x512xf32>
    %c0_186 = arith.constant 0 : index
    %c0_187 = arith.constant 0 : index
    %229 = vector.load %arg7[%c0_186, %c0_187] : memref<8x512xf32, #tpu.memory_space<vmem>>, vector<8x512xf32>
    tpu.vector_store %arg7[%c0_186, %c0_187], %228 {strides = array<i32>} : memref<8x512xf32, #tpu.memory_space<vmem>>, vector<8x512xf32>,
    %c0_188 = arith.constant 0 : index
    %c0_189 = arith.constant 0 : index
    %230 = vector.load %arg7[%c0_188, %c0_189] : memref<8x512xf32, #tpu.memory_space<vmem>>, vector<8x512xf32>
    %c73_i32_190 = arith.constant 73 : i32
    %231 = tpu.dynamic_rotate %230 by %c73_i32_190 dim 1 : vector<8x512xf32>, i32 -> vector<8x512xf32>
    %c0_191 = arith.constant 0 : index
    %c0_192 = arith.constant 0 : index
    %232 = vector.load %arg1[%c0_191, %c0_192] : memref<27x512xf32, #tpu.memory_space<vmem>>, vector<1x512xf32>
    %233 = vector.broadcast %232 : vector<1x512xf32> to vector<8x512xf32>
    %234 = arith.mulf %231, %233 : vector<8x512xf32>
    %c0_i32_193 = arith.constant 0 : i32
    %c0_i32_194 = arith.constant 0 : i32
    %c0_i32_195 = arith.constant 0 : i32
    %235 = tpu.memref_slice %arg6[%c0_i32_193, %c0_i32_194, %c0_i32_195] : memref<2x72x512xf32, #tpu.memory_space<vmem>> -> memref<1x72x512xf32, #tpu.memory_space<vmem>>
    %236 = tpu.memref_squeeze %235 : memref<1x72x512xf32, #tpu.memory_space<vmem>> -> memref<72x512xf32, #tpu.memory_space<vmem>>
    %c0_196 = arith.constant 0 : index
    %c0_197 = arith.constant 0 : index
    %237 = vector.load %236[%c0_196, %c0_197] : memref<72x512xf32, #tpu.memory_space<vmem>>, vector<8x512xf32>
    tpu.vector_store %236[%c0_196, %c0_197], %234 {strides = array<i32>} : memref<72x512xf32, #tpu.memory_space<vmem>>, vector<8x512xf32>,
    %c72_i32_198 = arith.constant 72 : i32
    %238 = tpu.dynamic_rotate %230 by %c72_i32_198 dim 1 : vector<8x512xf32>, i32 -> vector<8x512xf32>
    %c1_199 = arith.constant 1 : index
    %c0_200 = arith.constant 0 : index
    %239 = vector.load %arg1[%c1_199, %c0_200] : memref<27x512xf32, #tpu.memory_space<vmem>>, vector<1x512xf32>
    %240 = vector.broadcast %239 : vector<1x512xf32> to vector<8x512xf32>
    %241 = arith.mulf %238, %240 : vector<8x512xf32>
    %c0_i32_201 = arith.constant 0 : i32
    %c0_i32_202 = arith.constant 0 : i32
    %c0_i32_203 = arith.constant 0 : i32
    %242 = tpu.memref_slice %arg6[%c0_i32_201, %c0_i32_202, %c0_i32_203] : memref<2x72x512xf32, #tpu.memory_space<vmem>> -> memref<1x72x512xf32, #tpu.memory_space<vmem>>
    %243 = tpu.memref_squeeze %242 : memref<1x72x512xf32, #tpu.memory_space<vmem>> -> memref<72x512xf32, #tpu.memory_space<vmem>>
    %c8_204 = arith.constant 8 : index
    %c0_205 = arith.constant 0 : index
    %244 = vector.load %243[%c8_204, %c0_205] : memref<72x512xf32, #tpu.memory_space<vmem>>, vector<8x512xf32>
    tpu.vector_store %243[%c8_204, %c0_205], %241 {strides = array<i32>} : memref<72x512xf32, #tpu.memory_space<vmem>>, vector<8x512xf32>,
    %c71_i32_206 = arith.constant 71 : i32
    %245 = tpu.dynamic_rotate %230 by %c71_i32_206 dim 1 : vector<8x512xf32>, i32 -> vector<8x512xf32>
    %c2_207 = arith.constant 2 : index
    %c0_208 = arith.constant 0 : index
    %246 = vector.load %arg1[%c2_207, %c0_208] : memref<27x512xf32, #tpu.memory_space<vmem>>, vector<1x512xf32>
    %247 = vector.broadcast %246 : vector<1x512xf32> to vector<8x512xf32>
    %248 = arith.mulf %245, %247 : vector<8x512xf32>
    %c0_i32_209 = arith.constant 0 : i32
    %c0_i32_210 = arith.constant 0 : i32
    %c0_i32_211 = arith.constant 0 : i32
    %249 = tpu.memref_slice %arg6[%c0_i32_209, %c0_i32_210, %c0_i32_211] : memref<2x72x512xf32, #tpu.memory_space<vmem>> -> memref<1x72x512xf32, #tpu.memory_space<vmem>>
    %250 = tpu.memref_squeeze %249 : memref<1x72x512xf32, #tpu.memory_space<vmem>> -> memref<72x512xf32, #tpu.memory_space<vmem>>
    %c16_212 = arith.constant 16 : index
    %c0_213 = arith.constant 0 : index
    %251 = vector.load %250[%c16_212, %c0_213] : memref<72x512xf32, #tpu.memory_space<vmem>>, vector<8x512xf32>
    tpu.vector_store %250[%c16_212, %c0_213], %248 {strides = array<i32>} : memref<72x512xf32, #tpu.memory_space<vmem>>, vector<8x512xf32>,
    %c65_i32_214 = arith.constant 65 : i32
    %252 = tpu.dynamic_rotate %230 by %c65_i32_214 dim 1 : vector<8x512xf32>, i32 -> vector<8x512xf32>
    %c3_215 = arith.constant 3 : index
    %c0_216 = arith.constant 0 : index
    %253 = vector.load %arg1[%c3_215, %c0_216] : memref<27x512xf32, #tpu.memory_space<vmem>>, vector<1x512xf32>
    %254 = vector.broadcast %253 : vector<1x512xf32> to vector<8x512xf32>
    %255 = arith.mulf %252, %254 : vector<8x512xf32>
    %c0_i32_217 = arith.constant 0 : i32
    %c0_i32_218 = arith.constant 0 : i32
    %c0_i32_219 = arith.constant 0 : i32
    %256 = tpu.memref_slice %arg6[%c0_i32_217, %c0_i32_218, %c0_i32_219] : memref<2x72x512xf32, #tpu.memory_space<vmem>> -> memref<1x72x512xf32, #tpu.memory_space<vmem>>
    %257 = tpu.memref_squeeze %256 : memref<1x72x512xf32, #tpu.memory_space<vmem>> -> memref<72x512xf32, #tpu.memory_space<vmem>>
    %c24_220 = arith.constant 24 : index
    %c0_221 = arith.constant 0 : index
    %258 = vector.load %257[%c24_220, %c0_221] : memref<72x512xf32, #tpu.memory_space<vmem>>, vector<8x512xf32>
    tpu.vector_store %257[%c24_220, %c0_221], %255 {strides = array<i32>} : memref<72x512xf32, #tpu.memory_space<vmem>>, vector<8x512xf32>,
    %c64_i32_222 = arith.constant 64 : i32
    %259 = tpu.dynamic_rotate %230 by %c64_i32_222 dim 1 : vector<8x512xf32>, i32 -> vector<8x512xf32>
    %c4_223 = arith.constant 4 : index
    %c0_224 = arith.constant 0 : index
    %260 = vector.load %arg1[%c4_223, %c0_224] : memref<27x512xf32, #tpu.memory_space<vmem>>, vector<1x512xf32>
    %261 = vector.broadcast %260 : vector<1x512xf32> to vector<8x512xf32>
    %262 = arith.mulf %259, %261 : vector<8x512xf32>
    %c0_i32_225 = arith.constant 0 : i32
    %c0_i32_226 = arith.constant 0 : i32
    %c0_i32_227 = arith.constant 0 : i32
    %263 = tpu.memref_slice %arg6[%c0_i32_225, %c0_i32_226, %c0_i32_227] : memref<2x72x512xf32, #tpu.memory_space<vmem>> -> memref<1x72x512xf32, #tpu.memory_space<vmem>>
    %264 = tpu.memref_squeeze %263 : memref<1x72x512xf32, #tpu.memory_space<vmem>> -> memref<72x512xf32, #tpu.memory_space<vmem>>
    %c32_228 = arith.constant 32 : index
    %c0_229 = arith.constant 0 : index
    %265 = vector.load %264[%c32_228, %c0_229] : memref<72x512xf32, #tpu.memory_space<vmem>>, vector<8x512xf32>
    tpu.vector_store %264[%c32_228, %c0_229], %262 {strides = array<i32>} : memref<72x512xf32, #tpu.memory_space<vmem>>, vector<8x512xf32>,
    %c63_i32_230 = arith.constant 63 : i32
    %266 = tpu.dynamic_rotate %230 by %c63_i32_230 dim 1 : vector<8x512xf32>, i32 -> vector<8x512xf32>
    %c5_231 = arith.constant 5 : index
    %c0_232 = arith.constant 0 : index
    %267 = vector.load %arg1[%c5_231, %c0_232] : memref<27x512xf32, #tpu.memory_space<vmem>>, vector<1x512xf32>
    %268 = vector.broadcast %267 : vector<1x512xf32> to vector<8x512xf32>
    %269 = arith.mulf %266, %268 : vector<8x512xf32>
    %c0_i32_233 = arith.constant 0 : i32
    %c0_i32_234 = arith.constant 0 : i32
    %c0_i32_235 = arith.constant 0 : i32
    %270 = tpu.memref_slice %arg6[%c0_i32_233, %c0_i32_234, %c0_i32_235] : memref<2x72x512xf32, #tpu.memory_space<vmem>> -> memref<1x72x512xf32, #tpu.memory_space<vmem>>
    %271 = tpu.memref_squeeze %270 : memref<1x72x512xf32, #tpu.memory_space<vmem>> -> memref<72x512xf32, #tpu.memory_space<vmem>>
    %c40_236 = arith.constant 40 : index
    %c0_237 = arith.constant 0 : index
    %272 = vector.load %271[%c40_236, %c0_237] : memref<72x512xf32, #tpu.memory_space<vmem>>, vector<8x512xf32>
    tpu.vector_store %271[%c40_236, %c0_237], %269 {strides = array<i32>} : memref<72x512xf32, #tpu.memory_space<vmem>>, vector<8x512xf32>,
    %c57_i32_238 = arith.constant 57 : i32
    %273 = tpu.dynamic_rotate %230 by %c57_i32_238 dim 1 : vector<8x512xf32>, i32 -> vector<8x512xf32>
    %c6_239 = arith.constant 6 : index
    %c0_240 = arith.constant 0 : index
    %274 = vector.load %arg1[%c6_239, %c0_240] : memref<27x512xf32, #tpu.memory_space<vmem>>, vector<1x512xf32>
    %275 = vector.broadcast %274 : vector<1x512xf32> to vector<8x512xf32>
    %276 = arith.mulf %273, %275 : vector<8x512xf32>
    %c0_i32_241 = arith.constant 0 : i32
    %c0_i32_242 = arith.constant 0 : i32
    %c0_i32_243 = arith.constant 0 : i32
    %277 = tpu.memref_slice %arg6[%c0_i32_241, %c0_i32_242, %c0_i32_243] : memref<2x72x512xf32, #tpu.memory_space<vmem>> -> memref<1x72x512xf32, #tpu.memory_space<vmem>>
    %278 = tpu.memref_squeeze %277 : memref<1x72x512xf32, #tpu.memory_space<vmem>> -> memref<72x512xf32, #tpu.memory_space<vmem>>
    %c48_244 = arith.constant 48 : index
    %c0_245 = arith.constant 0 : index
    %279 = vector.load %278[%c48_244, %c0_245] : memref<72x512xf32, #tpu.memory_space<vmem>>, vector<8x512xf32>
    tpu.vector_store %278[%c48_244, %c0_245], %276 {strides = array<i32>} : memref<72x512xf32, #tpu.memory_space<vmem>>, vector<8x512xf32>,
    %c56_i32_246 = arith.constant 56 : i32
    %280 = tpu.dynamic_rotate %230 by %c56_i32_246 dim 1 : vector<8x512xf32>, i32 -> vector<8x512xf32>
    %c7_247 = arith.constant 7 : index
    %c0_248 = arith.constant 0 : index
    %281 = vector.load %arg1[%c7_247, %c0_248] : memref<27x512xf32, #tpu.memory_space<vmem>>, vector<1x512xf32>
    %282 = vector.broadcast %281 : vector<1x512xf32> to vector<8x512xf32>
    %283 = arith.mulf %280, %282 : vector<8x512xf32>
    %c0_i32_249 = arith.constant 0 : i32
    %c0_i32_250 = arith.constant 0 : i32
    %c0_i32_251 = arith.constant 0 : i32
    %284 = tpu.memref_slice %arg6[%c0_i32_249, %c0_i32_250, %c0_i32_251] : memref<2x72x512xf32, #tpu.memory_space<vmem>> -> memref<1x72x512xf32, #tpu.memory_space<vmem>>
    %285 = tpu.memref_squeeze %284 : memref<1x72x512xf32, #tpu.memory_space<vmem>> -> memref<72x512xf32, #tpu.memory_space<vmem>>
    %c56_252 = arith.constant 56 : index
    %c0_253 = arith.constant 0 : index
    %286 = vector.load %285[%c56_252, %c0_253] : memref<72x512xf32, #tpu.memory_space<vmem>>, vector<8x512xf32>
    tpu.vector_store %285[%c56_252, %c0_253], %283 {strides = array<i32>} : memref<72x512xf32, #tpu.memory_space<vmem>>, vector<8x512xf32>,
    %c55_i32_254 = arith.constant 55 : i32
    %287 = tpu.dynamic_rotate %230 by %c55_i32_254 dim 1 : vector<8x512xf32>, i32 -> vector<8x512xf32>
    %c8_255 = arith.constant 8 : index
    %c0_256 = arith.constant 0 : index
    %288 = vector.load %arg1[%c8_255, %c0_256] : memref<27x512xf32, #tpu.memory_space<vmem>>, vector<1x512xf32>
    %289 = vector.broadcast %288 : vector<1x512xf32> to vector<8x512xf32>
    %290 = arith.mulf %287, %289 : vector<8x512xf32>
    %c0_i32_257 = arith.constant 0 : i32
    %c0_i32_258 = arith.constant 0 : i32
    %c0_i32_259 = arith.constant 0 : i32
    %291 = tpu.memref_slice %arg6[%c0_i32_257, %c0_i32_258, %c0_i32_259] : memref<2x72x512xf32, #tpu.memory_space<vmem>> -> memref<1x72x512xf32, #tpu.memory_space<vmem>>
    %292 = tpu.memref_squeeze %291 : memref<1x72x512xf32, #tpu.memory_space<vmem>> -> memref<72x512xf32, #tpu.memory_space<vmem>>
    %c64_260 = arith.constant 64 : index
    %c0_261 = arith.constant 0 : index
    %293 = vector.load %292[%c64_260, %c0_261] : memref<72x512xf32, #tpu.memory_space<vmem>>, vector<8x512xf32>
    tpu.vector_store %292[%c64_260, %c0_261], %290 {strides = array<i32>} : memref<72x512xf32, #tpu.memory_space<vmem>>, vector<8x512xf32>,
    %c0_262 = arith.constant 0 : index
    %c0_263 = arith.constant 0 : index
    %c0_264 = arith.constant 0 : index
    %294 = vector.load %arg4[%c0_262, %c0_263, %c0_264] : memref<3x8x72xf32, #tpu.memory_space<vmem>>, vector<1x8x72xf32>
    %295 = vector.shape_cast %294 : vector<1x8x72xf32> to vector<8x72xf32>
    %c0_265 = arith.constant 0 : index
    %c0_266 = arith.constant 0 : index
    %c0_267 = arith.constant 0 : index
    %296 = vector.load %arg6[%c0_265, %c0_266, %c0_267] : memref<2x72x512xf32, #tpu.memory_space<vmem>>, vector<1x72x512xf32>
    %297 = vector.shape_cast %296 : vector<1x72x512xf32> to vector<72x512xf32>
    %cst_268 = arith.constant dense<0.000000e+00> : vector<8x512xf32>
    %298 = tpu.matmul %295, %297, %cst_268 {dimension_numbers = #tpu.dot_dimension_numbers<[1], [0], [0], [1], [0, 0, 1, 1], [], []>} : vector<8x72xf32>, vector<72x512xf32>, vector<8x512xf32> -> vector<8x512xf32>
    %c9_i32_269 = arith.constant 9 : i32
    %299 = tpu.dynamic_rotate %230 by %c9_i32_269 dim 1 : vector<8x512xf32>, i32 -> vector<8x512xf32>
    %c9_270 = arith.constant 9 : index
    %c0_271 = arith.constant 0 : index
    %300 = vector.load %arg1[%c9_270, %c0_271] : memref<27x512xf32, #tpu.memory_space<vmem>>, vector<1x512xf32>
    %301 = vector.broadcast %300 : vector<1x512xf32> to vector<8x512xf32>
    %302 = arith.mulf %299, %301 : vector<8x512xf32>
    %c1_i32_272 = arith.constant 1 : i32
    %c0_i32_273 = arith.constant 0 : i32
    %c0_i32_274 = arith.constant 0 : i32
    %303 = tpu.memref_slice %arg6[%c1_i32_272, %c0_i32_273, %c0_i32_274] : memref<2x72x512xf32, #tpu.memory_space<vmem>> -> memref<1x72x512xf32, #tpu.memory_space<vmem>>
    %304 = tpu.memref_squeeze %303 : memref<1x72x512xf32, #tpu.memory_space<vmem>> -> memref<72x512xf32, #tpu.memory_space<vmem>>
    %c0_275 = arith.constant 0 : index
    %c0_276 = arith.constant 0 : index
    %305 = vector.load %304[%c0_275, %c0_276] : memref<72x512xf32, #tpu.memory_space<vmem>>, vector<8x512xf32>
    tpu.vector_store %304[%c0_275, %c0_276], %302 {strides = array<i32>} : memref<72x512xf32, #tpu.memory_space<vmem>>, vector<8x512xf32>,
    %c8_i32_277 = arith.constant 8 : i32
    %306 = tpu.dynamic_rotate %230 by %c8_i32_277 dim 1 : vector<8x512xf32>, i32 -> vector<8x512xf32>
    %c10_278 = arith.constant 10 : index
    %c0_279 = arith.constant 0 : index
    %307 = vector.load %arg1[%c10_278, %c0_279] : memref<27x512xf32, #tpu.memory_space<vmem>>, vector<1x512xf32>
    %308 = vector.broadcast %307 : vector<1x512xf32> to vector<8x512xf32>
    %309 = arith.mulf %306, %308 : vector<8x512xf32>
    %c1_i32_280 = arith.constant 1 : i32
    %c0_i32_281 = arith.constant 0 : i32
    %c0_i32_282 = arith.constant 0 : i32
    %310 = tpu.memref_slice %arg6[%c1_i32_280, %c0_i32_281, %c0_i32_282] : memref<2x72x512xf32, #tpu.memory_space<vmem>> -> memref<1x72x512xf32, #tpu.memory_space<vmem>>
    %311 = tpu.memref_squeeze %310 : memref<1x72x512xf32, #tpu.memory_space<vmem>> -> memref<72x512xf32, #tpu.memory_space<vmem>>
    %c8_283 = arith.constant 8 : index
    %c0_284 = arith.constant 0 : index
    %312 = vector.load %311[%c8_283, %c0_284] : memref<72x512xf32, #tpu.memory_space<vmem>>, vector<8x512xf32>
    tpu.vector_store %311[%c8_283, %c0_284], %309 {strides = array<i32>} : memref<72x512xf32, #tpu.memory_space<vmem>>, vector<8x512xf32>,
    %c7_i32_285 = arith.constant 7 : i32
    %313 = tpu.dynamic_rotate %230 by %c7_i32_285 dim 1 : vector<8x512xf32>, i32 -> vector<8x512xf32>
    %c11_286 = arith.constant 11 : index
    %c0_287 = arith.constant 0 : index
    %314 = vector.load %arg1[%c11_286, %c0_287] : memref<27x512xf32, #tpu.memory_space<vmem>>, vector<1x512xf32>
    %315 = vector.broadcast %314 : vector<1x512xf32> to vector<8x512xf32>
    %316 = arith.mulf %313, %315 : vector<8x512xf32>
    %c1_i32_288 = arith.constant 1 : i32
    %c0_i32_289 = arith.constant 0 : i32
    %c0_i32_290 = arith.constant 0 : i32
    %317 = tpu.memref_slice %arg6[%c1_i32_288, %c0_i32_289, %c0_i32_290] : memref<2x72x512xf32, #tpu.memory_space<vmem>> -> memref<1x72x512xf32, #tpu.memory_space<vmem>>
    %318 = tpu.memref_squeeze %317 : memref<1x72x512xf32, #tpu.memory_space<vmem>> -> memref<72x512xf32, #tpu.memory_space<vmem>>
    %c16_291 = arith.constant 16 : index
    %c0_292 = arith.constant 0 : index
    %319 = vector.load %318[%c16_291, %c0_292] : memref<72x512xf32, #tpu.memory_space<vmem>>, vector<8x512xf32>
    tpu.vector_store %318[%c16_291, %c0_292], %316 {strides = array<i32>} : memref<72x512xf32, #tpu.memory_space<vmem>>, vector<8x512xf32>,
    %c1_i32_293 = arith.constant 1 : i32
    %320 = tpu.dynamic_rotate %230 by %c1_i32_293 dim 1 : vector<8x512xf32>, i32 -> vector<8x512xf32>
    %c12_294 = arith.constant 12 : index
    %c0_295 = arith.constant 0 : index
    %321 = vector.load %arg1[%c12_294, %c0_295] : memref<27x512xf32, #tpu.memory_space<vmem>>, vector<1x512xf32>
    %322 = vector.broadcast %321 : vector<1x512xf32> to vector<8x512xf32>
    %323 = arith.mulf %320, %322 : vector<8x512xf32>
    %c1_i32_296 = arith.constant 1 : i32
    %c0_i32_297 = arith.constant 0 : i32
    %c0_i32_298 = arith.constant 0 : i32
    %324 = tpu.memref_slice %arg6[%c1_i32_296, %c0_i32_297, %c0_i32_298] : memref<2x72x512xf32, #tpu.memory_space<vmem>> -> memref<1x72x512xf32, #tpu.memory_space<vmem>>
    %325 = tpu.memref_squeeze %324 : memref<1x72x512xf32, #tpu.memory_space<vmem>> -> memref<72x512xf32, #tpu.memory_space<vmem>>
    %c24_299 = arith.constant 24 : index
    %c0_300 = arith.constant 0 : index
    %326 = vector.load %325[%c24_299, %c0_300] : memref<72x512xf32, #tpu.memory_space<vmem>>, vector<8x512xf32>
    tpu.vector_store %325[%c24_299, %c0_300], %323 {strides = array<i32>} : memref<72x512xf32, #tpu.memory_space<vmem>>, vector<8x512xf32>,
    %c13_301 = arith.constant 13 : index
    %c0_302 = arith.constant 0 : index
    %327 = vector.load %arg1[%c13_301, %c0_302] : memref<27x512xf32, #tpu.memory_space<vmem>>, vector<1x512xf32>
    %328 = vector.broadcast %327 : vector<1x512xf32> to vector<8x512xf32>
    %329 = arith.mulf %230, %328 : vector<8x512xf32>
    %c1_i32_303 = arith.constant 1 : i32
    %c0_i32_304 = arith.constant 0 : i32
    %c0_i32_305 = arith.constant 0 : i32
    %330 = tpu.memref_slice %arg6[%c1_i32_303, %c0_i32_304, %c0_i32_305] : memref<2x72x512xf32, #tpu.memory_space<vmem>> -> memref<1x72x512xf32, #tpu.memory_space<vmem>>
    %331 = tpu.memref_squeeze %330 : memref<1x72x512xf32, #tpu.memory_space<vmem>> -> memref<72x512xf32, #tpu.memory_space<vmem>>
    %c32_306 = arith.constant 32 : index
    %c0_307 = arith.constant 0 : index
    %332 = vector.load %331[%c32_306, %c0_307] : memref<72x512xf32, #tpu.memory_space<vmem>>, vector<8x512xf32>
    tpu.vector_store %331[%c32_306, %c0_307], %329 {strides = array<i32>} : memref<72x512xf32, #tpu.memory_space<vmem>>, vector<8x512xf32>,
    %c511_i32_308 = arith.constant 511 : i32
    %333 = tpu.dynamic_rotate %230 by %c511_i32_308 dim 1 : vector<8x512xf32>, i32 -> vector<8x512xf32>
    %c14_309 = arith.constant 14 : index
    %c0_310 = arith.constant 0 : index
    %334 = vector.load %arg1[%c14_309, %c0_310] : memref<27x512xf32, #tpu.memory_space<vmem>>, vector<1x512xf32>
    %335 = vector.broadcast %334 : vector<1x512xf32> to vector<8x512xf32>
    %336 = arith.mulf %333, %335 : vector<8x512xf32>
    %c1_i32_311 = arith.constant 1 : i32
    %c0_i32_312 = arith.constant 0 : i32
    %c0_i32_313 = arith.constant 0 : i32
    %337 = tpu.memref_slice %arg6[%c1_i32_311, %c0_i32_312, %c0_i32_313] : memref<2x72x512xf32, #tpu.memory_space<vmem>> -> memref<1x72x512xf32, #tpu.memory_space<vmem>>
    %338 = tpu.memref_squeeze %337 : memref<1x72x512xf32, #tpu.memory_space<vmem>> -> memref<72x512xf32, #tpu.memory_space<vmem>>
    %c40_314 = arith.constant 40 : index
    %c0_315 = arith.constant 0 : index
    %339 = vector.load %338[%c40_314, %c0_315] : memref<72x512xf32, #tpu.memory_space<vmem>>, vector<8x512xf32>
    tpu.vector_store %338[%c40_314, %c0_315], %336 {strides = array<i32>} : memref<72x512xf32, #tpu.memory_space<vmem>>, vector<8x512xf32>,
    %c505_i32_316 = arith.constant 505 : i32
    %340 = tpu.dynamic_rotate %230 by %c505_i32_316 dim 1 : vector<8x512xf32>, i32 -> vector<8x512xf32>
    %c15_317 = arith.constant 15 : index
    %c0_318 = arith.constant 0 : index
    %341 = vector.load %arg1[%c15_317, %c0_318] : memref<27x512xf32, #tpu.memory_space<vmem>>, vector<1x512xf32>
    %342 = vector.broadcast %341 : vector<1x512xf32> to vector<8x512xf32>
    %343 = arith.mulf %340, %342 : vector<8x512xf32>
    %c1_i32_319 = arith.constant 1 : i32
    %c0_i32_320 = arith.constant 0 : i32
    %c0_i32_321 = arith.constant 0 : i32
    %344 = tpu.memref_slice %arg6[%c1_i32_319, %c0_i32_320, %c0_i32_321] : memref<2x72x512xf32, #tpu.memory_space<vmem>> -> memref<1x72x512xf32, #tpu.memory_space<vmem>>
    %345 = tpu.memref_squeeze %344 : memref<1x72x512xf32, #tpu.memory_space<vmem>> -> memref<72x512xf32, #tpu.memory_space<vmem>>
    %c48_322 = arith.constant 48 : index
    %c0_323 = arith.constant 0 : index
    %346 = vector.load %345[%c48_322, %c0_323] : memref<72x512xf32, #tpu.memory_space<vmem>>, vector<8x512xf32>
    tpu.vector_store %345[%c48_322, %c0_323], %343 {strides = array<i32>} : memref<72x512xf32, #tpu.memory_space<vmem>>, vector<8x512xf32>,
    %c504_i32_324 = arith.constant 504 : i32
    %347 = tpu.dynamic_rotate %230 by %c504_i32_324 dim 1 : vector<8x512xf32>, i32 -> vector<8x512xf32>
    %c16_325 = arith.constant 16 : index
    %c0_326 = arith.constant 0 : index
    %348 = vector.load %arg1[%c16_325, %c0_326] : memref<27x512xf32, #tpu.memory_space<vmem>>, vector<1x512xf32>
    %349 = vector.broadcast %348 : vector<1x512xf32> to vector<8x512xf32>
    %350 = arith.mulf %347, %349 : vector<8x512xf32>
    %c1_i32_327 = arith.constant 1 : i32
    %c0_i32_328 = arith.constant 0 : i32
    %c0_i32_329 = arith.constant 0 : i32
    %351 = tpu.memref_slice %arg6[%c1_i32_327, %c0_i32_328, %c0_i32_329] : memref<2x72x512xf32, #tpu.memory_space<vmem>> -> memref<1x72x512xf32, #tpu.memory_space<vmem>>
    %352 = tpu.memref_squeeze %351 : memref<1x72x512xf32, #tpu.memory_space<vmem>> -> memref<72x512xf32, #tpu.memory_space<vmem>>
    %c56_330 = arith.constant 56 : index
    %c0_331 = arith.constant 0 : index
    %353 = vector.load %352[%c56_330, %c0_331] : memref<72x512xf32, #tpu.memory_space<vmem>>, vector<8x512xf32>
    tpu.vector_store %352[%c56_330, %c0_331], %350 {strides = array<i32>} : memref<72x512xf32, #tpu.memory_space<vmem>>, vector<8x512xf32>,
    %c503_i32_332 = arith.constant 503 : i32
    %354 = tpu.dynamic_rotate %230 by %c503_i32_332 dim 1 : vector<8x512xf32>, i32 -> vector<8x512xf32>
    %c17_333 = arith.constant 17 : index
    %c0_334 = arith.constant 0 : index
    %355 = vector.load %arg1[%c17_333, %c0_334] : memref<27x512xf32, #tpu.memory_space<vmem>>, vector<1x512xf32>
    %356 = vector.broadcast %355 : vector<1x512xf32> to vector<8x512xf32>
    %357 = arith.mulf %354, %356 : vector<8x512xf32>
    %c1_i32_335 = arith.constant 1 : i32
    %c0_i32_336 = arith.constant 0 : i32
    %c0_i32_337 = arith.constant 0 : i32
    %358 = tpu.memref_slice %arg6[%c1_i32_335, %c0_i32_336, %c0_i32_337] : memref<2x72x512xf32, #tpu.memory_space<vmem>> -> memref<1x72x512xf32, #tpu.memory_space<vmem>>
    %359 = tpu.memref_squeeze %358 : memref<1x72x512xf32, #tpu.memory_space<vmem>> -> memref<72x512xf32, #tpu.memory_space<vmem>>
    %c64_338 = arith.constant 64 : index
    %c0_339 = arith.constant 0 : index
    %360 = vector.load %359[%c64_338, %c0_339] : memref<72x512xf32, #tpu.memory_space<vmem>>, vector<8x512xf32>
    tpu.vector_store %359[%c64_338, %c0_339], %357 {strides = array<i32>} : memref<72x512xf32, #tpu.memory_space<vmem>>, vector<8x512xf32>,
    %c1_340 = arith.constant 1 : index
    %c0_341 = arith.constant 0 : index
    %c0_342 = arith.constant 0 : index
    %361 = vector.load %arg4[%c1_340, %c0_341, %c0_342] : memref<3x8x72xf32, #tpu.memory_space<vmem>>, vector<1x8x72xf32>
    %362 = vector.shape_cast %361 : vector<1x8x72xf32> to vector<8x72xf32>
    %c1_343 = arith.constant 1 : index
    %c0_344 = arith.constant 0 : index
    %c0_345 = arith.constant 0 : index
    %363 = vector.load %arg6[%c1_343, %c0_344, %c0_345] : memref<2x72x512xf32, #tpu.memory_space<vmem>>, vector<1x72x512xf32>
    %364 = vector.shape_cast %363 : vector<1x72x512xf32> to vector<72x512xf32>
    %cst_346 = arith.constant dense<0.000000e+00> : vector<8x512xf32>
    %365 = tpu.matmul %362, %364, %cst_346 {dimension_numbers = #tpu.dot_dimension_numbers<[1], [0], [0], [1], [0, 0, 1, 1], [], []>} : vector<8x72xf32>, vector<72x512xf32>, vector<8x512xf32> -> vector<8x512xf32>
    %366 = arith.addf %298, %365 : vector<8x512xf32>
    %c457_i32_347 = arith.constant 457 : i32
    %367 = tpu.dynamic_rotate %230 by %c457_i32_347 dim 1 : vector<8x512xf32>, i32 -> vector<8x512xf32>
    %c18_348 = arith.constant 18 : index
    %c0_349 = arith.constant 0 : index
    %368 = vector.load %arg1[%c18_348, %c0_349] : memref<27x512xf32, #tpu.memory_space<vmem>>, vector<1x512xf32>
    %369 = vector.broadcast %368 : vector<1x512xf32> to vector<8x512xf32>
    %370 = arith.mulf %367, %369 : vector<8x512xf32>
    %c0_i32_350 = arith.constant 0 : i32
    %c0_i32_351 = arith.constant 0 : i32
    %c0_i32_352 = arith.constant 0 : i32
    %371 = tpu.memref_slice %arg6[%c0_i32_350, %c0_i32_351, %c0_i32_352] : memref<2x72x512xf32, #tpu.memory_space<vmem>> -> memref<1x72x512xf32, #tpu.memory_space<vmem>>
    %372 = tpu.memref_squeeze %371 : memref<1x72x512xf32, #tpu.memory_space<vmem>> -> memref<72x512xf32, #tpu.memory_space<vmem>>
    %c0_353 = arith.constant 0 : index
    %c0_354 = arith.constant 0 : index
    %373 = vector.load %372[%c0_353, %c0_354] : memref<72x512xf32, #tpu.memory_space<vmem>>, vector<8x512xf32>
    tpu.vector_store %372[%c0_353, %c0_354], %370 {strides = array<i32>} : memref<72x512xf32, #tpu.memory_space<vmem>>, vector<8x512xf32>,
    %c456_i32_355 = arith.constant 456 : i32
    %374 = tpu.dynamic_rotate %230 by %c456_i32_355 dim 1 : vector<8x512xf32>, i32 -> vector<8x512xf32>
    %c19_356 = arith.constant 19 : index
    %c0_357 = arith.constant 0 : index
    %375 = vector.load %arg1[%c19_356, %c0_357] : memref<27x512xf32, #tpu.memory_space<vmem>>, vector<1x512xf32>
    %376 = vector.broadcast %375 : vector<1x512xf32> to vector<8x512xf32>
    %377 = arith.mulf %374, %376 : vector<8x512xf32>
    %c0_i32_358 = arith.constant 0 : i32
    %c0_i32_359 = arith.constant 0 : i32
    %c0_i32_360 = arith.constant 0 : i32
    %378 = tpu.memref_slice %arg6[%c0_i32_358, %c0_i32_359, %c0_i32_360] : memref<2x72x512xf32, #tpu.memory_space<vmem>> -> memref<1x72x512xf32, #tpu.memory_space<vmem>>
    %379 = tpu.memref_squeeze %378 : memref<1x72x512xf32, #tpu.memory_space<vmem>> -> memref<72x512xf32, #tpu.memory_space<vmem>>
    %c8_361 = arith.constant 8 : index
    %c0_362 = arith.constant 0 : index
    %380 = vector.load %379[%c8_361, %c0_362] : memref<72x512xf32, #tpu.memory_space<vmem>>, vector<8x512xf32>
    tpu.vector_store %379[%c8_361, %c0_362], %377 {strides = array<i32>} : memref<72x512xf32, #tpu.memory_space<vmem>>, vector<8x512xf32>,
    %c455_i32_363 = arith.constant 455 : i32
    %381 = tpu.dynamic_rotate %230 by %c455_i32_363 dim 1 : vector<8x512xf32>, i32 -> vector<8x512xf32>
    %c20_364 = arith.constant 20 : index
    %c0_365 = arith.constant 0 : index
    %382 = vector.load %arg1[%c20_364, %c0_365] : memref<27x512xf32, #tpu.memory_space<vmem>>, vector<1x512xf32>
    %383 = vector.broadcast %382 : vector<1x512xf32> to vector<8x512xf32>
    %384 = arith.mulf %381, %383 : vector<8x512xf32>
    %c0_i32_366 = arith.constant 0 : i32
    %c0_i32_367 = arith.constant 0 : i32
    %c0_i32_368 = arith.constant 0 : i32
    %385 = tpu.memref_slice %arg6[%c0_i32_366, %c0_i32_367, %c0_i32_368] : memref<2x72x512xf32, #tpu.memory_space<vmem>> -> memref<1x72x512xf32, #tpu.memory_space<vmem>>
    %386 = tpu.memref_squeeze %385 : memref<1x72x512xf32, #tpu.memory_space<vmem>> -> memref<72x512xf32, #tpu.memory_space<vmem>>
    %c16_369 = arith.constant 16 : index
    %c0_370 = arith.constant 0 : index
    %387 = vector.load %386[%c16_369, %c0_370] : memref<72x512xf32, #tpu.memory_space<vmem>>, vector<8x512xf32>
    tpu.vector_store %386[%c16_369, %c0_370], %384 {strides = array<i32>} : memref<72x512xf32, #tpu.memory_space<vmem>>, vector<8x512xf32>,
    %c449_i32_371 = arith.constant 449 : i32
    %388 = tpu.dynamic_rotate %230 by %c449_i32_371 dim 1 : vector<8x512xf32>, i32 -> vector<8x512xf32>
    %c21_372 = arith.constant 21 : index
    %c0_373 = arith.constant 0 : index
    %389 = vector.load %arg1[%c21_372, %c0_373] : memref<27x512xf32, #tpu.memory_space<vmem>>, vector<1x512xf32>
    %390 = vector.broadcast %389 : vector<1x512xf32> to vector<8x512xf32>
    %391 = arith.mulf %388, %390 : vector<8x512xf32>
    %c0_i32_374 = arith.constant 0 : i32
    %c0_i32_375 = arith.constant 0 : i32
    %c0_i32_376 = arith.constant 0 : i32
    %392 = tpu.memref_slice %arg6[%c0_i32_374, %c0_i32_375, %c0_i32_376] : memref<2x72x512xf32, #tpu.memory_space<vmem>> -> memref<1x72x512xf32, #tpu.memory_space<vmem>>
    %393 = tpu.memref_squeeze %392 : memref<1x72x512xf32, #tpu.memory_space<vmem>> -> memref<72x512xf32, #tpu.memory_space<vmem>>
    %c24_377 = arith.constant 24 : index
    %c0_378 = arith.constant 0 : index
    %394 = vector.load %393[%c24_377, %c0_378] : memref<72x512xf32, #tpu.memory_space<vmem>>, vector<8x512xf32>
    tpu.vector_store %393[%c24_377, %c0_378], %391 {strides = array<i32>} : memref<72x512xf32, #tpu.memory_space<vmem>>, vector<8x512xf32>,
    %c448_i32_379 = arith.constant 448 : i32
    %395 = tpu.dynamic_rotate %230 by %c448_i32_379 dim 1 : vector<8x512xf32>, i32 -> vector<8x512xf32>
    %c22_380 = arith.constant 22 : index
    %c0_381 = arith.constant 0 : index
    %396 = vector.load %arg1[%c22_380, %c0_381] : memref<27x512xf32, #tpu.memory_space<vmem>>, vector<1x512xf32>
    %397 = vector.broadcast %396 : vector<1x512xf32> to vector<8x512xf32>
    %398 = arith.mulf %395, %397 : vector<8x512xf32>
    %c0_i32_382 = arith.constant 0 : i32
    %c0_i32_383 = arith.constant 0 : i32
    %c0_i32_384 = arith.constant 0 : i32
    %399 = tpu.memref_slice %arg6[%c0_i32_382, %c0_i32_383, %c0_i32_384] : memref<2x72x512xf32, #tpu.memory_space<vmem>> -> memref<1x72x512xf32, #tpu.memory_space<vmem>>
    %400 = tpu.memref_squeeze %399 : memref<1x72x512xf32, #tpu.memory_space<vmem>> -> memref<72x512xf32, #tpu.memory_space<vmem>>
    %c32_385 = arith.constant 32 : index
    %c0_386 = arith.constant 0 : index
    %401 = vector.load %400[%c32_385, %c0_386] : memref<72x512xf32, #tpu.memory_space<vmem>>, vector<8x512xf32>
    tpu.vector_store %400[%c32_385, %c0_386], %398 {strides = array<i32>} : memref<72x512xf32, #tpu.memory_space<vmem>>, vector<8x512xf32>,
    %c447_i32_387 = arith.constant 447 : i32
    %402 = tpu.dynamic_rotate %230 by %c447_i32_387 dim 1 : vector<8x512xf32>, i32 -> vector<8x512xf32>
    %c23_388 = arith.constant 23 : index
    %c0_389 = arith.constant 0 : index
    %403 = vector.load %arg1[%c23_388, %c0_389] : memref<27x512xf32, #tpu.memory_space<vmem>>, vector<1x512xf32>
    %404 = vector.broadcast %403 : vector<1x512xf32> to vector<8x512xf32>
    %405 = arith.mulf %402, %404 : vector<8x512xf32>
    %c0_i32_390 = arith.constant 0 : i32
    %c0_i32_391 = arith.constant 0 : i32
    %c0_i32_392 = arith.constant 0 : i32
    %406 = tpu.memref_slice %arg6[%c0_i32_390, %c0_i32_391, %c0_i32_392] : memref<2x72x512xf32, #tpu.memory_space<vmem>> -> memref<1x72x512xf32, #tpu.memory_space<vmem>>
    %407 = tpu.memref_squeeze %406 : memref<1x72x512xf32, #tpu.memory_space<vmem>> -> memref<72x512xf32, #tpu.memory_space<vmem>>
    %c40_393 = arith.constant 40 : index
    %c0_394 = arith.constant 0 : index
    %408 = vector.load %407[%c40_393, %c0_394] : memref<72x512xf32, #tpu.memory_space<vmem>>, vector<8x512xf32>
    tpu.vector_store %407[%c40_393, %c0_394], %405 {strides = array<i32>} : memref<72x512xf32, #tpu.memory_space<vmem>>, vector<8x512xf32>,
    %c441_i32_395 = arith.constant 441 : i32
    %409 = tpu.dynamic_rotate %230 by %c441_i32_395 dim 1 : vector<8x512xf32>, i32 -> vector<8x512xf32>
    %c24_396 = arith.constant 24 : index
    %c0_397 = arith.constant 0 : index
    %410 = vector.load %arg1[%c24_396, %c0_397] : memref<27x512xf32, #tpu.memory_space<vmem>>, vector<1x512xf32>
    %411 = vector.broadcast %410 : vector<1x512xf32> to vector<8x512xf32>
    %412 = arith.mulf %409, %411 : vector<8x512xf32>
    %c0_i32_398 = arith.constant 0 : i32
    %c0_i32_399 = arith.constant 0 : i32
    %c0_i32_400 = arith.constant 0 : i32
    %413 = tpu.memref_slice %arg6[%c0_i32_398, %c0_i32_399, %c0_i32_400] : memref<2x72x512xf32, #tpu.memory_space<vmem>> -> memref<1x72x512xf32, #tpu.memory_space<vmem>>
    %414 = tpu.memref_squeeze %413 : memref<1x72x512xf32, #tpu.memory_space<vmem>> -> memref<72x512xf32, #tpu.memory_space<vmem>>
    %c48_401 = arith.constant 48 : index
    %c0_402 = arith.constant 0 : index
    %415 = vector.load %414[%c48_401, %c0_402] : memref<72x512xf32, #tpu.memory_space<vmem>>, vector<8x512xf32>
    tpu.vector_store %414[%c48_401, %c0_402], %412 {strides = array<i32>} : memref<72x512xf32, #tpu.memory_space<vmem>>, vector<8x512xf32>,
    %c440_i32_403 = arith.constant 440 : i32
    %416 = tpu.dynamic_rotate %230 by %c440_i32_403 dim 1 : vector<8x512xf32>, i32 -> vector<8x512xf32>
    %c25_404 = arith.constant 25 : index
    %c0_405 = arith.constant 0 : index
    %417 = vector.load %arg1[%c25_404, %c0_405] : memref<27x512xf32, #tpu.memory_space<vmem>>, vector<1x512xf32>
    %418 = vector.broadcast %417 : vector<1x512xf32> to vector<8x512xf32>
    %419 = arith.mulf %416, %418 : vector<8x512xf32>
    %c0_i32_406 = arith.constant 0 : i32
    %c0_i32_407 = arith.constant 0 : i32
    %c0_i32_408 = arith.constant 0 : i32
    %420 = tpu.memref_slice %arg6[%c0_i32_406, %c0_i32_407, %c0_i32_408] : memref<2x72x512xf32, #tpu.memory_space<vmem>> -> memref<1x72x512xf32, #tpu.memory_space<vmem>>
    %421 = tpu.memref_squeeze %420 : memref<1x72x512xf32, #tpu.memory_space<vmem>> -> memref<72x512xf32, #tpu.memory_space<vmem>>
    %c56_409 = arith.constant 56 : index
    %c0_410 = arith.constant 0 : index
    %422 = vector.load %421[%c56_409, %c0_410] : memref<72x512xf32, #tpu.memory_space<vmem>>, vector<8x512xf32>
    tpu.vector_store %421[%c56_409, %c0_410], %419 {strides = array<i32>} : memref<72x512xf32, #tpu.memory_space<vmem>>, vector<8x512xf32>,
    %c439_i32_411 = arith.constant 439 : i32
    %423 = tpu.dynamic_rotate %230 by %c439_i32_411 dim 1 : vector<8x512xf32>, i32 -> vector<8x512xf32>
    %c26_412 = arith.constant 26 : index
    %c0_413 = arith.constant 0 : index
    %424 = vector.load %arg1[%c26_412, %c0_413] : memref<27x512xf32, #tpu.memory_space<vmem>>, vector<1x512xf32>
    %425 = vector.broadcast %424 : vector<1x512xf32> to vector<8x512xf32>
    %426 = arith.mulf %423, %425 : vector<8x512xf32>
    %c0_i32_414 = arith.constant 0 : i32
    %c0_i32_415 = arith.constant 0 : i32
    %c0_i32_416 = arith.constant 0 : i32
    %427 = tpu.memref_slice %arg6[%c0_i32_414, %c0_i32_415, %c0_i32_416] : memref<2x72x512xf32, #tpu.memory_space<vmem>> -> memref<1x72x512xf32, #tpu.memory_space<vmem>>
    %428 = tpu.memref_squeeze %427 : memref<1x72x512xf32, #tpu.memory_space<vmem>> -> memref<72x512xf32, #tpu.memory_space<vmem>>
    %c64_417 = arith.constant 64 : index
    %c0_418 = arith.constant 0 : index
    %429 = vector.load %428[%c64_417, %c0_418] : memref<72x512xf32, #tpu.memory_space<vmem>>, vector<8x512xf32>
    tpu.vector_store %428[%c64_417, %c0_418], %426 {strides = array<i32>} : memref<72x512xf32, #tpu.memory_space<vmem>>, vector<8x512xf32>,
    %c2_419 = arith.constant 2 : index
    %c0_420 = arith.constant 0 : index
    %c0_421 = arith.constant 0 : index
    %430 = vector.load %arg4[%c2_419, %c0_420, %c0_421] : memref<3x8x72xf32, #tpu.memory_space<vmem>>, vector<1x8x72xf32>
    %431 = vector.shape_cast %430 : vector<1x8x72xf32> to vector<8x72xf32>
    %c0_422 = arith.constant 0 : index
    %c0_423 = arith.constant 0 : index
    %c0_424 = arith.constant 0 : index
    %432 = vector.load %arg6[%c0_422, %c0_423, %c0_424] : memref<2x72x512xf32, #tpu.memory_space<vmem>>, vector<1x72x512xf32>
    %433 = vector.shape_cast %432 : vector<1x72x512xf32> to vector<72x512xf32>
    %cst_425 = arith.constant dense<0.000000e+00> : vector<8x512xf32>
    %434 = tpu.matmul %431, %433, %cst_425 {dimension_numbers = #tpu.dot_dimension_numbers<[1], [0], [0], [1], [0, 0, 1, 1], [], []>} : vector<8x72xf32>, vector<72x512xf32>, vector<8x512xf32> -> vector<8x512xf32>
    %435 = arith.addf %366, %434 : vector<8x512xf32>
    %cst_426 = arith.constant dense<0.000000e+00> : vector<8xf32>
    %436 = vector.multi_reduction <add>, %435, %cst_426 [1] : vector<8x512xf32> to vector<8xf32>
    %437 = vector.shape_cast %436 : vector<8xf32> to vector<8x1xf32>
    %438 = arith.mulf %435, %435 : vector<8x512xf32>
    %cst_427 = arith.constant dense<0.000000e+00> : vector<8xf32>
    %439 = vector.multi_reduction <add>, %438, %cst_427 [1] : vector<8x512xf32> to vector<8xf32>
    %440 = vector.shape_cast %439 : vector<8xf32> to vector<8x1xf32>
    %cst_428 = arith.constant 0.001953125 : f32
    %441 = vector.broadcast %cst_428 : f32 to vector<8x1xf32>
    %442 = arith.mulf %437, %441 : vector<8x1xf32>
    %cst_429 = arith.constant 0.001953125 : f32
    %443 = vector.broadcast %cst_429 : f32 to vector<8x1xf32>
    %444 = arith.mulf %440, %443 : vector<8x1xf32>
    %445 = arith.mulf %442, %442 : vector<8x1xf32>
    %446 = arith.subf %444, %445 : vector<8x1xf32>
    %cst_430 = arith.constant 0.000000e+00 : f32
    %447 = vector.broadcast %cst_430 : f32 to vector<8x1xf32>
    %448 = arith.maximumf %446, %447 : vector<8x1xf32>
    %449 = vector.broadcast %442 : vector<8x1xf32> to vector<8x512xf32>
    %450 = arith.subf %435, %449 : vector<8x512xf32>
    %cst_431 = arith.constant 9.99999974E-6 : f32
    %451 = vector.broadcast %cst_431 : f32 to vector<8x1xf32>
    %452 = arith.addf %448, %451 : vector<8x1xf32>
    %453 = math.rsqrt %452 : vector<8x1xf32>
    %454 = vector.broadcast %453 : vector<8x1xf32> to vector<8x512xf32>
    %455 = arith.mulf %450, %454 : vector<8x512xf32>
    %c0_432 = arith.constant 0 : index
    %c0_433 = arith.constant 0 : index
    %c0_434 = arith.constant 0 : index
    %456 = vector.load %arg2[%c0_432, %c0_433, %c0_434] : memref<1x8x512xf32, #tpu.memory_space<vmem>>, vector<1x8x512xf32>
    %457 = vector.shape_cast %456 : vector<1x8x512xf32> to vector<8x512xf32>
    %458 = arith.addf %457, %455 : vector<8x512xf32>
    %c0_435 = arith.constant 0 : index
    %c0_436 = arith.constant 0 : index
    %c0_437 = arith.constant 0 : index
    %459 = vector.load %arg5[%c0_435, %c0_436, %c0_437] : memref<1x8x512xf32, #tpu.memory_space<vmem>>, vector<1x8x512xf32>
    %460 = vector.shape_cast %459 : vector<1x8x512xf32> to vector<8x512xf32>
    %461 = vector.shape_cast %458 : vector<8x512xf32> to vector<1x8x512xf32>
    tpu.vector_store %arg5[%c0_435, %c0_436, %c0_437], %461 {strides = array<i32>} : memref<1x8x512xf32, #tpu.memory_space<vmem>>, vector<1x8x512xf32>,
    return
  }
  func.func @transform_0(%arg0: i32) -> (i32, i32) {
    %c0_i32 = arith.constant 0 : i32
    %c0_i32_0 = arith.constant 0 : i32
    %c0_i32_1 = arith.constant 0 : i32
    return %c0_i32, %c0_i32_0 : i32, i32
  }
  func.func @transform_1(%arg0: i32) -> (i32, i32, i32) {
    %c0_i32 = arith.constant 0 : i32
    %c0_i32_0 = arith.constant 0 : i32
    %c0_i32_1 = arith.constant 0 : i32
    return %arg0, %c0_i32, %c0_i32_0 : i32, i32, i32
  }
  func.func @transform_2(%arg0: i32) -> (i32, i32, i32) {
    %c0_i32 = arith.constant 0 : i32
    %c0_i32_0 = arith.constant 0 : i32
    %c0_i32_1 = arith.constant 0 : i32
    %c0_i32_2 = arith.constant 0 : i32
    return %c0_i32, %c0_i32_0, %c0_i32_1 : i32, i32, i32
  }
  func.func @transform_3(%arg0: i32) -> (i32, i32, i32) {
    %c0_i32 = arith.constant 0 : i32
    %c0_i32_0 = arith.constant 0 : i32
    %c0_i32_1 = arith.constant 0 : i32
    %c0_i32_2 = arith.constant 0 : i32
    return %c0_i32, %c0_i32_0, %c0_i32_1 : i32, i32, i32
  }
  func.func @transform_4(%arg0: i32) -> (i32, i32, i32) {
    %c0_i32 = arith.constant 0 : i32
    %c0_i32_0 = arith.constant 0 : i32
    %c0_i32_1 = arith.constant 0 : i32
    return %arg0, %c0_i32, %c0_i32_0 : i32, i32, i32
  }
}

</mosaic_0001>

<llo_original>
// kernel: resnet_block_forward.1
$region0: #{resnet_block_forward.1}
  #allocation0 [shape = 'u32[]', space=smem, size = 0x4, offset = 0x4, fixed_abs, tag = 'smem constant byte address 0x4 - core index']
  #allocation1 [shape = 'u32[144,128]{1,0:T(1,128)}', space=vmem, size = 0x12000, scoped, tag = 'internal scratch']
  #allocation2 [shape = 'f32[2,72,512]{2,1,0:T(8,128)}', space=vmem, size = 0x48000, scoped, tag = 'scratch operand']
  #allocation3 [shape = 'f32[8,512]{1,0:T(8,128)}', space=vmem, size = 0x4000, scoped, tag = 'scratch operand']
  %s0 = inlined_call_operand.vmem [shape: f32[27,512], index: 0, kind: input, shape index: {}]
  %s1 = inlined_call_operand.vmem [shape: f32[2,8,512], index: 1, kind: input, shape index: {}]
  %s2 = inlined_call_operand.vmem [shape: f32[3,8,72], index: 2, kind: input, shape index: {}]
  %s3 = inlined_call_operand.vmem [shape: f32[3,8,72], index: 3, kind: input, shape index: {}]
  %s4 = inlined_call_operand.vmem [shape: f32[2,8,512], index: 4, kind: output, shape index: {}]
  %s5 = sld [smem:[#allocation0]]
  $region49: #{resnet_block_forward.1} parent=0
    _
  %s7 = ssub.s32 1, %s5
  %s8 = scalar_select 0, %s7, %s5
  loop: start=0, step=1, limit=4
  $region2: #{resnet_block_forward.1} parent=0 // loop_pre_header
    _
  $region3: #{resnet_block_forward.1} parent=0 // loop_header
    %s10 = sphi 0, %s14
    %p11 = scmp.ge.s32.totalorder %s10, 4
    %s18 = sphi 0, %s18
    %s20 = sphi 0, %s18
    %s21 = sphi 0, %s20
    %s35 = sphi 0, %s21
    %s41 = sphi 0, %s43
    %s44 = sphi 0, %s41
    %s45 = sphi 0, %s44
    %s61 = sphi 0, %s45
    %s65 = sphi 0, %s65
    %s67 = sphi 0, %s65
    %s68 = sphi 0, %s67
    %s82 = sphi 0, %s68
    %s86 = sphi 0, %s86
    %s88 = sphi 0, %s86
    %s89 = sphi 0, %s88
    %s103 = sphi 0, %s89
    %s109 = sphi 0, %s111
    %s112 = sphi 0, %s109
    %s113 = sphi 0, %s112
    %s129 = sphi 0, %s113
  $region4: #{resnet_block_forward.1} parent=0 // loop_header_branch
    %13 = sbr.rel (%p11) target = $region8
  $region5: #{resnet_block_forward.1} parent=0 // loop_body
    %s15 = ssub.s32 %s10, 1
    %s16 = ssub.s32 %s10, 2
    %s17 = sadd.s32 %s10, 1
    %s19 = sadd.s32 %s18, 1
    %p22 = scmp.eq.s32.totalorder %s10, 1
    %p23 = scmp.ne.s32.totalorder %s18, %s20
    %p24 = scmp.eq.s32.totalorder %s10, 0
    %p25 = por %p23, %p24
    %p26 = scmp.ne.s32.totalorder %s18, %s20
    %p27 = scmp.eq.s32.totalorder %s15, 1
    %p28 = por %p26, %p27
    %p29 = scmp.ne.s32.totalorder %s20, %s21
    %p30 = scmp.eq.s32.totalorder %s15, 0
    %p31 = por %p29, %p30
    %p32 = scmp.ne.s32.totalorder %s20, %s21
    %p33 = scmp.eq.s32.totalorder %s16, 1
    %p34 = por %p32, %p33
    %p36 = scmp.ne.s32.totalorder %s21, %s35
    %p37 = scmp.eq.s32.totalorder %s16, 0
    %p38 = por %p36, %p37
    %s39 = ssub.s32 %s10, %s17
    %p40 = scmp.eq.s32.totalorder %s39, 0
    %s42 = sadd.s32 %s41, 1
    %s43 = scalar_select %p40, %s41, %s42
    %p46 = pneg %p40
    %p47 = scmp.eq.s32.totalorder %s10, 1
    %p48 = por %p46, %p47
    %p49 = scmp.ne.s32.totalorder %s41, %s44
    %p50 = scmp.eq.s32.totalorder %s10, 0
    %p51 = por %p49, %p50
    %p52 = scmp.ne.s32.totalorder %s41, %s44
    %p53 = scmp.eq.s32.totalorder %s15, 1
    %p54 = por %p52, %p53
    %p55 = scmp.ne.s32.totalorder %s44, %s45
    %p56 = scmp.eq.s32.totalorder %s15, 0
    %p57 = por %p55, %p56
    %p58 = scmp.ne.s32.totalorder %s44, %s45
    %p59 = scmp.eq.s32.totalorder %s16, 1
    %p60 = por %p58, %p59
    %p62 = scmp.ne.s32.totalorder %s45, %s61
    %p63 = scmp.eq.s32.totalorder %s16, 0
    %p64 = por %p62, %p63
    %s66 = sadd.s32 %s65, 1
    %p69 = scmp.eq.s32.totalorder %s10, 1
    %p70 = scmp.ne.s32.totalorder %s65, %s67
    %p71 = scmp.eq.s32.totalorder %s10, 0
    %p72 = por %p70, %p71
    %p73 = scmp.ne.s32.totalorder %s65, %s67
    %p74 = scmp.eq.s32.totalorder %s15, 1
    %p75 = por %p73, %p74
    %p76 = scmp.ne.s32.totalorder %s67, %s68
    %p77 = scmp.eq.s32.totalorder %s15, 0
    %p78 = por %p76, %p77
    %p79 = scmp.ne.s32.totalorder %s67, %s68
    %p80 = scmp.eq.s32.totalorder %s16, 1
    %p81 = por %p79, %p80
    %p83 = scmp.ne.s32.totalorder %s68, %s82
    %p84 = scmp.eq.s32.totalorder %s16, 0
    %p85 = por %p83, %p84
    %s87 = sadd.s32 %s86, 1
    %p90 = scmp.eq.s32.totalorder %s10, 1
    %p91 = scmp.ne.s32.totalorder %s86, %s88
    %p92 = scmp.eq.s32.totalorder %s10, 0
    %p93 = por %p91, %p92
    %p94 = scmp.ne.s32.totalorder %s86, %s88
    %p95 = scmp.eq.s32.totalorder %s15, 1
    %p96 = por %p94, %p95
    %p97 = scmp.ne.s32.totalorder %s88, %s89
    %p98 = scmp.eq.s32.totalorder %s15, 0
    %p99 = por %p97, %p98
    %p100 = scmp.ne.s32.totalorder %s88, %s89
    %p101 = scmp.eq.s32.totalorder %s16, 1
    %p102 = por %p100, %p101
    %p104 = scmp.ne.s32.totalorder %s89, %s103
    %p105 = scmp.eq.s32.totalorder %s16, 0
    %p106 = por %p104, %p105
    %s107 = ssub.s32 %s10, %s17
    %p108 = scmp.eq.s32.totalorder %s107, 0
    %s110 = sadd.s32 %s109, 1
    %s111 = scalar_select %p108, %s109, %s110
    %p114 = pneg %p108
    %p115 = scmp.eq.s32.totalorder %s10, 1
    %p116 = por %p114, %p115
    %p117 = scmp.ne.s32.totalorder %s109, %s112
    %p118 = scmp.eq.s32.totalorder %s10, 0
    %p119 = por %p117, %p118
    %p120 = scmp.ne.s32.totalorder %s109, %s112
    %p121 = scmp.eq.s32.totalorder %s15, 1
    %p122 = por %p120, %p121
    %p123 = scmp.ne.s32.totalorder %s112, %s113
    %p124 = scmp.eq.s32.totalorder %s15, 0
    %p125 = por %p123, %p124
    %p126 = scmp.ne.s32.totalorder %s112, %s113
    %p127 = scmp.eq.s32.totalorder %s16, 1
    %p128 = por %p126, %p127
    %p130 = scmp.ne.s32.totalorder %s113, %s129
    %p131 = scmp.eq.s32.totalorder %s16, 0
    %p132 = por %p130, %p131
    %p133 = scmp.le.s32.totalorder 1, %s10
    %p134 = scmp.lt.s32.totalorder %s10, 3
    %p135 = pnand %p133, %p134
    %p136 = pneg %p135
    // Predicated region
    $region9: #{resnet_block_forward.1} parent=5 // pred_check
      _
    $region10: #{resnet_block_forward.1} parent=5 // pred_check_branch
      %138 = sbr.rel (%p135) target = $region12
    $region11: #{resnet_block_forward.1} parent=5 // pred_region
      %s139 = ssub.s32 %s10, 1
      // Predicated region
      $region13: #{resnet_block_forward.1} parent=11 // pred_check
        %p140 = pneg %p31
      $region14: #{resnet_block_forward.1} parent=11 // pred_check_branch
        %142 = sbr.rel (%p140) target = $region16
      $region15: #{resnet_block_forward.1} parent=11 // pred_region
        _
      $region16: #{resnet_block_forward.1} parent=11 // pred_fallthru
        _
      // Predicated region
      $region17: #{resnet_block_forward.1} parent=11 // pred_check
        %p143 = pneg %p78
      $region18: #{resnet_block_forward.1} parent=11 // pred_check_branch
        %145 = sbr.rel (%p143) target = $region20
      $region19: #{resnet_block_forward.1} parent=11 // pred_region
        _
      $region20: #{resnet_block_forward.1} parent=11 // pred_fallthru
        _
      // Predicated region
      $region21: #{resnet_block_forward.1} parent=11 // pred_check
        %p146 = pneg %p99
      $region22: #{resnet_block_forward.1} parent=11 // pred_check_branch
        %148 = sbr.rel (%p146) target = $region24
      $region23: #{resnet_block_forward.1} parent=11 // pred_region
        _
      $region24: #{resnet_block_forward.1} parent=11 // pred_fallthru
        _
    $region12: #{resnet_block_forward.1} parent=5 // pred_fallthru
      _
    %p149 = scmp.lt.s32.totalorder %s10, 2
    // Predicated region
    $region25: #{resnet_block_forward.1} parent=5 // pred_check
      %p150 = pneg %p149
    $region26: #{resnet_block_forward.1} parent=5 // pred_check_branch
      %152 = sbr.rel (%p150) target = $region28
    $region27: #{resnet_block_forward.1} parent=5 // pred_region
      // Predicated region
      $region29: #{resnet_block_forward.1} parent=27 // pred_check
        %p153 = pneg %p51
      $region30: #{resnet_block_forward.1} parent=27 // pred_check_branch
        %155 = sbr.rel (%p153) target = $region32
      $region31: #{resnet_block_forward.1} parent=27 // pred_region
        %p156 = scmp.lt.s32.totalorder %s10, 1
        %s157 = scalar_select %p156, %s10, 1
        %s158 = smul.addr %s157, 4
        %s159 = smul.addr %s158, 8
        %s160 = scalar_lea.vmem %s1, %s159
      $region32: #{resnet_block_forward.1} parent=27 // pred_fallthru
        _
    $region28: #{resnet_block_forward.1} parent=5 // pred_fallthru
      _
    %p161 = scmp.le.s32.totalorder 1, %s10
    %p162 = scmp.lt.s32.totalorder %s10, 3
    %p163 = pnand %p161, %p162
    %p164 = pneg %p163
    // Predicated region
    $region33: #{resnet_block_forward.1} parent=5 // pred_check
      _
    $region34: #{resnet_block_forward.1} parent=5 // pred_check_branch
      %166 = sbr.rel (%p163) target = $region36
    $region35: #{resnet_block_forward.1} parent=5 // pred_region
      %s167 = ssub.s32 %s10, 1
      %p168 = pneg %p31
      %p169 = pneg %p28
      %p170 = scmp.lt.s32.totalorder %s15, 1
      %s171 = scalar_select %p170, %s15, 1
      %s172 = smul.addr %s171, 4
      %s173 = smul.addr %s172, 8
      %s174 = scalar_lea.vmem %s1, %s173
      %p175 = pneg %p57
      %p176 = pneg %p54
      %p177 = pneg %p78
      %p178 = pneg %p75
      %p179 = pneg %p99
      %p180 = pneg %p96
      %p181 = pneg %p125
      %p182 = pneg %p122
      %p183 = scmp.lt.s32.totalorder %s15, 1
      %s184 = scalar_select %p183, %s15, 1
      %s185 = smul.addr %s184, 4
      %s186 = smul.addr %s185, 8
      %s187 = scalar_lea.vmem %s4, %s186
      %p188 = scmp.lt.s32.totalorder %s15, 1
      %s189 = scalar_select %p188, %s15, 1
      %s190 = smul.addr %s189, 4
      %s191 = smul.addr %s190, 8
      %s192 = scalar_lea.vmem %s1, %s191
      %p193 = scmp.lt.s32.totalorder %s15, 1
      %s194 = scalar_select %p193, %s15, 1
      %s195 = smul.addr %s194, 4
      %s196 = smul.addr %s195, 8
      %s197 = scalar_lea.vmem %s4, %s196
      %v198 = vld [vmem:[%s192] sm:$0xff]
      %v199 = vld [vmem:[%s192 + $0x8] sm:$0xff]
      %v200 = vld [vmem:[%s192 + $0x10] sm:$0xff]
      %v201 = vld [vmem:[%s192 + $0x18] sm:$0xff]
      %202 = vrot.lane.b32.xlu0 %v198, 73
      %v203 = vpop.permute.xlu0 %202
      %204 = vrot.lane.b32.xlu0 %v199, 73
      %v205 = vpop.permute.xlu0 %204
      %206 = vrot.lane.b32.xlu0 %v200, 73
      %v207 = vpop.permute.xlu0 %206
      %208 = vrot.lane.b32.xlu0 %v201, 73
      %v209 = vpop.permute.xlu0 %208
      %v210 = vlaneseq
      %v211 = vand.u32 %v210, 127
      %vm212 = vcmp.lt.s32.totalorder %v211, 73
      %v213 = vsel %vm212, %v207, %v209
      %v214 = vsel %vm212, %v205, %v207
      %v215 = vsel %vm212, %v203, %v205
      %v216 = vsel %vm212, %v209, %v203
      %v217 = vld [vmem:[%s0] ss:$8 sm:$0xf]
      %v219 = vlaneseq
      %v220 = vshrl.u32 %v219, 7
      %v221 = vsub.s32 0, %v220
      %v222 = vrot.slane %v217, %v221
      %v223 = vlaneseq
      %v224 = vshrl.u32 %v223, 7
      %v225 = vsub.s32 1, %v224
      %v226 = vrot.slane %v217, %v225
      %v227 = vlaneseq
      %v228 = vshrl.u32 %v227, 7
      %v229 = vsub.s32 2, %v228
      %v230 = vrot.slane %v217, %v229
      %v231 = vlaneseq
      %v232 = vshrl.u32 %v231, 7
      %v233 = vsub.s32 3, %v232
      %v234 = vrot.slane %v217, %v233
      %v239 = vmul.f32 %v216, %v222
      %v240 = vmul.f32 %v215, %v226
      %v241 = vmul.f32 %v214, %v230
      %v242 = vmul.f32 %v213, %v234
      %243 = vst [vmem:[#allocation2] sm:$0xff] %v239
      %244 = vst [vmem:[#allocation2 + $0x8] sm:$0xff] %v240
      %245 = vst [vmem:[#allocation2 + $0x10] sm:$0xff] %v241
      %246 = vst [vmem:[#allocation2 + $0x18] sm:$0xff] %v242
      %247 = vrot.lane.b32.xlu0 %v198, 72
      %v248 = vpop.permute.xlu0 %247
      %249 = vrot.lane.b32.xlu0 %v199, 72
      %v250 = vpop.permute.xlu0 %249
      %251 = vrot.lane.b32.xlu0 %v200, 72
      %v252 = vpop.permute.xlu0 %251
      %253 = vrot.lane.b32.xlu0 %v201, 72
      %v254 = vpop.permute.xlu0 %253
      %vm255 = vcmp.lt.s32.totalorder %v211, 72
      %v256 = vsel %vm255, %v252, %v254
      %v257 = vsel %vm255, %v250, %v252
      %v258 = vsel %vm255, %v248, %v250
      %v259 = vsel %vm255, %v254, %v248
      %s260 = scalar_lea.vmem %s0, 1
      %v261 = vld [vmem:[%s260] ss:$8 sm:$0xf]
      %v263 = vlaneseq
      %v264 = vshrl.u32 %v263, 7
      %v265 = vsub.s32 0, %v264
      %v266 = vrot.slane %v261, %v265
      %v267 = vlaneseq
      %v268 = vshrl.u32 %v267, 7
      %v269 = vsub.s32 1, %v268
      %v270 = vrot.slane %v261, %v269
      %v271 = vlaneseq
      %v272 = vshrl.u32 %v271, 7
      %v273 = vsub.s32 2, %v272
      %v274 = vrot.slane %v261, %v273
      %v275 = vlaneseq
      %v276 = vshrl.u32 %v275, 7
      %v277 = vsub.s32 3, %v276
      %v278 = vrot.slane %v261, %v277
      %v283 = vmul.f32 %v259, %v266
      %v284 = vmul.f32 %v258, %v270
      %v285 = vmul.f32 %v257, %v274
      %v286 = vmul.f32 %v256, %v278
      %287 = vst [vmem:[#allocation2 + $0x20] sm:$0xff] %v283
      %288 = vst [vmem:[#allocation2 + $0x28] sm:$0xff] %v284
      %289 = vst [vmem:[#allocation2 + $0x30] sm:$0xff] %v285
      %290 = vst [vmem:[#allocation2 + $0x38] sm:$0xff] %v286
      %291 = vrot.lane.b32.xlu0 %v198, 71
      %v292 = vpop.permute.xlu0 %291
      %293 = vrot.lane.b32.xlu0 %v199, 71
      %v294 = vpop.permute.xlu0 %293
      %295 = vrot.lane.b32.xlu0 %v200, 71
      %v296 = vpop.permute.xlu0 %295
      %297 = vrot.lane.b32.xlu0 %v201, 71
      %v298 = vpop.permute.xlu0 %297
      %vm299 = vcmp.lt.s32.totalorder %v211, 71
      %v300 = vsel %vm299, %v296, %v298
      %v301 = vsel %vm299, %v294, %v296
      %v302 = vsel %vm299, %v292, %v294
      %v303 = vsel %vm299, %v298, %v292
      %s304 = scalar_lea.vmem %s0, 2
      %v305 = vld [vmem:[%s304] ss:$8 sm:$0xf]
      %v307 = vlaneseq
      %v308 = vshrl.u32 %v307, 7
      %v309 = vsub.s32 0, %v308
      %v310 = vrot.slane %v305, %v309
      %v311 = vlaneseq
      %v312 = vshrl.u32 %v311, 7
      %v313 = vsub.s32 1, %v312
      %v314 = vrot.slane %v305, %v313
      %v315 = vlaneseq
      %v316 = vshrl.u32 %v315, 7
      %v317 = vsub.s32 2, %v316
      %v318 = vrot.slane %v305, %v317
      %v319 = vlaneseq
      %v320 = vshrl.u32 %v319, 7
      %v321 = vsub.s32 3, %v320
      %v322 = vrot.slane %v305, %v321
      %v327 = vmul.f32 %v303, %v310
      %v328 = vmul.f32 %v302, %v314
      %v329 = vmul.f32 %v301, %v318
      %v330 = vmul.f32 %v300, %v322
      %331 = vst [vmem:[#allocation2 + $0x40] sm:$0xff] %v327
      %332 = vst [vmem:[#allocation2 + $0x48] sm:$0xff] %v328
      %333 = vst [vmem:[#allocation2 + $0x50] sm:$0xff] %v329
      %334 = vst [vmem:[#allocation2 + $0x58] sm:$0xff] %v330
      %335 = vrot.lane.b32.xlu0 %v198, 65
      %v336 = vpop.permute.xlu0 %335
      %337 = vrot.lane.b32.xlu0 %v199, 65
      %v338 = vpop.permute.xlu0 %337
      %339 = vrot.lane.b32.xlu0 %v200, 65
      %v340 = vpop.permute.xlu0 %339
      %341 = vrot.lane.b32.xlu0 %v201, 65
      %v342 = vpop.permute.xlu0 %341
      %vm343 = vcmp.lt.s32.totalorder %v211, 65
      %v344 = vsel %vm343, %v340, %v342
      %v345 = vsel %vm343, %v338, %v340
      %v346 = vsel %vm343, %v336, %v338
      %v347 = vsel %vm343, %v342, %v336
      %s348 = scalar_lea.vmem %s0, 3
      %v349 = vld [vmem:[%s348] ss:$8 sm:$0xf]
      %v351 = vlaneseq
      %v352 = vshrl.u32 %v351, 7
      %v353 = vsub.s32 0, %v352
      %v354 = vrot.slane %v349, %v353
      %v355 = vlaneseq
      %v356 = vshrl.u32 %v355, 7
      %v357 = vsub.s32 1, %v356
      %v358 = vrot.slane %v349, %v357
      %v359 = vlaneseq
      %v360 = vshrl.u32 %v359, 7
      %v361 = vsub.s32 2, %v360
      %v362 = vrot.slane %v349, %v361
      %v363 = vlaneseq
      %v364 = vshrl.u32 %v363, 7
      %v365 = vsub.s32 3, %v364
      %v366 = vrot.slane %v349, %v365
      %v371 = vmul.f32 %v347, %v354
      %v372 = vmul.f32 %v346, %v358
      %v373 = vmul.f32 %v345, %v362
      %v374 = vmul.f32 %v344, %v366
      %375 = vst [vmem:[#allocation2 + $0x60] sm:$0xff] %v371
      %376 = vst [vmem:[#allocation2 + $0x68] sm:$0xff] %v372
      %377 = vst [vmem:[#allocation2 + $0x70] sm:$0xff] %v373
      %378 = vst [vmem:[#allocation2 + $0x78] sm:$0xff] %v374
      %379 = vrot.lane.b32.xlu0 %v198, 64
      %v380 = vpop.permute.xlu0 %379
      %381 = vrot.lane.b32.xlu0 %v199, 64
      %v382 = vpop.permute.xlu0 %381
      %383 = vrot.lane.b32.xlu0 %v200, 64
      %v384 = vpop.permute.xlu0 %383
      %385 = vrot.lane.b32.xlu0 %v201, 64
      %v386 = vpop.permute.xlu0 %385
      %vm387 = vcmp.lt.s32.totalorder %v211, 64
      %v388 = vsel %vm387, %v384, %v386
      %v389 = vsel %vm387, %v382, %v384
      %v390 = vsel %vm387, %v380, %v382
      %v391 = vsel %vm387, %v386, %v380
      %s392 = scalar_lea.vmem %s0, 4
      %v393 = vld [vmem:[%s392] ss:$8 sm:$0xf]
      %v395 = vlaneseq
      %v396 = vshrl.u32 %v395, 7
      %v397 = vsub.s32 0, %v396
      %v398 = vrot.slane %v393, %v397
      %v399 = vlaneseq
      %v400 = vshrl.u32 %v399, 7
      %v401 = vsub.s32 1, %v400
      %v402 = vrot.slane %v393, %v401
      %v403 = vlaneseq
      %v404 = vshrl.u32 %v403, 7
      %v405 = vsub.s32 2, %v404
      %v406 = vrot.slane %v393, %v405
      %v407 = vlaneseq
      %v408 = vshrl.u32 %v407, 7
      %v409 = vsub.s32 3, %v408
      %v410 = vrot.slane %v393, %v409
      %v415 = vmul.f32 %v391, %v398
      %v416 = vmul.f32 %v390, %v402
      %v417 = vmul.f32 %v389, %v406
      %v418 = vmul.f32 %v388, %v410
      %419 = vst [vmem:[#allocation2 + $0x80] sm:$0xff] %v415
      %420 = vst [vmem:[#allocation2 + $0x88] sm:$0xff] %v416
      %421 = vst [vmem:[#allocation2 + $0x90] sm:$0xff] %v417
      %422 = vst [vmem:[#allocation2 + $0x98] sm:$0xff] %v418
      %423 = vrot.lane.b32.xlu0 %v198, 63
      %v424 = vpop.permute.xlu0 %423
      %425 = vrot.lane.b32.xlu0 %v199, 63
      %v426 = vpop.permute.xlu0 %425
      %427 = vrot.lane.b32.xlu0 %v200, 63
      %v428 = vpop.permute.xlu0 %427
      %429 = vrot.lane.b32.xlu0 %v201, 63
      %v430 = vpop.permute.xlu0 %429
      %vm431 = vcmp.lt.s32.totalorder %v211, 63
      %v432 = vsel %vm431, %v428, %v430
      %v433 = vsel %vm431, %v426, %v428
      %v434 = vsel %vm431, %v424, %v426
      %v435 = vsel %vm431, %v430, %v424
      %s436 = scalar_lea.vmem %s0, 5
      %v437 = vld [vmem:[%s436] ss:$8 sm:$0xf]
      %v439 = vlaneseq
      %v440 = vshrl.u32 %v439, 7
      %v441 = vsub.s32 0, %v440
      %v442 = vrot.slane %v437, %v441
      %v443 = vlaneseq
      %v444 = vshrl.u32 %v443, 7
      %v445 = vsub.s32 1, %v444
      %v446 = vrot.slane %v437, %v445
      %v447 = vlaneseq
      %v448 = vshrl.u32 %v447, 7
      %v449 = vsub.s32 2, %v448
      %v450 = vrot.slane %v437, %v449
      %v451 = vlaneseq
      %v452 = vshrl.u32 %v451, 7
      %v453 = vsub.s32 3, %v452
      %v454 = vrot.slane %v437, %v453
      %v459 = vmul.f32 %v435, %v442
      %v460 = vmul.f32 %v434, %v446
      %v461 = vmul.f32 %v433, %v450
      %v462 = vmul.f32 %v432, %v454
      %463 = vst [vmem:[#allocation2 + $0xa0] sm:$0xff] %v459
      %464 = vst [vmem:[#allocation2 + $0xa8] sm:$0xff] %v460
      %465 = vst [vmem:[#allocation2 + $0xb0] sm:$0xff] %v461
      %466 = vst [vmem:[#allocation2 + $0xb8] sm:$0xff] %v462
      %467 = vrot.lane.b32.xlu0 %v198, 57
      %v468 = vpop.permute.xlu0 %467
      %469 = vrot.lane.b32.xlu0 %v199, 57
      %v470 = vpop.permute.xlu0 %469
      %471 = vrot.lane.b32.xlu0 %v200, 57
      %v472 = vpop.permute.xlu0 %471
      %473 = vrot.lane.b32.xlu0 %v201, 57
      %v474 = vpop.permute.xlu0 %473
      %vm475 = vcmp.lt.s32.totalorder %v211, 57
      %v476 = vsel %vm475, %v472, %v474
      %v477 = vsel %vm475, %v470, %v472
      %v478 = vsel %vm475, %v468, %v470
      %v479 = vsel %vm475, %v474, %v468
      %s480 = scalar_lea.vmem %s0, 6
      %v481 = vld [vmem:[%s480] ss:$8 sm:$0xf]
      %v483 = vlaneseq
      %v484 = vshrl.u32 %v483, 7
      %v485 = vsub.s32 0, %v484
      %v486 = vrot.slane %v481, %v485
      %v487 = vlaneseq
      %v488 = vshrl.u32 %v487, 7
      %v489 = vsub.s32 1, %v488
      %v490 = vrot.slane %v481, %v489
      %v491 = vlaneseq
      %v492 = vshrl.u32 %v491, 7
      %v493 = vsub.s32 2, %v492
      %v494 = vrot.slane %v481, %v493
      %v495 = vlaneseq
      %v496 = vshrl.u32 %v495, 7
      %v497 = vsub.s32 3, %v496
      %v498 = vrot.slane %v481, %v497
      %v503 = vmul.f32 %v479, %v486
      %v504 = vmul.f32 %v478, %v490
      %v505 = vmul.f32 %v477, %v494
      %v506 = vmul.f32 %v476, %v498
      %507 = vst [vmem:[#allocation2 + $0xc0] sm:$0xff] %v503
      %508 = vst [vmem:[#allocation2 + $0xc8] sm:$0xff] %v504
      %509 = vst [vmem:[#allocation2 + $0xd0] sm:$0xff] %v505
      %510 = vst [vmem:[#allocation2 + $0xd8] sm:$0xff] %v506
      %511 = vrot.lane.b32.xlu0 %v198, 56
      %v512 = vpop.permute.xlu0 %511
      %513 = vrot.lane.b32.xlu0 %v199, 56
      %v514 = vpop.permute.xlu0 %513
      %515 = vrot.lane.b32.xlu0 %v200, 56
      %v516 = vpop.permute.xlu0 %515
      %517 = vrot.lane.b32.xlu0 %v201, 56
      %v518 = vpop.permute.xlu0 %517
      %vm519 = vcmp.lt.s32.totalorder %v211, 56
      %v520 = vsel %vm519, %v516, %v518
      %v521 = vsel %vm519, %v514, %v516
      %v522 = vsel %vm519, %v512, %v514
      %v523 = vsel %vm519, %v518, %v512
      %s524 = scalar_lea.vmem %s0, 7
      %v525 = vld [vmem:[%s524] ss:$8 sm:$0xf]
      %v527 = vlaneseq
      %v528 = vshrl.u32 %v527, 7
      %v529 = vsub.s32 0, %v528
      %v530 = vrot.slane %v525, %v529
      %v531 = vlaneseq
      %v532 = vshrl.u32 %v531, 7
      %v533 = vsub.s32 1, %v532
      %v534 = vrot.slane %v525, %v533
      %v535 = vlaneseq
      %v536 = vshrl.u32 %v535, 7
      %v537 = vsub.s32 2, %v536
      %v538 = vrot.slane %v525, %v537
      %v539 = vlaneseq
      %v540 = vshrl.u32 %v539, 7
      %v541 = vsub.s32 3, %v540
      %v542 = vrot.slane %v525, %v541
      %v547 = vmul.f32 %v523, %v530
      %v548 = vmul.f32 %v522, %v534
      %v549 = vmul.f32 %v521, %v538
      %v550 = vmul.f32 %v520, %v542
      %551 = vst [vmem:[#allocation2 + $0xe0] sm:$0xff] %v547
      %552 = vst [vmem:[#allocation2 + $0xe8] sm:$0xff] %v548
      %553 = vst [vmem:[#allocation2 + $0xf0] sm:$0xff] %v549
      %554 = vst [vmem:[#allocation2 + $0xf8] sm:$0xff] %v550
      %555 = vrot.lane.b32.xlu0 %v198, 55
      %v556 = vpop.permute.xlu0 %555
      %557 = vrot.lane.b32.xlu0 %v199, 55
      %v558 = vpop.permute.xlu0 %557
      %559 = vrot.lane.b32.xlu0 %v200, 55
      %v560 = vpop.permute.xlu0 %559
      %561 = vrot.lane.b32.xlu0 %v201, 55
      %v562 = vpop.permute.xlu0 %561
      %vm563 = vcmp.lt.s32.totalorder %v211, 55
      %v564 = vsel %vm563, %v560, %v562
      %v565 = vsel %vm563, %v558, %v560
      %v566 = vsel %vm563, %v556, %v558
      %v567 = vsel %vm563, %v562, %v556
      %s568 = scalar_lea.vmem %s0, 32
      %v569 = vld [vmem:[%s568] ss:$8 sm:$0xf]
      %v571 = vlaneseq
      %v572 = vshrl.u32 %v571, 7
      %v573 = vsub.s32 0, %v572
      %v574 = vrot.slane %v569, %v573
      %v575 = vlaneseq
      %v576 = vshrl.u32 %v575, 7
      %v577 = vsub.s32 1, %v576
      %v578 = vrot.slane %v569, %v577
      %v579 = vlaneseq
      %v580 = vshrl.u32 %v579, 7
      %v581 = vsub.s32 2, %v580
      %v582 = vrot.slane %v569, %v581
      %v583 = vlaneseq
      %v584 = vshrl.u32 %v583, 7
      %v585 = vsub.s32 3, %v584
      %v586 = vrot.slane %v569, %v585
      %v591 = vmul.f32 %v567, %v574
      %v592 = vmul.f32 %v566, %v578
      %v593 = vmul.f32 %v565, %v582
      %v594 = vmul.f32 %v564, %v586
      %595 = vst [vmem:[#allocation2 + $0x100] sm:$0xff] %v591
      %596 = vst [vmem:[#allocation2 + $0x108] sm:$0xff] %v592
      %597 = vst [vmem:[#allocation2 + $0x110] sm:$0xff] %v593
      %598 = vst [vmem:[#allocation2 + $0x118] sm:$0xff] %v594
      %v599 = vld [vmem:[%s2] sm:$0xff]
      %v600 = vld [vmem:[#allocation2] sm:$0xff]
      %v601 = vld [vmem:[#allocation2 + $0x8] sm:$0xff]
      %v602 = vld [vmem:[#allocation2 + $0x10] sm:$0xff]
      %v603 = vld [vmem:[#allocation2 + $0x18] sm:$0xff]
      %v604 = vld [vmem:[#allocation2 + $0x20] sm:$0xff]
      %v605 = vld [vmem:[#allocation2 + $0x28] sm:$0xff]
      %v606 = vld [vmem:[#allocation2 + $0x30] sm:$0xff]
      %v607 = vld [vmem:[#allocation2 + $0x38] sm:$0xff]
      %v608 = vld [vmem:[#allocation2 + $0x40] sm:$0xff]
      %v609 = vld [vmem:[#allocation2 + $0x48] sm:$0xff]
      %v610 = vld [vmem:[#allocation2 + $0x50] sm:$0xff]
      %v611 = vld [vmem:[#allocation2 + $0x58] sm:$0xff]
      %v612 = vld [vmem:[#allocation2 + $0x60] sm:$0xff]
      %v613 = vld [vmem:[#allocation2 + $0x68] sm:$0xff]
      %v614 = vld [vmem:[#allocation2 + $0x70] sm:$0xff]
      %v615 = vld [vmem:[#allocation2 + $0x78] sm:$0xff]
      %v616 = vld [vmem:[#allocation2 + $0x80] sm:$0xff]
      %v617 = vld [vmem:[#allocation2 + $0x88] sm:$0xff]
      %v618 = vld [vmem:[#allocation2 + $0x90] sm:$0xff]
      %v619 = vld [vmem:[#allocation2 + $0x98] sm:$0xff]
      %v620 = vld [vmem:[#allocation2 + $0xa0] sm:$0xff]
      %v621 = vld [vmem:[#allocation2 + $0xa8] sm:$0xff]
      %v622 = vld [vmem:[#allocation2 + $0xb0] sm:$0xff]
      %v623 = vld [vmem:[#allocation2 + $0xb8] sm:$0xff]
      %v624 = vld [vmem:[#allocation2 + $0xc0] sm:$0xff]
      %v625 = vld [vmem:[#allocation2 + $0xc8] sm:$0xff]
      %v626 = vld [vmem:[#allocation2 + $0xd0] sm:$0xff]
      %v627 = vld [vmem:[#allocation2 + $0xd8] sm:$0xff]
      %v628 = vld [vmem:[#allocation2 + $0xe0] sm:$0xff]
      %v629 = vld [vmem:[#allocation2 + $0xe8] sm:$0xff]
      %v630 = vld [vmem:[#allocation2 + $0xf0] sm:$0xff]
      %v631 = vld [vmem:[#allocation2 + $0xf8] sm:$0xff]
      %v632 = vld [vmem:[#allocation2 + $0x100] sm:$0xff]
      %v633 = vld [vmem:[#allocation2 + $0x108] sm:$0xff]
      %v634 = vld [vmem:[#allocation2 + $0x110] sm:$0xff]
      %v635 = vld [vmem:[#allocation2 + $0x118] sm:$0xff]
      %636 = vrot.lane.b32.xlu0 %v198, 9
      %v637 = vpop.permute.xlu0 %636
      %638 = vrot.lane.b32.xlu0 %v199, 9
      %v639 = vpop.permute.xlu0 %638
      %640 = vrot.lane.b32.xlu0 %v200, 9
      %v641 = vpop.permute.xlu0 %640
      %642 = vrot.lane.b32.xlu0 %v201, 9
      %v643 = vpop.permute.xlu0 %642
      %vm644 = vcmp.lt.s32.totalorder %v211, 9
      %v645 = vsel %vm644, %v641, %v643
      %v646 = vsel %vm644, %v639, %v641
      %v647 = vsel %vm644, %v637, %v639
      %v648 = vsel %vm644, %v643, %v637
      %s649 = scalar_lea.vmem %s0, 33
      %v650 = vld [vmem:[%s649] ss:$8 sm:$0xf]
      %v652 = vlaneseq
      %v653 = vshrl.u32 %v652, 7
      %v654 = vsub.s32 0, %v653
      %v655 = vrot.slane %v650, %v654
      %v656 = vlaneseq
      %v657 = vshrl.u32 %v656, 7
      %v658 = vsub.s32 1, %v657
      %v659 = vrot.slane %v650, %v658
      %v660 = vlaneseq
      %v661 = vshrl.u32 %v660, 7
      %v662 = vsub.s32 2, %v661
      %v663 = vrot.slane %v650, %v662
      %v664 = vlaneseq
      %v665 = vshrl.u32 %v664, 7
      %v666 = vsub.s32 3, %v665
      %v667 = vrot.slane %v650, %v666
      %v672 = vmul.f32 %v648, %v655
      %v673 = vmul.f32 %v647, %v659
      %v674 = vmul.f32 %v646, %v663
      %v675 = vmul.f32 %v645, %v667
      %s676 = scalar_lea.vmem [#allocation2], 288
      %677 = vst [vmem:[%s676] sm:$0xff] %v672
      %678 = vst [vmem:[%s676 + $0x8] sm:$0xff] %v673
      %679 = vst [vmem:[%s676 + $0x10] sm:$0xff] %v674
      %680 = vst [vmem:[%s676 + $0x18] sm:$0xff] %v675
      %681 = vrot.lane.b32.xlu0 %v198, 8
      %v682 = vpop.permute.xlu0 %681
      %683 = vrot.lane.b32.xlu0 %v199, 8
      %v684 = vpop.permute.xlu0 %683
      %685 = vrot.lane.b32.xlu0 %v200, 8
      %v686 = vpop.permute.xlu0 %685
      %687 = vrot.lane.b32.xlu0 %v201, 8
      %v688 = vpop.permute.xlu0 %687
      %vm689 = vcmp.lt.s32.totalorder %v211, 8
      %v690 = vsel %vm689, %v686, %v688
      %v691 = vsel %vm689, %v684, %v686
      %v692 = vsel %vm689, %v682, %v684
      %v693 = vsel %vm689, %v688, %v682
      %s694 = scalar_lea.vmem %s0, 34
      %v695 = vld [vmem:[%s694] ss:$8 sm:$0xf]
      %v697 = vlaneseq
      %v698 = vshrl.u32 %v697, 7
      %v699 = vsub.s32 0, %v698
      %v700 = vrot.slane %v695, %v699
      %v701 = vlaneseq
      %v702 = vshrl.u32 %v701, 7
      %v703 = vsub.s32 1, %v702
      %v704 = vrot.slane %v695, %v703
      %v705 = vlaneseq
      %v706 = vshrl.u32 %v705, 7
      %v707 = vsub.s32 2, %v706
      %v708 = vrot.slane %v695, %v707
      %v709 = vlaneseq
      %v710 = vshrl.u32 %v709, 7
      %v711 = vsub.s32 3, %v710
      %v712 = vrot.slane %v695, %v711
      %v717 = vmul.f32 %v693, %v700
      %v718 = vmul.f32 %v692, %v704
      %v719 = vmul.f32 %v691, %v708
      %v720 = vmul.f32 %v690, %v712
      %721 = vst [vmem:[%s676 + $0x20] sm:$0xff] %v717
      %722 = vst [vmem:[%s676 + $0x28] sm:$0xff] %v718
      %723 = vst [vmem:[%s676 + $0x30] sm:$0xff] %v719
      %724 = vst [vmem:[%s676 + $0x38] sm:$0xff] %v720
      %725 = vrot.lane.b32.xlu0 %v198, 7
      %v726 = vpop.permute.xlu0 %725
      %727 = vrot.lane.b32.xlu0 %v199, 7
      %v728 = vpop.permute.xlu0 %727
      %729 = vrot.lane.b32.xlu0 %v200, 7
      %v730 = vpop.permute.xlu0 %729
      %731 = vrot.lane.b32.xlu0 %v201, 7
      %v732 = vpop.permute.xlu0 %731
      %vm733 = vcmp.lt.s32.totalorder %v211, 7
      %v734 = vsel %vm733, %v730, %v732
      %v735 = vsel %vm733, %v728, %v730
      %v736 = vsel %vm733, %v726, %v728
      %v737 = vsel %vm733, %v732, %v726
      %s738 = scalar_lea.vmem %s0, 35
      %v739 = vld [vmem:[%s738] ss:$8 sm:$0xf]
      %v741 = vlaneseq
      %v742 = vshrl.u32 %v741, 7
      %v743 = vsub.s32 0, %v742
      %v744 = vrot.slane %v739, %v743
      %v745 = vlaneseq
      %v746 = vshrl.u32 %v745, 7
      %v747 = vsub.s32 1, %v746
      %v748 = vrot.slane %v739, %v747
      %v749 = vlaneseq
      %v750 = vshrl.u32 %v749, 7
      %v751 = vsub.s32 2, %v750
      %v752 = vrot.slane %v739, %v751
      %v753 = vlaneseq
      %v754 = vshrl.u32 %v753, 7
      %v755 = vsub.s32 3, %v754
      %v756 = vrot.slane %v739, %v755
      %v761 = vmul.f32 %v737, %v744
      %v762 = vmul.f32 %v736, %v748
      %v763 = vmul.f32 %v735, %v752
      %v764 = vmul.f32 %v734, %v756
      %765 = vst [vmem:[%s676 + $0x40] sm:$0xff] %v761
      %766 = vst [vmem:[%s676 + $0x48] sm:$0xff] %v762
      %767 = vst [vmem:[%s676 + $0x50] sm:$0xff] %v763
      %768 = vst [vmem:[%s676 + $0x58] sm:$0xff] %v764
      %769 = vrot.lane.b32.xlu0 %v198, 1
      %v770 = vpop.permute.xlu0 %769
      %771 = vrot.lane.b32.xlu0 %v199, 1
      %v772 = vpop.permute.xlu0 %771
      %773 = vrot.lane.b32.xlu0 %v200, 1
      %v774 = vpop.permute.xlu0 %773
      %775 = vrot.lane.b32.xlu0 %v201, 1
      %v776 = vpop.permute.xlu0 %775
      %vm777 = vcmp.lt.s32.totalorder %v211, 1
      %v778 = vsel %vm777, %v774, %v776
      %v779 = vsel %vm777, %v772, %v774
      %v780 = vsel %vm777, %v770, %v772
      %v781 = vsel %vm777, %v776, %v770
      %s782 = scalar_lea.vmem %s0, 36
      %v783 = vld [vmem:[%s782] ss:$8 sm:$0xf]
      %v785 = vlaneseq
      %v786 = vshrl.u32 %v785, 7
      %v787 = vsub.s32 0, %v786
      %v788 = vrot.slane %v783, %v787
      %v789 = vlaneseq
      %v790 = vshrl.u32 %v789, 7
      %v791 = vsub.s32 1, %v790
      %v792 = vrot.slane %v783, %v791
      %v793 = vlaneseq
      %v794 = vshrl.u32 %v793, 7
      %v795 = vsub.s32 2, %v794
      %v796 = vrot.slane %v783, %v795
      %v797 = vlaneseq
      %v798 = vshrl.u32 %v797, 7
      %v799 = vsub.s32 3, %v798
      %v800 = vrot.slane %v783, %v799
      %v805 = vmul.f32 %v781, %v788
      %v806 = vmul.f32 %v780, %v792
      %v807 = vmul.f32 %v779, %v796
      %v808 = vmul.f32 %v778, %v800
      %809 = vst [vmem:[%s676 + $0x60] sm:$0xff] %v805
      %810 = vst [vmem:[%s676 + $0x68] sm:$0xff] %v806
      %811 = vst [vmem:[%s676 + $0x70] sm:$0xff] %v807
      %812 = vst [vmem:[%s676 + $0x78] sm:$0xff] %v808
      %s813 = scalar_lea.vmem %s0, 37
      %v814 = vld [vmem:[%s813] ss:$8 sm:$0xf]
      %v816 = vlaneseq
      %v817 = vshrl.u32 %v816, 7
      %v818 = vsub.s32 0, %v817
      %v819 = vrot.slane %v814, %v818
      %v820 = vlaneseq
      %v821 = vshrl.u32 %v820, 7
      %v822 = vsub.s32 1, %v821
      %v823 = vrot.slane %v814, %v822
      %v824 = vlaneseq
      %v825 = vshrl.u32 %v824, 7
      %v826 = vsub.s32 2, %v825
      %v827 = vrot.slane %v814, %v826
      %v828 = vlaneseq
      %v829 = vshrl.u32 %v828, 7
      %v830 = vsub.s32 3, %v829
      %v831 = vrot.slane %v814, %v830
      %v836 = vmul.f32 %v198, %v819
      %v837 = vmul.f32 %v199, %v823
      %v838 = vmul.f32 %v200, %v827
      %v839 = vmul.f32 %v201, %v831
      %840 = vst [vmem:[%s676 + $0x80] sm:$0xff] %v836
      %841 = vst [vmem:[%s676 + $0x88] sm:$0xff] %v837
      %842 = vst [vmem:[%s676 + $0x90] sm:$0xff] %v838
      %843 = vst [vmem:[%s676 + $0x98] sm:$0xff] %v839
      %844 = vrot.lane.b32.xlu0 %v198, 127
      %v845 = vpop.permute.xlu0 %844
      %846 = vrot.lane.b32.xlu0 %v199, 127
      %v847 = vpop.permute.xlu0 %846
      %848 = vrot.lane.b32.xlu0 %v200, 127
      %v849 = vpop.permute.xlu0 %848
      %850 = vrot.lane.b32.xlu0 %v201, 127
      %v851 = vpop.permute.xlu0 %850
      %vm852 = vcmp.lt.s32.totalorder %v211, 127
      %v853 = vsel %vm852, %v849, %v851
      %v854 = vsel %vm852, %v847, %v849
      %v855 = vsel %vm852, %v845, %v847
      %v856 = vsel %vm852, %v851, %v845
      %s857 = scalar_lea.vmem %s0, 38
      %v858 = vld [vmem:[%s857] ss:$8 sm:$0xf]
      %v860 = vlaneseq
      %v861 = vshrl.u32 %v860, 7
      %v862 = vsub.s32 0, %v861
      %v863 = vrot.slane %v858, %v862
      %v864 = vlaneseq
      %v865 = vshrl.u32 %v864, 7
      %v866 = vsub.s32 1, %v865
      %v867 = vrot.slane %v858, %v866
      %v868 = vlaneseq
      %v869 = vshrl.u32 %v868, 7
      %v870 = vsub.s32 2, %v869
      %v871 = vrot.slane %v858, %v870
      %v872 = vlaneseq
      %v873 = vshrl.u32 %v872, 7
      %v874 = vsub.s32 3, %v873
      %v875 = vrot.slane %v858, %v874
      %v880 = vmul.f32 %v855, %v863
      %v881 = vmul.f32 %v854, %v867
      %v882 = vmul.f32 %v853, %v871
      %v883 = vmul.f32 %v856, %v875
      %884 = vst [vmem:[%s676 + $0xa0] sm:$0xff] %v880
      %885 = vst [vmem:[%s676 + $0xa8] sm:$0xff] %v881
      %886 = vst [vmem:[%s676 + $0xb0] sm:$0xff] %v882
      %887 = vst [vmem:[%s676 + $0xb8] sm:$0xff] %v883
      %888 = vrot.lane.b32.xlu0 %v198, 121
      %v889 = vpop.permute.xlu0 %888
      %890 = vrot.lane.b32.xlu0 %v199, 121
      %v891 = vpop.permute.xlu0 %890
      %892 = vrot.lane.b32.xlu0 %v200, 121
      %v893 = vpop.permute.xlu0 %892
      %894 = vrot.lane.b32.xlu0 %v201, 121
      %v895 = vpop.permute.xlu0 %894
      %vm896 = vcmp.lt.s32.totalorder %v211, 121
      %v897 = vsel %vm896, %v893, %v895
      %v898 = vsel %vm896, %v891, %v893
      %v899 = vsel %vm896, %v889, %v891
      %v900 = vsel %vm896, %v895, %v889
      %s901 = scalar_lea.vmem %s0, 39
      %v902 = vld [vmem:[%s901] ss:$8 sm:$0xf]
      %v904 = vlaneseq
      %v905 = vshrl.u32 %v904, 7
      %v906 = vsub.s32 0, %v905
      %v907 = vrot.slane %v902, %v906
      %v908 = vlaneseq
      %v909 = vshrl.u32 %v908, 7
      %v910 = vsub.s32 1, %v909
      %v911 = vrot.slane %v902, %v910
      %v912 = vlaneseq
      %v913 = vshrl.u32 %v912, 7
      %v914 = vsub.s32 2, %v913
      %v915 = vrot.slane %v902, %v914
      %v916 = vlaneseq
      %v917 = vshrl.u32 %v916, 7
      %v918 = vsub.s32 3, %v917
      %v919 = vrot.slane %v902, %v918
      %v924 = vmul.f32 %v899, %v907
      %v925 = vmul.f32 %v898, %v911
      %v926 = vmul.f32 %v897, %v915
      %v927 = vmul.f32 %v900, %v919
      %928 = vst [vmem:[%s676 + $0xc0] sm:$0xff] %v924
      %929 = vst [vmem:[%s676 + $0xc8] sm:$0xff] %v925
      %930 = vst [vmem:[%s676 + $0xd0] sm:$0xff] %v926
      %931 = vst [vmem:[%s676 + $0xd8] sm:$0xff] %v927
      %932 = vrot.lane.b32.xlu0 %v198, 120
      %v933 = vpop.permute.xlu0 %932
      %934 = vrot.lane.b32.xlu0 %v199, 120
      %v935 = vpop.permute.xlu0 %934
      %936 = vrot.lane.b32.xlu0 %v200, 120
      %v937 = vpop.permute.xlu0 %936
      %938 = vrot.lane.b32.xlu0 %v201, 120
      %v939 = vpop.permute.xlu0 %938
      %vm940 = vcmp.lt.s32.totalorder %v211, 120
      %v941 = vsel %vm940, %v937, %v939
      %v942 = vsel %vm940, %v935, %v937
      %v943 = vsel %vm940, %v933, %v935
      %v944 = vsel %vm940, %v939, %v933
      %s945 = scalar_lea.vmem %s0, 64
      %v946 = vld [vmem:[%s945] ss:$8 sm:$0xf]
      %v948 = vlaneseq
      %v949 = vshrl.u32 %v948, 7
      %v950 = vsub.s32 0, %v949
      %v951 = vrot.slane %v946, %v950
      %v952 = vlaneseq
      %v953 = vshrl.u32 %v952, 7
      %v954 = vsub.s32 1, %v953
      %v955 = vrot.slane %v946, %v954
      %v956 = vlaneseq
      %v957 = vshrl.u32 %v956, 7
      %v958 = vsub.s32 2, %v957
      %v959 = vrot.slane %v946, %v958
      %v960 = vlaneseq
      %v961 = vshrl.u32 %v960, 7
      %v962 = vsub.s32 3, %v961
      %v963 = vrot.slane %v946, %v962
      %v968 = vmul.f32 %v943, %v951
      %v969 = vmul.f32 %v942, %v955
      %v970 = vmul.f32 %v941, %v959
      %v971 = vmul.f32 %v944, %v963
      %972 = vst [vmem:[%s676 + $0xe0] sm:$0xff] %v968
      %973 = vst [vmem:[%s676 + $0xe8] sm:$0xff] %v969
      %974 = vst [vmem:[%s676 + $0xf0] sm:$0xff] %v970
      %975 = vst [vmem:[%s676 + $0xf8] sm:$0xff] %v971
      %976 = vrot.lane.b32.xlu0 %v198, 119
      %v977 = vpop.permute.xlu0 %976
      %978 = vrot.lane.b32.xlu0 %v199, 119
      %v979 = vpop.permute.xlu0 %978
      %980 = vrot.lane.b32.xlu0 %v200, 119
      %v981 = vpop.permute.xlu0 %980
      %982 = vrot.lane.b32.xlu0 %v201, 119
      %v983 = vpop.permute.xlu0 %982
      %vm984 = vcmp.lt.s32.totalorder %v211, 119
      %v985 = vsel %vm984, %v981, %v983
      %v986 = vsel %vm984, %v979, %v981
      %v987 = vsel %vm984, %v977, %v979
      %v988 = vsel %vm984, %v983, %v977
      %s989 = scalar_lea.vmem %s0, 65
      %v990 = vld [vmem:[%s989] ss:$8 sm:$0xf]
      %v992 = vlaneseq
      %v993 = vshrl.u32 %v992, 7
      %v994 = vsub.s32 0, %v993
      %v995 = vrot.slane %v990, %v994
      %v996 = vlaneseq
      %v997 = vshrl.u32 %v996, 7
      %v998 = vsub.s32 1, %v997
      %v999 = vrot.slane %v990, %v998
      %v1000 = vlaneseq
      %v1001 = vshrl.u32 %v1000, 7
      %v1002 = vsub.s32 2, %v1001
      %v1003 = vrot.slane %v990, %v1002
      %v1004 = vlaneseq
      %v1005 = vshrl.u32 %v1004, 7
      %v1006 = vsub.s32 3, %v1005
      %v1007 = vrot.slane %v990, %v1006
      %v1012 = vmul.f32 %v987, %v995
      %v1013 = vmul.f32 %v986, %v999
      %v1014 = vmul.f32 %v985, %v1003
      %v1015 = vmul.f32 %v988, %v1007
      %1016 = vst [vmem:[%s676 + $0x100] sm:$0xff] %v1012
      %1017 = vst [vmem:[%s676 + $0x108] sm:$0xff] %v1013
      %1018 = vst [vmem:[%s676 + $0x110] sm:$0xff] %v1014
      %1019 = vst [vmem:[%s676 + $0x118] sm:$0xff] %v1015
      %s1020 = scalar_lea.vmem %s2, 8
      %v1021 = vld [vmem:[%s1020] sm:$0xff]
      %v1022 = vld [vmem:[%s676] sm:$0xff]
      %v1023 = vld [vmem:[%s676 + $0x8] sm:$0xff]
      %v1024 = vld [vmem:[%s676 + $0x10] sm:$0xff]
      %v1025 = vld [vmem:[%s676 + $0x18] sm:$0xff]
      %v1026 = vld [vmem:[%s676 + $0x20] sm:$0xff]
      %v1027 = vld [vmem:[%s676 + $0x28] sm:$0xff]
      %v1028 = vld [vmem:[%s676 + $0x30] sm:$0xff]
      %v1029 = vld [vmem:[%s676 + $0x38] sm:$0xff]
      %v1030 = vld [vmem:[%s676 + $0x40] sm:$0xff]
      %v1031 = vld [vmem:[%s676 + $0x48] sm:$0xff]
      %v1032 = vld [vmem:[%s676 + $0x50] sm:$0xff]
      %v1033 = vld [vmem:[%s676 + $0x58] sm:$0xff]
      %v1034 = vld [vmem:[%s676 + $0x60] sm:$0xff]
      %v1035 = vld [vmem:[%s676 + $0x68] sm:$0xff]
      %v1036 = vld [vmem:[%s676 + $0x70] sm:$0xff]
      %v1037 = vld [vmem:[%s676 + $0x78] sm:$0xff]
      %v1038 = vld [vmem:[%s676 + $0x80] sm:$0xff]
      %v1039 = vld [vmem:[%s676 + $0x88] sm:$0xff]
      %v1040 = vld [vmem:[%s676 + $0x90] sm:$0xff]
      %v1041 = vld [vmem:[%s676 + $0x98] sm:$0xff]
      %v1042 = vld [vmem:[%s676 + $0xa0] sm:$0xff]
      %v1043 = vld [vmem:[%s676 + $0xa8] sm:$0xff]
      %v1044 = vld [vmem:[%s676 + $0xb0] sm:$0xff]
      %v1045 = vld [vmem:[%s676 + $0xb8] sm:$0xff]
      %v1046 = vld [vmem:[%s676 + $0xc0] sm:$0xff]
      %v1047 = vld [vmem:[%s676 + $0xc8] sm:$0xff]
      %v1048 = vld [vmem:[%s676 + $0xd0] sm:$0xff]
      %v1049 = vld [vmem:[%s676 + $0xd8] sm:$0xff]
      %v1050 = vld [vmem:[%s676 + $0xe0] sm:$0xff]
      %v1051 = vld [vmem:[%s676 + $0xe8] sm:$0xff]
      %v1052 = vld [vmem:[%s676 + $0xf0] sm:$0xff]
      %v1053 = vld [vmem:[%s676 + $0xf8] sm:$0xff]
      %v1054 = vld [vmem:[%s676 + $0x100] sm:$0xff]
      %v1055 = vld [vmem:[%s676 + $0x108] sm:$0xff]
      %v1056 = vld [vmem:[%s676 + $0x110] sm:$0xff]
      %v1057 = vld [vmem:[%s676 + $0x118] sm:$0xff]
      %vm1058 = vcmask 588800
      %v1060 = vsel %vm1058, %v1021, 0
      %1062 = vmatprep.subr.mxu0 %v1023
      %1063 = vmatpush1.msra.mxu0 %v1022
      %1064 = vmatprep.subr.mxu0 %v1027
      %1065 = vmatpush1.msra.mxu0 %v1026
      %1066 = vmatprep.subr.mxu0 %v1031
      %1067 = vmatpush1.msra.mxu0 %v1030
      %1068 = vmatprep.subr.mxu0 %v1035
      %1069 = vmatpush1.msra.mxu0 %v1034
      %1070 = vmatprep.subr.mxu0 %v1039
      %1071 = vmatpush1.msra.mxu0 %v1038
      %1072 = vmatprep.subr.mxu0 %v1043
      %1073 = vmatpush1.msra.mxu0 %v1042
      %1074 = vmatprep.subr.mxu0 %v1047
      %1075 = vmatpush1.msra.mxu0 %v1046
      %1076 = vmatprep.subr.mxu0 %v1051
      %1077 = vmatpush1.msra.mxu0 %v1050
      %1078 = vmatprep.subr.mxu0 %v1055
      %1079 = vmatpush1.msra.mxu0 %v1054
      %1080 = vmatprep.subr.mxu0 0.0
      %1081 = vmatpush1.msra.mxu0 0.0
      %1082 = vmatprep.subr.mxu0 0.0
      %1083 = vmatpush1.msra.mxu0 0.0
      %1084 = vmatprep.subr.mxu0 0.0
      %1085 = vmatpush1.msra.mxu0 0.0
      %1086 = vmatprep.subr.mxu0 0.0
      %1087 = vmatpush1.msra.mxu0 0.0
      %1088 = vmatprep.subr.mxu0 0.0
      %1089 = vmatpush1.msra.mxu0 0.0
      %1090 = vmatprep.subr.mxu0 0.0
      %1091 = vmatpush1.msra.mxu0 0.0
      %1092 = vmatprep.subr.mxu0 0.0
      %1093 = vmatpush1.msra.mxu0 0.0
      %1094 = vmatprep.subr.mxu0 0.0
      %1095 = vmatpush1.msra.mxu0 0.0
      %1096 = vmatprep.subr.mxu0 0.0
      %1097 = vmatpush1.msra.mxu0 0.0
      %1098 = vmatprep.subr.mxu0 0.0
      %1099 = vmatpush1.msra.mxu0 0.0
      %1100 = vmatprep.subr.mxu0 0.0
      %1101 = vmatpush1.msra.mxu0 0.0
      %1102 = vmatprep.subr.mxu0 0.0
      %1103 = vmatpush1.msra.mxu0 0.0
      %1104 = vmatprep.subr.mxu0 0.0
      %1105 = vmatpush1.msra.mxu0 0.0
      %1106 = vmatprep.subr.mxu0 0.0
      %1107 = vmatpush1.msra.mxu0 0.0
      %1108 = vmatprep.subr.mxu0 0.0
      %1109 = vmatpush1.msra.mxu0 0.0
      %1110 = vmatprep.subr.mxu0 0.0
      %1111 = vmatpush1.msra.mxu0 0.0
      %1112 = vmatprep.subr.mxu0 0.0
      %1113 = vmatpush1.msra.mxu0 0.0
      %1114 = vmatprep.subr.mxu0 0.0
      %1115 = vmatpush1.msra.mxu0 0.0
      %1116 = vmatprep.subr.mxu0 0.0
      %1117 = vmatpush1.msra.mxu0 0.0
      %1118 = vmatprep.subr.mxu0 0.0
      %1119 = vmatpush1.msra.mxu0 0.0
      %1120 = vmatprep.subr.mxu0 0.0
      %1121 = vmatpush1.msra.mxu0 0.0
      %1122 = vmatprep.subr.mxu0 0.0
      %1123 = vmatpush1.msra.mxu0 0.0
      %1124 = vmatprep.subr.mxu0 0.0
      %1125 = vmatpush1.msra.mxu0 0.0
      %1126 = vmatprep.mubr.f32.mxu0 0.0
      %1127 = vmatmul.mubr.f32.gmra.mrb[0].mxu0 %v1060
      %v1128 = vpop.f32.mrb[0].mxu0
      %v1129 = vadd.f32 0.0, %v1128
      %v1130 = vpop.f32.mrb[0].mxu0
      %v1131 = vadd.f32 0.0, %v1130
      %1132 = vdwg.mxu0
      %1133 = vmatprep.subr.mxu0 %v1025
      %1134 = vmatpush1.msra.mxu0 %v1024
      %1135 = vmatprep.subr.mxu0 %v1029
      %1136 = vmatpush1.msra.mxu0 %v1028
      %1137 = vmatprep.subr.mxu0 %v1033
      %1138 = vmatpush1.msra.mxu0 %v1032
      %1139 = vmatprep.subr.mxu0 %v1037
      %1140 = vmatpush1.msra.mxu0 %v1036
      %1141 = vmatprep.subr.mxu0 %v1041
      %1142 = vmatpush1.msra.mxu0 %v1040
      %1143 = vmatprep.subr.mxu0 %v1045
      %1144 = vmatpush1.msra.mxu0 %v1044
      %1145 = vmatprep.subr.mxu0 %v1049
      %1146 = vmatpush1.msra.mxu0 %v1048
      %1147 = vmatprep.subr.mxu0 %v1053
      %1148 = vmatpush1.msra.mxu0 %v1052
      %1149 = vmatprep.subr.mxu0 %v1057
      %1150 = vmatpush1.msra.mxu0 %v1056
      %1151 = vmatprep.subr.mxu0 0.0
      %1152 = vmatpush1.msra.mxu0 0.0
      %1153 = vmatprep.subr.mxu0 0.0
      %1154 = vmatpush1.msra.mxu0 0.0
      %1155 = vmatprep.subr.mxu0 0.0
      %1156 = vmatpush1.msra.mxu0 0.0
      %1157 = vmatprep.subr.mxu0 0.0
      %1158 = vmatpush1.msra.mxu0 0.0
      %1159 = vmatprep.subr.mxu0 0.0
      %1160 = vmatpush1.msra.mxu0 0.0
      %1161 = vmatprep.subr.mxu0 0.0
      %1162 = vmatpush1.msra.mxu0 0.0
      %1163 = vmatprep.subr.mxu0 0.0
      %1164 = vmatpush1.msra.mxu0 0.0
      %1165 = vmatprep.subr.mxu0 0.0
      %1166 = vmatpush1.msra.mxu0 0.0
      %1167 = vmatprep.subr.mxu0 0.0
      %1168 = vmatpush1.msra.mxu0 0.0
      %1169 = vmatprep.subr.mxu0 0.0
      %1170 = vmatpush1.msra.mxu0 0.0
      %1171 = vmatprep.subr.mxu0 0.0
      %1172 = vmatpush1.msra.mxu0 0.0
      %1173 = vmatprep.subr.mxu0 0.0
      %1174 = vmatpush1.msra.mxu0 0.0
      %1175 = vmatprep.subr.mxu0 0.0
      %1176 = vmatpush1.msra.mxu0 0.0
      %1177 = vmatprep.subr.mxu0 0.0
      %1178 = vmatpush1.msra.mxu0 0.0
      %1179 = vmatprep.subr.mxu0 0.0
      %1180 = vmatpush1.msra.mxu0 0.0
      %1181 = vmatprep.subr.mxu0 0.0
      %1182 = vmatpush1.msra.mxu0 0.0
      %1183 = vmatprep.subr.mxu0 0.0
      %1184 = vmatpush1.msra.mxu0 0.0
      %1185 = vmatprep.subr.mxu0 0.0
      %1186 = vmatpush1.msra.mxu0 0.0
      %1187 = vmatprep.subr.mxu0 0.0
      %1188 = vmatpush1.msra.mxu0 0.0
      %1189 = vmatprep.subr.mxu0 0.0
      %1190 = vmatpush1.msra.mxu0 0.0
      %1191 = vmatprep.subr.mxu0 0.0
      %1192 = vmatpush1.msra.mxu0 0.0
      %1193 = vmatprep.subr.mxu0 0.0
      %1194 = vmatpush1.msra.mxu0 0.0
      %1195 = vmatprep.subr.mxu0 0.0
      %1196 = vmatpush1.msra.mxu0 0.0
      %1197 = vmatprep.mubr.f32.mxu0 0.0
      %1198 = vmatmul.mubr.f32.gmra.mrb[0].mxu0 %v1060
      %v1199 = vpop.f32.mrb[0].mxu0
      %v1200 = vadd.f32 0.0, %v1199
      %v1201 = vpop.f32.mrb[0].mxu0
      %v1202 = vadd.f32 0.0, %v1201
      %1203 = vdwg.mxu0
      %v1205 = vsel %vm1058, %v599, 0
      %1207 = vmatprep.subr.mxu0 %v601
      %1208 = vmatpush1.msra.mxu0 %v600
      %1209 = vmatprep.subr.mxu0 %v605
      %1210 = vmatpush1.msra.mxu0 %v604
      %1211 = vmatprep.subr.mxu0 %v609
      %1212 = vmatpush1.msra.mxu0 %v608
      %1213 = vmatprep.subr.mxu0 %v613
      %1214 = vmatpush1.msra.mxu0 %v612
      %1215 = vmatprep.subr.mxu0 %v617
      %1216 = vmatpush1.msra.mxu0 %v616
      %1217 = vmatprep.subr.mxu0 %v621
      %1218 = vmatpush1.msra.mxu0 %v620
      %1219 = vmatprep.subr.mxu0 %v625
      %1220 = vmatpush1.msra.mxu0 %v624
      %1221 = vmatprep.subr.mxu0 %v629
      %1222 = vmatpush1.msra.mxu0 %v628
      %1223 = vmatprep.subr.mxu0 %v633
      %1224 = vmatpush1.msra.mxu0 %v632
      %1225 = vmatprep.subr.mxu0 0.0
      %1226 = vmatpush1.msra.mxu0 0.0
      %1227 = vmatprep.subr.mxu0 0.0
      %1228 = vmatpush1.msra.mxu0 0.0
      %1229 = vmatprep.subr.mxu0 0.0
      %1230 = vmatpush1.msra.mxu0 0.0
      %1231 = vmatprep.subr.mxu0 0.0
      %1232 = vmatpush1.msra.mxu0 0.0
      %1233 = vmatprep.subr.mxu0 0.0
      %1234 = vmatpush1.msra.mxu0 0.0
      %1235 = vmatprep.subr.mxu0 0.0
      %1236 = vmatpush1.msra.mxu0 0.0
      %1237 = vmatprep.subr.mxu0 0.0
      %1238 = vmatpush1.msra.mxu0 0.0
      %1239 = vmatprep.subr.mxu0 0.0
      %1240 = vmatpush1.msra.mxu0 0.0
      %1241 = vmatprep.subr.mxu0 0.0
      %1242 = vmatpush1.msra.mxu0 0.0
      %1243 = vmatprep.subr.mxu0 0.0
      %1244 = vmatpush1.msra.mxu0 0.0
      %1245 = vmatprep.subr.mxu0 0.0
      %1246 = vmatpush1.msra.mxu0 0.0
      %1247 = vmatprep.subr.mxu0 0.0
      %1248 = vmatpush1.msra.mxu0 0.0
      %1249 = vmatprep.subr.mxu0 0.0
      %1250 = vmatpush1.msra.mxu0 0.0
      %1251 = vmatprep.subr.mxu0 0.0
      %1252 = vmatpush1.msra.mxu0 0.0
      %1253 = vmatprep.subr.mxu0 0.0
      %1254 = vmatpush1.msra.mxu0 0.0
      %1255 = vmatprep.subr.mxu0 0.0
      %1256 = vmatpush1.msra.mxu0 0.0
      %1257 = vmatprep.subr.mxu0 0.0
      %1258 = vmatpush1.msra.mxu0 0.0
      %1259 = vmatprep.subr.mxu0 0.0
      %1260 = vmatpush1.msra.mxu0 0.0
      %1261 = vmatprep.subr.mxu0 0.0
      %1262 = vmatpush1.msra.mxu0 0.0
      %1263 = vmatprep.subr.mxu0 0.0
      %1264 = vmatpush1.msra.mxu0 0.0
      %1265 = vmatprep.subr.mxu0 0.0
      %1266 = vmatpush1.msra.mxu0 0.0
      %1267 = vmatprep.subr.mxu0 0.0
      %1268 = vmatpush1.msra.mxu0 0.0
      %1269 = vmatprep.subr.mxu0 0.0
      %1270 = vmatpush1.msra.mxu0 0.0
      %1271 = vmatprep.mubr.f32.mxu0 0.0
      %1272 = vmatmul.mubr.f32.gmra.mrb[0].mxu0 %v1205
      %v1273 = vpop.f32.mrb[0].mxu0
      %v1274 = vadd.f32 %v1129, %v1273
      %v1275 = vpop.f32.mrb[0].mxu0
      %v1276 = vadd.f32 %v1131, %v1275
      %1277 = vdwg.mxu0
      %1278 = vmatprep.subr.mxu0 %v603
      %1279 = vmatpush1.msra.mxu0 %v602
      %1280 = vmatprep.subr.mxu0 %v607
      %1281 = vmatpush1.msra.mxu0 %v606
      %1282 = vmatprep.subr.mxu0 %v611
      %1283 = vmatpush1.msra.mxu0 %v610
      %1284 = vmatprep.subr.mxu0 %v615
      %1285 = vmatpush1.msra.mxu0 %v614
      %1286 = vmatprep.subr.mxu0 %v619
      %1287 = vmatpush1.msra.mxu0 %v618
      %1288 = vmatprep.subr.mxu0 %v623
      %1289 = vmatpush1.msra.mxu0 %v622
      %1290 = vmatprep.subr.mxu0 %v627
      %1291 = vmatpush1.msra.mxu0 %v626
      %1292 = vmatprep.subr.mxu0 %v631
      %1293 = vmatpush1.msra.mxu0 %v630
      %1294 = vmatprep.subr.mxu0 %v635
      %1295 = vmatpush1.msra.mxu0 %v634
      %1296 = vmatprep.subr.mxu0 0.0
      %1297 = vmatpush1.msra.mxu0 0.0
      %1298 = vmatprep.subr.mxu0 0.0
      %1299 = vmatpush1.msra.mxu0 0.0
      %1300 = vmatprep.subr.mxu0 0.0
      %1301 = vmatpush1.msra.mxu0 0.0
      %1302 = vmatprep.subr.mxu0 0.0
      %1303 = vmatpush1.msra.mxu0 0.0
      %1304 = vmatprep.subr.mxu0 0.0
      %1305 = vmatpush1.msra.mxu0 0.0
      %1306 = vmatprep.subr.mxu0 0.0
      %1307 = vmatpush1.msra.mxu0 0.0
      %1308 = vmatprep.subr.mxu0 0.0
      %1309 = vmatpush1.msra.mxu0 0.0
      %1310 = vmatprep.subr.mxu0 0.0
      %1311 = vmatpush1.msra.mxu0 0.0
      %1312 = vmatprep.subr.mxu0 0.0
      %1313 = vmatpush1.msra.mxu0 0.0
      %1314 = vmatprep.subr.mxu0 0.0
      %1315 = vmatpush1.msra.mxu0 0.0
      %1316 = vmatprep.subr.mxu0 0.0
      %1317 = vmatpush1.msra.mxu0 0.0
      %1318 = vmatprep.subr.mxu0 0.0
      %1319 = vmatpush1.msra.mxu0 0.0
      %1320 = vmatprep.subr.mxu0 0.0
      %1321 = vmatpush1.msra.mxu0 0.0
      %1322 = vmatprep.subr.mxu0 0.0
      %1323 = vmatpush1.msra.mxu0 0.0
      %1324 = vmatprep.subr.mxu0 0.0
      %1325 = vmatpush1.msra.mxu0 0.0
      %1326 = vmatprep.subr.mxu0 0.0
      %1327 = vmatpush1.msra.mxu0 0.0
      %1328 = vmatprep.subr.mxu0 0.0
      %1329 = vmatpush1.msra.mxu0 0.0
      %1330 = vmatprep.subr.mxu0 0.0
      %1331 = vmatpush1.msra.mxu0 0.0
      %1332 = vmatprep.subr.mxu0 0.0
      %1333 = vmatpush1.msra.mxu0 0.0
      %1334 = vmatprep.subr.mxu0 0.0
      %1335 = vmatpush1.msra.mxu0 0.0
      %1336 = vmatprep.subr.mxu0 0.0
      %1337 = vmatpush1.msra.mxu0 0.0
      %1338 = vmatprep.subr.mxu0 0.0
      %1339 = vmatpush1.msra.mxu0 0.0
      %1340 = vmatprep.subr.mxu0 0.0
      %1341 = vmatpush1.msra.mxu0 0.0
      %1342 = vmatprep.mubr.f32.mxu0 0.0
      %1343 = vmatmul.mubr.f32.gmra.mrb[0].mxu0 %v1205
      %v1344 = vpop.f32.mrb[0].mxu0
      %v1345 = vadd.f32 %v1200, %v1344
      %v1346 = vpop.f32.mrb[0].mxu0
      %v1347 = vadd.f32 %v1202, %v1346
      %1348 = vdwg.mxu0
      %s1349 = scalar_lea.vmem %s0, 66
      %v1350 = vld [vmem:[%s1349] ss:$8 sm:$0xf]
      %v1352 = vlaneseq
      %v1353 = vshrl.u32 %v1352, 7
      %v1354 = vsub.s32 0, %v1353
      %v1355 = vrot.slane %v1350, %v1354
      %v1356 = vlaneseq
      %v1357 = vshrl.u32 %v1356, 7
      %v1358 = vsub.s32 1, %v1357
      %v1359 = vrot.slane %v1350, %v1358
      %v1360 = vlaneseq
      %v1361 = vshrl.u32 %v1360, 7
      %v1362 = vsub.s32 2, %v1361
      %v1363 = vrot.slane %v1350, %v1362
      %v1364 = vlaneseq
      %v1365 = vshrl.u32 %v1364, 7
      %v1366 = vsub.s32 3, %v1365
      %v1367 = vrot.slane %v1350, %v1366
      %v1372 = vmul.f32 %v215, %v1355
      %v1373 = vmul.f32 %v214, %v1359
      %v1374 = vmul.f32 %v213, %v1363
      %v1375 = vmul.f32 %v216, %v1367
      %1376 = vst [vmem:[#allocation2] sm:$0xff] %v1372
      %1377 = vst [vmem:[#allocation2 + $0x8] sm:$0xff] %v1373
      %1378 = vst [vmem:[#allocation2 + $0x10] sm:$0xff] %v1374
      %1379 = vst [vmem:[#allocation2 + $0x18] sm:$0xff] %v1375
      %s1380 = scalar_lea.vmem %s0, 67
      %v1381 = vld [vmem:[%s1380] ss:$8 sm:$0xf]
      %v1383 = vlaneseq
      %v1384 = vshrl.u32 %v1383, 7
      %v1385 = vsub.s32 0, %v1384
      %v1386 = vrot.slane %v1381, %v1385
      %v1387 = vlaneseq
      %v1388 = vshrl.u32 %v1387, 7
      %v1389 = vsub.s32 1, %v1388
      %v1390 = vrot.slane %v1381, %v1389
      %v1391 = vlaneseq
      %v1392 = vshrl.u32 %v1391, 7
      %v1393 = vsub.s32 2, %v1392
      %v1394 = vrot.slane %v1381, %v1393
      %v1395 = vlaneseq
      %v1396 = vshrl.u32 %v1395, 7
      %v1397 = vsub.s32 3, %v1396
      %v1398 = vrot.slane %v1381, %v1397
      %v1403 = vmul.f32 %v258, %v1386
      %v1404 = vmul.f32 %v257, %v1390
      %v1405 = vmul.f32 %v256, %v1394
      %v1406 = vmul.f32 %v259, %v1398
      %1407 = vst [vmem:[#allocation2 + $0x20] sm:$0xff] %v1403
      %1408 = vst [vmem:[#allocation2 + $0x28] sm:$0xff] %v1404
      %1409 = vst [vmem:[#allocation2 + $0x30] sm:$0xff] %v1405
      %1410 = vst [vmem:[#allocation2 + $0x38] sm:$0xff] %v1406
      %s1411 = scalar_lea.vmem %s0, 68
      %v1412 = vld [vmem:[%s1411] ss:$8 sm:$0xf]
      %v1414 = vlaneseq
      %v1415 = vshrl.u32 %v1414, 7
      %v1416 = vsub.s32 0, %v1415
      %v1417 = vrot.slane %v1412, %v1416
      %v1418 = vlaneseq
      %v1419 = vshrl.u32 %v1418, 7
      %v1420 = vsub.s32 1, %v1419
      %v1421 = vrot.slane %v1412, %v1420
      %v1422 = vlaneseq
      %v1423 = vshrl.u32 %v1422, 7
      %v1424 = vsub.s32 2, %v1423
      %v1425 = vrot.slane %v1412, %v1424
      %v1426 = vlaneseq
      %v1427 = vshrl.u32 %v1426, 7
      %v1428 = vsub.s32 3, %v1427
      %v1429 = vrot.slane %v1412, %v1428
      %v1434 = vmul.f32 %v302, %v1417
      %v1435 = vmul.f32 %v301, %v1421
      %v1436 = vmul.f32 %v300, %v1425
      %v1437 = vmul.f32 %v303, %v1429
      %1438 = vst [vmem:[#allocation2 + $0x40] sm:$0xff] %v1434
      %1439 = vst [vmem:[#allocation2 + $0x48] sm:$0xff] %v1435
      %1440 = vst [vmem:[#allocation2 + $0x50] sm:$0xff] %v1436
      %1441 = vst [vmem:[#allocation2 + $0x58] sm:$0xff] %v1437
      %s1442 = scalar_lea.vmem %s0, 69
      %v1443 = vld [vmem:[%s1442] ss:$8 sm:$0xf]
      %v1445 = vlaneseq
      %v1446 = vshrl.u32 %v1445, 7
      %v1447 = vsub.s32 0, %v1446
      %v1448 = vrot.slane %v1443, %v1447
      %v1449 = vlaneseq
      %v1450 = vshrl.u32 %v1449, 7
      %v1451 = vsub.s32 1, %v1450
      %v1452 = vrot.slane %v1443, %v1451
      %v1453 = vlaneseq
      %v1454 = vshrl.u32 %v1453, 7
      %v1455 = vsub.s32 2, %v1454
      %v1456 = vrot.slane %v1443, %v1455
      %v1457 = vlaneseq
      %v1458 = vshrl.u32 %v1457, 7
      %v1459 = vsub.s32 3, %v1458
      %v1460 = vrot.slane %v1443, %v1459
      %v1465 = vmul.f32 %v346, %v1448
      %v1466 = vmul.f32 %v345, %v1452
      %v1467 = vmul.f32 %v344, %v1456
      %v1468 = vmul.f32 %v347, %v1460
      %1469 = vst [vmem:[#allocation2 + $0x60] sm:$0xff] %v1465
      %1470 = vst [vmem:[#allocation2 + $0x68] sm:$0xff] %v1466
      %1471 = vst [vmem:[#allocation2 + $0x70] sm:$0xff] %v1467
      %1472 = vst [vmem:[#allocation2 + $0x78] sm:$0xff] %v1468
      %s1473 = scalar_lea.vmem %s0, 70
      %v1474 = vld [vmem:[%s1473] ss:$8 sm:$0xf]
      %v1476 = vlaneseq
      %v1477 = vshrl.u32 %v1476, 7
      %v1478 = vsub.s32 0, %v1477
      %v1479 = vrot.slane %v1474, %v1478
      %v1480 = vlaneseq
      %v1481 = vshrl.u32 %v1480, 7
      %v1482 = vsub.s32 1, %v1481
      %v1483 = vrot.slane %v1474, %v1482
      %v1484 = vlaneseq
      %v1485 = vshrl.u32 %v1484, 7
      %v1486 = vsub.s32 2, %v1485
      %v1487 = vrot.slane %v1474, %v1486
      %v1488 = vlaneseq
      %v1489 = vshrl.u32 %v1488, 7
      %v1490 = vsub.s32 3, %v1489
      %v1491 = vrot.slane %v1474, %v1490
      %v1496 = vmul.f32 %v390, %v1479
      %v1497 = vmul.f32 %v389, %v1483
      %v1498 = vmul.f32 %v388, %v1487
      %v1499 = vmul.f32 %v391, %v1491
      %1500 = vst [vmem:[#allocation2 + $0x80] sm:$0xff] %v1496
      %1501 = vst [vmem:[#allocation2 + $0x88] sm:$0xff] %v1497
      %1502 = vst [vmem:[#allocation2 + $0x90] sm:$0xff] %v1498
      %1503 = vst [vmem:[#allocation2 + $0x98] sm:$0xff] %v1499
      %s1504 = scalar_lea.vmem %s0, 71
      %v1505 = vld [vmem:[%s1504] ss:$8 sm:$0xf]
      %v1507 = vlaneseq
      %v1508 = vshrl.u32 %v1507, 7
      %v1509 = vsub.s32 0, %v1508
      %v1510 = vrot.slane %v1505, %v1509
      %v1511 = vlaneseq
      %v1512 = vshrl.u32 %v1511, 7
      %v1513 = vsub.s32 1, %v1512
      %v1514 = vrot.slane %v1505, %v1513
      %v1515 = vlaneseq
      %v1516 = vshrl.u32 %v1515, 7
      %v1517 = vsub.s32 2, %v1516
      %v1518 = vrot.slane %v1505, %v1517
      %v1519 = vlaneseq
      %v1520 = vshrl.u32 %v1519, 7
      %v1521 = vsub.s32 3, %v1520
      %v1522 = vrot.slane %v1505, %v1521
      %v1527 = vmul.f32 %v434, %v1510
      %v1528 = vmul.f32 %v433, %v1514
      %v1529 = vmul.f32 %v432, %v1518
      %v1530 = vmul.f32 %v435, %v1522
      %1531 = vst [vmem:[#allocation2 + $0xa0] sm:$0xff] %v1527
      %1532 = vst [vmem:[#allocation2 + $0xa8] sm:$0xff] %v1528
      %1533 = vst [vmem:[#allocation2 + $0xb0] sm:$0xff] %v1529
      %1534 = vst [vmem:[#allocation2 + $0xb8] sm:$0xff] %v1530
      %s1535 = scalar_lea.vmem %s0, 96
      %v1536 = vld [vmem:[%s1535] ss:$8 sm:$0xf]
      %v1538 = vlaneseq
      %v1539 = vshrl.u32 %v1538, 7
      %v1540 = vsub.s32 0, %v1539
      %v1541 = vrot.slane %v1536, %v1540
      %v1542 = vlaneseq
      %v1543 = vshrl.u32 %v1542, 7
      %v1544 = vsub.s32 1, %v1543
      %v1545 = vrot.slane %v1536, %v1544
      %v1546 = vlaneseq
      %v1547 = vshrl.u32 %v1546, 7
      %v1548 = vsub.s32 2, %v1547
      %v1549 = vrot.slane %v1536, %v1548
      %v1550 = vlaneseq
      %v1551 = vshrl.u32 %v1550, 7
      %v1552 = vsub.s32 3, %v1551
      %v1553 = vrot.slane %v1536, %v1552
      %v1558 = vmul.f32 %v478, %v1541
      %v1559 = vmul.f32 %v477, %v1545
      %v1560 = vmul.f32 %v476, %v1549
      %v1561 = vmul.f32 %v479, %v1553
      %1562 = vst [vmem:[#allocation2 + $0xc0] sm:$0xff] %v1558
      %1563 = vst [vmem:[#allocation2 + $0xc8] sm:$0xff] %v1559
      %1564 = vst [vmem:[#allocation2 + $0xd0] sm:$0xff] %v1560
      %1565 = vst [vmem:[#allocation2 + $0xd8] sm:$0xff] %v1561
      %s1566 = scalar_lea.vmem %s0, 97
      %v1567 = vld [vmem:[%s1566] ss:$8 sm:$0xf]
      %v1569 = vlaneseq
      %v1570 = vshrl.u32 %v1569, 7
      %v1571 = vsub.s32 0, %v1570
      %v1572 = vrot.slane %v1567, %v1571
      %v1573 = vlaneseq
      %v1574 = vshrl.u32 %v1573, 7
      %v1575 = vsub.s32 1, %v1574
      %v1576 = vrot.slane %v1567, %v1575
      %v1577 = vlaneseq
      %v1578 = vshrl.u32 %v1577, 7
      %v1579 = vsub.s32 2, %v1578
      %v1580 = vrot.slane %v1567, %v1579
      %v1581 = vlaneseq
      %v1582 = vshrl.u32 %v1581, 7
      %v1583 = vsub.s32 3, %v1582
      %v1584 = vrot.slane %v1567, %v1583
      %v1589 = vmul.f32 %v522, %v1572
      %v1590 = vmul.f32 %v521, %v1576
      %v1591 = vmul.f32 %v520, %v1580
      %v1592 = vmul.f32 %v523, %v1584
      %1593 = vst [vmem:[#allocation2 + $0xe0] sm:$0xff] %v1589
      %1594 = vst [vmem:[#allocation2 + $0xe8] sm:$0xff] %v1590
      %1595 = vst [vmem:[#allocation2 + $0xf0] sm:$0xff] %v1591
      %1596 = vst [vmem:[#allocation2 + $0xf8] sm:$0xff] %v1592
      %s1597 = scalar_lea.vmem %s0, 98
      %v1598 = vld [vmem:[%s1597] ss:$8 sm:$0xf]
      %v1600 = vlaneseq
      %v1601 = vshrl.u32 %v1600, 7
      %v1602 = vsub.s32 0, %v1601
      %v1603 = vrot.slane %v1598, %v1602
      %v1604 = vlaneseq
      %v1605 = vshrl.u32 %v1604, 7
      %v1606 = vsub.s32 1, %v1605
      %v1607 = vrot.slane %v1598, %v1606
      %v1608 = vlaneseq
      %v1609 = vshrl.u32 %v1608, 7
      %v1610 = vsub.s32 2, %v1609
      %v1611 = vrot.slane %v1598, %v1610
      %v1612 = vlaneseq
      %v1613 = vshrl.u32 %v1612, 7
      %v1614 = vsub.s32 3, %v1613
      %v1615 = vrot.slane %v1598, %v1614
      %v1620 = vmul.f32 %v566, %v1603
      %v1621 = vmul.f32 %v565, %v1607
      %v1622 = vmul.f32 %v564, %v1611
      %v1623 = vmul.f32 %v567, %v1615
      %1624 = vst [vmem:[#allocation2 + $0x100] sm:$0xff] %v1620
      %1625 = vst [vmem:[#allocation2 + $0x108] sm:$0xff] %v1621
      %1626 = vst [vmem:[#allocation2 + $0x110] sm:$0xff] %v1622
      %1627 = vst [vmem:[#allocation2 + $0x118] sm:$0xff] %v1623
      %s1628 = scalar_lea.vmem %s2, 16
      %v1629 = vld [vmem:[%s1628] sm:$0xff]
      %v1630 = vld [vmem:[#allocation2] sm:$0xff]
      %v1631 = vld [vmem:[#allocation2 + $0x8] sm:$0xff]
      %v1632 = vld [vmem:[#allocation2 + $0x10] sm:$0xff]
      %v1633 = vld [vmem:[#allocation2 + $0x18] sm:$0xff]
      %v1634 = vld [vmem:[#allocation2 + $0x20] sm:$0xff]
      %v1635 = vld [vmem:[#allocation2 + $0x28] sm:$0xff]
      %v1636 = vld [vmem:[#allocation2 + $0x30] sm:$0xff]
      %v1637 = vld [vmem:[#allocation2 + $0x38] sm:$0xff]
      %v1638 = vld [vmem:[#allocation2 + $0x40] sm:$0xff]
      %v1639 = vld [vmem:[#allocation2 + $0x48] sm:$0xff]
      %v1640 = vld [vmem:[#allocation2 + $0x50] sm:$0xff]
      %v1641 = vld [vmem:[#allocation2 + $0x58] sm:$0xff]
      %v1642 = vld [vmem:[#allocation2 + $0x60] sm:$0xff]
      %v1643 = vld [vmem:[#allocation2 + $0x68] sm:$0xff]
      %v1644 = vld [vmem:[#allocation2 + $0x70] sm:$0xff]
      %v1645 = vld [vmem:[#allocation2 + $0x78] sm:$0xff]
      %v1646 = vld [vmem:[#allocation2 + $0x80] sm:$0xff]
      %v1647 = vld [vmem:[#allocation2 + $0x88] sm:$0xff]
      %v1648 = vld [vmem:[#allocation2 + $0x90] sm:$0xff]
      %v1649 = vld [vmem:[#allocation2 + $0x98] sm:$0xff]
      %v1650 = vld [vmem:[#allocation2 + $0xa0] sm:$0xff]
      %v1651 = vld [vmem:[#allocation2 + $0xa8] sm:$0xff]
      %v1652 = vld [vmem:[#allocation2 + $0xb0] sm:$0xff]
      %v1653 = vld [vmem:[#allocation2 + $0xb8] sm:$0xff]
      %v1654 = vld [vmem:[#allocation2 + $0xc0] sm:$0xff]
      %v1655 = vld [vmem:[#allocation2 + $0xc8] sm:$0xff]
      %v1656 = vld [vmem:[#allocation2 + $0xd0] sm:$0xff]
      %v1657 = vld [vmem:[#allocation2 + $0xd8] sm:$0xff]
      %v1658 = vld [vmem:[#allocation2 + $0xe0] sm:$0xff]
      %v1659 = vld [vmem:[#allocation2 + $0xe8] sm:$0xff]
      %v1660 = vld [vmem:[#allocation2 + $0xf0] sm:$0xff]
      %v1661 = vld [vmem:[#allocation2 + $0xf8] sm:$0xff]
      %v1662 = vld [vmem:[#allocation2 + $0x100] sm:$0xff]
      %v1663 = vld [vmem:[#allocation2 + $0x108] sm:$0xff]
      %v1664 = vld [vmem:[#allocation2 + $0x110] sm:$0xff]
      %v1665 = vld [vmem:[#allocation2 + $0x118] sm:$0xff]
      %v1667 = vsel %vm1058, %v1629, 0
      %1669 = vmatprep.subr.mxu0 %v1631
      %1670 = vmatpush1.msra.mxu0 %v1630
      %1671 = vmatprep.subr.mxu0 %v1635
      %1672 = vmatpush1.msra.mxu0 %v1634
      %1673 = vmatprep.subr.mxu0 %v1639
      %1674 = vmatpush1.msra.mxu0 %v1638
      %1675 = vmatprep.subr.mxu0 %v1643
      %1676 = vmatpush1.msra.mxu0 %v1642
      %1677 = vmatprep.subr.mxu0 %v1647
      %1678 = vmatpush1.msra.mxu0 %v1646
      %1679 = vmatprep.subr.mxu0 %v1651
      %1680 = vmatpush1.msra.mxu0 %v1650
      %1681 = vmatprep.subr.mxu0 %v1655
      %1682 = vmatpush1.msra.mxu0 %v1654
      %1683 = vmatprep.subr.mxu0 %v1659
      %1684 = vmatpush1.msra.mxu0 %v1658
      %1685 = vmatprep.subr.mxu0 %v1663
      %1686 = vmatpush1.msra.mxu0 %v1662
      %1687 = vmatprep.subr.mxu0 0.0
      %1688 = vmatpush1.msra.mxu0 0.0
      %1689 = vmatprep.subr.mxu0 0.0
      %1690 = vmatpush1.msra.mxu0 0.0
      %1691 = vmatprep.subr.mxu0 0.0
      %1692 = vmatpush1.msra.mxu0 0.0
      %1693 = vmatprep.subr.mxu0 0.0
      %1694 = vmatpush1.msra.mxu0 0.0
      %1695 = vmatprep.subr.mxu0 0.0
      %1696 = vmatpush1.msra.mxu0 0.0
      %1697 = vmatprep.subr.mxu0 0.0
      %1698 = vmatpush1.msra.mxu0 0.0
      %1699 = vmatprep.subr.mxu0 0.0
      %1700 = vmatpush1.msra.mxu0 0.0
      %1701 = vmatprep.subr.mxu0 0.0
      %1702 = vmatpush1.msra.mxu0 0.0
      %1703 = vmatprep.subr.mxu0 0.0
      %1704 = vmatpush1.msra.mxu0 0.0
      %1705 = vmatprep.subr.mxu0 0.0
      %1706 = vmatpush1.msra.mxu0 0.0
      %1707 = vmatprep.subr.mxu0 0.0
      %1708 = vmatpush1.msra.mxu0 0.0
      %1709 = vmatprep.subr.mxu0 0.0
      %1710 = vmatpush1.msra.mxu0 0.0
      %1711 = vmatprep.subr.mxu0 0.0
      %1712 = vmatpush1.msra.mxu0 0.0
      %1713 = vmatprep.subr.mxu0 0.0
      %1714 = vmatpush1.msra.mxu0 0.0
      %1715 = vmatprep.subr.mxu0 0.0
      %1716 = vmatpush1.msra.mxu0 0.0
      %1717 = vmatprep.subr.mxu0 0.0
      %1718 = vmatpush1.msra.mxu0 0.0
      %1719 = vmatprep.subr.mxu0 0.0
      %1720 = vmatpush1.msra.mxu0 0.0
      %1721 = vmatprep.subr.mxu0 0.0
      %1722 = vmatpush1.msra.mxu0 0.0
      %1723 = vmatprep.subr.mxu0 0.0
      %1724 = vmatpush1.msra.mxu0 0.0
      %1725 = vmatprep.subr.mxu0 0.0
      %1726 = vmatpush1.msra.mxu0 0.0
      %1727 = vmatprep.subr.mxu0 0.0
      %1728 = vmatpush1.msra.mxu0 0.0
      %1729 = vmatprep.subr.mxu0 0.0
      %1730 = vmatpush1.msra.mxu0 0.0
      %1731 = vmatprep.subr.mxu0 0.0
      %1732 = vmatpush1.msra.mxu0 0.0
      %1733 = vmatprep.mubr.f32.mxu0 0.0
      %1734 = vmatmul.mubr.f32.gmra.mrb[0].mxu0 %v1667
      %v1735 = vpop.f32.mrb[0].mxu0
      %v1736 = vadd.f32 0.0, %v1735
      %v1737 = vpop.f32.mrb[0].mxu0
      %v1738 = vadd.f32 0.0, %v1737
      %1739 = vdwg.mxu0
      %1740 = vmatprep.subr.mxu0 %v1633
      %1741 = vmatpush1.msra.mxu0 %v1632
      %1742 = vmatprep.subr.mxu0 %v1637
      %1743 = vmatpush1.msra.mxu0 %v1636
      %1744 = vmatprep.subr.mxu0 %v1641
      %1745 = vmatpush1.msra.mxu0 %v1640
      %1746 = vmatprep.subr.mxu0 %v1645
      %1747 = vmatpush1.msra.mxu0 %v1644
      %1748 = vmatprep.subr.mxu0 %v1649
      %1749 = vmatpush1.msra.mxu0 %v1648
      %1750 = vmatprep.subr.mxu0 %v1653
      %1751 = vmatpush1.msra.mxu0 %v1652
      %1752 = vmatprep.subr.mxu0 %v1657
      %1753 = vmatpush1.msra.mxu0 %v1656
      %1754 = vmatprep.subr.mxu0 %v1661
      %1755 = vmatpush1.msra.mxu0 %v1660
      %1756 = vmatprep.subr.mxu0 %v1665
      %1757 = vmatpush1.msra.mxu0 %v1664
      %1758 = vmatprep.subr.mxu0 0.0
      %1759 = vmatpush1.msra.mxu0 0.0
      %1760 = vmatprep.subr.mxu0 0.0
      %1761 = vmatpush1.msra.mxu0 0.0
      %1762 = vmatprep.subr.mxu0 0.0
      %1763 = vmatpush1.msra.mxu0 0.0
      %1764 = vmatprep.subr.mxu0 0.0
      %1765 = vmatpush1.msra.mxu0 0.0
      %1766 = vmatprep.subr.mxu0 0.0
      %1767 = vmatpush1.msra.mxu0 0.0
      %1768 = vmatprep.subr.mxu0 0.0
      %1769 = vmatpush1.msra.mxu0 0.0
      %1770 = vmatprep.subr.mxu0 0.0
      %1771 = vmatpush1.msra.mxu0 0.0
      %1772 = vmatprep.subr.mxu0 0.0
      %1773 = vmatpush1.msra.mxu0 0.0
      %1774 = vmatprep.subr.mxu0 0.0
      %1775 = vmatpush1.msra.mxu0 0.0
      %1776 = vmatprep.subr.mxu0 0.0
      %1777 = vmatpush1.msra.mxu0 0.0
      %1778 = vmatprep.subr.mxu0 0.0
      %1779 = vmatpush1.msra.mxu0 0.0
      %1780 = vmatprep.subr.mxu0 0.0
      %1781 = vmatpush1.msra.mxu0 0.0
      %1782 = vmatprep.subr.mxu0 0.0
      %1783 = vmatpush1.msra.mxu0 0.0
      %1784 = vmatprep.subr.mxu0 0.0
      %1785 = vmatpush1.msra.mxu0 0.0
      %1786 = vmatprep.subr.mxu0 0.0
      %1787 = vmatpush1.msra.mxu0 0.0
      %1788 = vmatprep.subr.mxu0 0.0
      %1789 = vmatpush1.msra.mxu0 0.0
      %1790 = vmatprep.subr.mxu0 0.0
      %1791 = vmatpush1.msra.mxu0 0.0
      %1792 = vmatprep.subr.mxu0 0.0
      %1793 = vmatpush1.msra.mxu0 0.0
      %1794 = vmatprep.subr.mxu0 0.0
      %1795 = vmatpush1.msra.mxu0 0.0
      %1796 = vmatprep.subr.mxu0 0.0
      %1797 = vmatpush1.msra.mxu0 0.0
      %1798 = vmatprep.subr.mxu0 0.0
      %1799 = vmatpush1.msra.mxu0 0.0
      %1800 = vmatprep.subr.mxu0 0.0
      %1801 = vmatpush1.msra.mxu0 0.0
      %1802 = vmatprep.subr.mxu0 0.0
      %1803 = vmatpush1.msra.mxu0 0.0
      %1804 = vmatprep.mubr.f32.mxu0 0.0
      %1805 = vmatmul.mubr.f32.gmra.mrb[0].mxu0 %v1667
      %v1806 = vpop.f32.mrb[0].mxu0
      %v1807 = vadd.f32 0.0, %v1806
      %v1808 = vpop.f32.mrb[0].mxu0
      %v1809 = vadd.f32 0.0, %v1808
      %1810 = vdwg.mxu0
      %v1811 = vadd.f32 %v1274, %v1736
      %v1812 = vadd.f32 %v1276, %v1738
      %v1813 = vadd.f32 %v1345, %v1807
      %v1814 = vadd.f32 %v1347, %v1809
      %v1815 = vadd.f32 %v1811, %v1812
      %v1816 = vadd.f32 %v1815, %v1813
      %v1817 = vadd.f32 %v1816, %v1814
      %1818 = vadd.xlane.f32.xlu0 %v1817
      %v1819 = vpop.xlane.xlu0 %1818
      %v1820 = vmul.f32 %v1811, %v1811
      %v1821 = vmul.f32 %v1812, %v1812
      %v1822 = vmul.f32 %v1813, %v1813
      %v1823 = vmul.f32 %v1814, %v1814
      %v1824 = vadd.f32 %v1820, %v1821
      %v1825 = vadd.f32 %v1824, %v1822
      %v1826 = vadd.f32 %v1825, %v1823
      %1827 = vadd.xlane.f32.xlu0 %v1826
      %v1828 = vpop.xlane.xlu0 %1827
      %v1829 = vmul.f32 %v1819, 0.001953125
      %v1830 = vmul.f32 %v1828, 0.001953125
      %v1831 = vmul.f32 %v1829, %v1829
      %v1832 = vsub.f32 %v1830, %v1831
      %v1833 = vmax.f32 %v1832, 0.0
      %v1834 = vsub.f32 %v1811, %v1829
      %v1835 = vsub.f32 %v1812, %v1829
      %v1836 = vsub.f32 %v1813, %v1829
      %v1837 = vsub.f32 %v1814, %v1829
      %v1838 = vadd.f32 %v1833, 1e-05
      %v1839 = vrsqrt.pop %v1838
      %v1840 = vmul.f32 %v1834, %v1839
      %v1841 = vmul.f32 %v1835, %v1839
      %v1842 = vmul.f32 %v1836, %v1839
      %v1843 = vmul.f32 %v1837, %v1839
      %v1844 = vmax.f32 %v1840, 0.0
      %v1845 = vmax.f32 %v1841, 0.0
      %v1846 = vmax.f32 %v1842, 0.0
      %v1847 = vmax.f32 %v1843, 0.0
      %1848 = vst [vmem:[#allocation3] sm:$0xff] %v1844
      %1849 = vst [vmem:[#allocation3 + $0x8] sm:$0xff] %v1845
      %1850 = vst [vmem:[#allocation3 + $0x10] sm:$0xff] %v1846
      %1851 = vst [vmem:[#allocation3 + $0x18] sm:$0xff] %v1847
      %v1852 = vld [vmem:[#allocation3] sm:$0xff]
      %v1853 = vld [vmem:[#allocation3 + $0x8] sm:$0xff]
      %v1854 = vld [vmem:[#allocation3 + $0x10] sm:$0xff]
      %v1855 = vld [vmem:[#allocation3 + $0x18] sm:$0xff]
      %1856 = vrot.lane.b32.xlu0 %v1852, 73
      %v1857 = vpop.permute.xlu0 %1856
      %1858 = vrot.lane.b32.xlu0 %v1853, 73
      %v1859 = vpop.permute.xlu0 %1858
      %1860 = vrot.lane.b32.xlu0 %v1854, 73
      %v1861 = vpop.permute.xlu0 %1860
      %1862 = vrot.lane.b32.xlu0 %v1855, 73
      %v1863 = vpop.permute.xlu0 %1862
      %v1864 = vsel %vm212, %v1861, %v1863
      %v1865 = vsel %vm212, %v1859, %v1861
      %v1866 = vsel %vm212, %v1857, %v1859
      %v1867 = vsel %vm212, %v1863, %v1857
      %v1868 = vld [vmem:[%s0] ss:$8 sm:$0xf]
      %v1870 = vlaneseq
      %v1871 = vshrl.u32 %v1870, 7
      %v1872 = vsub.s32 0, %v1871
      %v1873 = vrot.slane %v1868, %v1872
      %v1874 = vlaneseq
      %v1875 = vshrl.u32 %v1874, 7
      %v1876 = vsub.s32 1, %v1875
      %v1877 = vrot.slane %v1868, %v1876
      %v1878 = vlaneseq
      %v1879 = vshrl.u32 %v1878, 7
      %v1880 = vsub.s32 2, %v1879
      %v1881 = vrot.slane %v1868, %v1880
      %v1882 = vlaneseq
      %v1883 = vshrl.u32 %v1882, 7
      %v1884 = vsub.s32 3, %v1883
      %v1885 = vrot.slane %v1868, %v1884
      %v1890 = vmul.f32 %v1867, %v1873
      %v1891 = vmul.f32 %v1866, %v1877
      %v1892 = vmul.f32 %v1865, %v1881
      %v1893 = vmul.f32 %v1864, %v1885
      %1894 = vst [vmem:[#allocation2] sm:$0xff] %v1890
      %1895 = vst [vmem:[#allocation2 + $0x8] sm:$0xff] %v1891
      %1896 = vst [vmem:[#allocation2 + $0x10] sm:$0xff] %v1892
      %1897 = vst [vmem:[#allocation2 + $0x18] sm:$0xff] %v1893
      %1898 = vrot.lane.b32.xlu0 %v1852, 72
      %v1899 = vpop.permute.xlu0 %1898
      %1900 = vrot.lane.b32.xlu0 %v1853, 72
      %v1901 = vpop.permute.xlu0 %1900
      %1902 = vrot.lane.b32.xlu0 %v1854, 72
      %v1903 = vpop.permute.xlu0 %1902
      %1904 = vrot.lane.b32.xlu0 %v1855, 72
      %v1905 = vpop.permute.xlu0 %1904
      %v1906 = vsel %vm255, %v1903, %v1905
      %v1907 = vsel %vm255, %v1901, %v1903
      %v1908 = vsel %vm255, %v1899, %v1901
      %v1909 = vsel %vm255, %v1905, %v1899
      %v1910 = vld [vmem:[%s260] ss:$8 sm:$0xf]
      %v1912 = vlaneseq
      %v1913 = vshrl.u32 %v1912, 7
      %v1914 = vsub.s32 0, %v1913
      %v1915 = vrot.slane %v1910, %v1914
      %v1916 = vlaneseq
      %v1917 = vshrl.u32 %v1916, 7
      %v1918 = vsub.s32 1, %v1917
      %v1919 = vrot.slane %v1910, %v1918
      %v1920 = vlaneseq
      %v1921 = vshrl.u32 %v1920, 7
      %v1922 = vsub.s32 2, %v1921
      %v1923 = vrot.slane %v1910, %v1922
      %v1924 = vlaneseq
      %v1925 = vshrl.u32 %v1924, 7
      %v1926 = vsub.s32 3, %v1925
      %v1927 = vrot.slane %v1910, %v1926
      %v1932 = vmul.f32 %v1909, %v1915
      %v1933 = vmul.f32 %v1908, %v1919
      %v1934 = vmul.f32 %v1907, %v1923
      %v1935 = vmul.f32 %v1906, %v1927
      %1936 = vst [vmem:[#allocation2 + $0x20] sm:$0xff] %v1932
      %1937 = vst [vmem:[#allocation2 + $0x28] sm:$0xff] %v1933
      %1938 = vst [vmem:[#allocation2 + $0x30] sm:$0xff] %v1934
      %1939 = vst [vmem:[#allocation2 + $0x38] sm:$0xff] %v1935
      %1940 = vrot.lane.b32.xlu0 %v1852, 71
      %v1941 = vpop.permute.xlu0 %1940
      %1942 = vrot.lane.b32.xlu0 %v1853, 71
      %v1943 = vpop.permute.xlu0 %1942
      %1944 = vrot.lane.b32.xlu0 %v1854, 71
      %v1945 = vpop.permute.xlu0 %1944
      %1946 = vrot.lane.b32.xlu0 %v1855, 71
      %v1947 = vpop.permute.xlu0 %1946
      %v1948 = vsel %vm299, %v1945, %v1947
      %v1949 = vsel %vm299, %v1943, %v1945
      %v1950 = vsel %vm299, %v1941, %v1943
      %v1951 = vsel %vm299, %v1947, %v1941
      %v1952 = vld [vmem:[%s304] ss:$8 sm:$0xf]
      %v1954 = vlaneseq
      %v1955 = vshrl.u32 %v1954, 7
      %v1956 = vsub.s32 0, %v1955
      %v1957 = vrot.slane %v1952, %v1956
      %v1958 = vlaneseq
      %v1959 = vshrl.u32 %v1958, 7
      %v1960 = vsub.s32 1, %v1959
      %v1961 = vrot.slane %v1952, %v1960
      %v1962 = vlaneseq
      %v1963 = vshrl.u32 %v1962, 7
      %v1964 = vsub.s32 2, %v1963
      %v1965 = vrot.slane %v1952, %v1964
      %v1966 = vlaneseq
      %v1967 = vshrl.u32 %v1966, 7
      %v1968 = vsub.s32 3, %v1967
      %v1969 = vrot.slane %v1952, %v1968
      %v1974 = vmul.f32 %v1951, %v1957
      %v1975 = vmul.f32 %v1950, %v1961
      %v1976 = vmul.f32 %v1949, %v1965
      %v1977 = vmul.f32 %v1948, %v1969
      %1978 = vst [vmem:[#allocation2 + $0x40] sm:$0xff] %v1974
      %1979 = vst [vmem:[#allocation2 + $0x48] sm:$0xff] %v1975
      %1980 = vst [vmem:[#allocation2 + $0x50] sm:$0xff] %v1976
      %1981 = vst [vmem:[#allocation2 + $0x58] sm:$0xff] %v1977
      %1982 = vrot.lane.b32.xlu0 %v1852, 65
      %v1983 = vpop.permute.xlu0 %1982
      %1984 = vrot.lane.b32.xlu0 %v1853, 65
      %v1985 = vpop.permute.xlu0 %1984
      %1986 = vrot.lane.b32.xlu0 %v1854, 65
      %v1987 = vpop.permute.xlu0 %1986
      %1988 = vrot.lane.b32.xlu0 %v1855, 65
      %v1989 = vpop.permute.xlu0 %1988
      %v1990 = vsel %vm343, %v1987, %v1989
      %v1991 = vsel %vm343, %v1985, %v1987
      %v1992 = vsel %vm343, %v1983, %v1985
      %v1993 = vsel %vm343, %v1989, %v1983
      %v1994 = vld [vmem:[%s348] ss:$8 sm:$0xf]
      %v1996 = vlaneseq
      %v1997 = vshrl.u32 %v1996, 7
      %v1998 = vsub.s32 0, %v1997
      %v1999 = vrot.slane %v1994, %v1998
      %v2000 = vlaneseq
      %v2001 = vshrl.u32 %v2000, 7
      %v2002 = vsub.s32 1, %v2001
      %v2003 = vrot.slane %v1994, %v2002
      %v2004 = vlaneseq
      %v2005 = vshrl.u32 %v2004, 7
      %v2006 = vsub.s32 2, %v2005
      %v2007 = vrot.slane %v1994, %v2006
      %v2008 = vlaneseq
      %v2009 = vshrl.u32 %v2008, 7
      %v2010 = vsub.s32 3, %v2009
      %v2011 = vrot.slane %v1994, %v2010
      %v2016 = vmul.f32 %v1993, %v1999
      %v2017 = vmul.f32 %v1992, %v2003
      %v2018 = vmul.f32 %v1991, %v2007
      %v2019 = vmul.f32 %v1990, %v2011
      %2020 = vst [vmem:[#allocation2 + $0x60] sm:$0xff] %v2016
      %2021 = vst [vmem:[#allocation2 + $0x68] sm:$0xff] %v2017
      %2022 = vst [vmem:[#allocation2 + $0x70] sm:$0xff] %v2018
      %2023 = vst [vmem:[#allocation2 + $0x78] sm:$0xff] %v2019
      %2024 = vrot.lane.b32.xlu0 %v1852, 64
      %v2025 = vpop.permute.xlu0 %2024
      %2026 = vrot.lane.b32.xlu0 %v1853, 64
      %v2027 = vpop.permute.xlu0 %2026
      %2028 = vrot.lane.b32.xlu0 %v1854, 64
      %v2029 = vpop.permute.xlu0 %2028
      %2030 = vrot.lane.b32.xlu0 %v1855, 64
      %v2031 = vpop.permute.xlu0 %2030
      %v2032 = vsel %vm387, %v2029, %v2031
      %v2033 = vsel %vm387, %v2027, %v2029
      %v2034 = vsel %vm387, %v2025, %v2027
      %v2035 = vsel %vm387, %v2031, %v2025
      %v2036 = vld [vmem:[%s392] ss:$8 sm:$0xf]
      %v2038 = vlaneseq
      %v2039 = vshrl.u32 %v2038, 7
      %v2040 = vsub.s32 0, %v2039
      %v2041 = vrot.slane %v2036, %v2040
      %v2042 = vlaneseq
      %v2043 = vshrl.u32 %v2042, 7
      %v2044 = vsub.s32 1, %v2043
      %v2045 = vrot.slane %v2036, %v2044
      %v2046 = vlaneseq
      %v2047 = vshrl.u32 %v2046, 7
      %v2048 = vsub.s32 2, %v2047
      %v2049 = vrot.slane %v2036, %v2048
      %v2050 = vlaneseq
      %v2051 = vshrl.u32 %v2050, 7
      %v2052 = vsub.s32 3, %v2051
      %v2053 = vrot.slane %v2036, %v2052
      %v2058 = vmul.f32 %v2035, %v2041
      %v2059 = vmul.f32 %v2034, %v2045
      %v2060 = vmul.f32 %v2033, %v2049
      %v2061 = vmul.f32 %v2032, %v2053
      %2062 = vst [vmem:[#allocation2 + $0x80] sm:$0xff] %v2058
      %2063 = vst [vmem:[#allocation2 + $0x88] sm:$0xff] %v2059
      %2064 = vst [vmem:[#allocation2 + $0x90] sm:$0xff] %v2060
      %2065 = vst [vmem:[#allocation2 + $0x98] sm:$0xff] %v2061
      %2066 = vrot.lane.b32.xlu0 %v1852, 63
      %v2067 = vpop.permute.xlu0 %2066
      %2068 = vrot.lane.b32.xlu0 %v1853, 63
      %v2069 = vpop.permute.xlu0 %2068
      %2070 = vrot.lane.b32.xlu0 %v1854, 63
      %v2071 = vpop.permute.xlu0 %2070
      %2072 = vrot.lane.b32.xlu0 %v1855, 63
      %v2073 = vpop.permute.xlu0 %2072
      %v2074 = vsel %vm431, %v2071, %v2073
      %v2075 = vsel %vm431, %v2069, %v2071
      %v2076 = vsel %vm431, %v2067, %v2069
      %v2077 = vsel %vm431, %v2073, %v2067
      %v2078 = vld [vmem:[%s436] ss:$8 sm:$0xf]
      %v2080 = vlaneseq
      %v2081 = vshrl.u32 %v2080, 7
      %v2082 = vsub.s32 0, %v2081
      %v2083 = vrot.slane %v2078, %v2082
      %v2084 = vlaneseq
      %v2085 = vshrl.u32 %v2084, 7
      %v2086 = vsub.s32 1, %v2085
      %v2087 = vrot.slane %v2078, %v2086
      %v2088 = vlaneseq
      %v2089 = vshrl.u32 %v2088, 7
      %v2090 = vsub.s32 2, %v2089
      %v2091 = vrot.slane %v2078, %v2090
      %v2092 = vlaneseq
      %v2093 = vshrl.u32 %v2092, 7
      %v2094 = vsub.s32 3, %v2093
      %v2095 = vrot.slane %v2078, %v2094
      %v2100 = vmul.f32 %v2077, %v2083
      %v2101 = vmul.f32 %v2076, %v2087
      %v2102 = vmul.f32 %v2075, %v2091
      %v2103 = vmul.f32 %v2074, %v2095
      %2104 = vst [vmem:[#allocation2 + $0xa0] sm:$0xff] %v2100
      %2105 = vst [vmem:[#allocation2 + $0xa8] sm:$0xff] %v2101
      %2106 = vst [vmem:[#allocation2 + $0xb0] sm:$0xff] %v2102
      %2107 = vst [vmem:[#allocation2 + $0xb8] sm:$0xff] %v2103
      %2108 = vrot.lane.b32.xlu0 %v1852, 57
      %v2109 = vpop.permute.xlu0 %2108
      %2110 = vrot.lane.b32.xlu0 %v1853, 57
      %v2111 = vpop.permute.xlu0 %2110
      %2112 = vrot.lane.b32.xlu0 %v1854, 57
      %v2113 = vpop.permute.xlu0 %2112
      %2114 = vrot.lane.b32.xlu0 %v1855, 57
      %v2115 = vpop.permute.xlu0 %2114
      %v2116 = vsel %vm475, %v2113, %v2115
      %v2117 = vsel %vm475, %v2111, %v2113
      %v2118 = vsel %vm475, %v2109, %v2111
      %v2119 = vsel %vm475, %v2115, %v2109
      %v2120 = vld [vmem:[%s480] ss:$8 sm:$0xf]
      %v2122 = vlaneseq
      %v2123 = vshrl.u32 %v2122, 7
      %v2124 = vsub.s32 0, %v2123
      %v2125 = vrot.slane %v2120, %v2124
      %v2126 = vlaneseq
      %v2127 = vshrl.u32 %v2126, 7
      %v2128 = vsub.s32 1, %v2127
      %v2129 = vrot.slane %v2120, %v2128
      %v2130 = vlaneseq
      %v2131 = vshrl.u32 %v2130, 7
      %v2132 = vsub.s32 2, %v2131
      %v2133 = vrot.slane %v2120, %v2132
      %v2134 = vlaneseq
      %v2135 = vshrl.u32 %v2134, 7
      %v2136 = vsub.s32 3, %v2135
      %v2137 = vrot.slane %v2120, %v2136
      %v2142 = vmul.f32 %v2119, %v2125
      %v2143 = vmul.f32 %v2118, %v2129
      %v2144 = vmul.f32 %v2117, %v2133
      %v2145 = vmul.f32 %v2116, %v2137
      %2146 = vst [vmem:[#allocation2 + $0xc0] sm:$0xff] %v2142
      %2147 = vst [vmem:[#allocation2 + $0xc8] sm:$0xff] %v2143
      %2148 = vst [vmem:[#allocation2 + $0xd0] sm:$0xff] %v2144
      %2149 = vst [vmem:[#allocation2 + $0xd8] sm:$0xff] %v2145
      %2150 = vrot.lane.b32.xlu0 %v1852, 56
      %v2151 = vpop.permute.xlu0 %2150
      %2152 = vrot.lane.b32.xlu0 %v1853, 56
      %v2153 = vpop.permute.xlu0 %2152
      %2154 = vrot.lane.b32.xlu0 %v1854, 56
      %v2155 = vpop.permute.xlu0 %2154
      %2156 = vrot.lane.b32.xlu0 %v1855, 56
      %v2157 = vpop.permute.xlu0 %2156
      %v2158 = vsel %vm519, %v2155, %v2157
      %v2159 = vsel %vm519, %v2153, %v2155
      %v2160 = vsel %vm519, %v2151, %v2153
      %v2161 = vsel %vm519, %v2157, %v2151
      %v2162 = vld [vmem:[%s524] ss:$8 sm:$0xf]
      %v2164 = vlaneseq
      %v2165 = vshrl.u32 %v2164, 7
      %v2166 = vsub.s32 0, %v2165
      %v2167 = vrot.slane %v2162, %v2166
      %v2168 = vlaneseq
      %v2169 = vshrl.u32 %v2168, 7
      %v2170 = vsub.s32 1, %v2169
      %v2171 = vrot.slane %v2162, %v2170
      %v2172 = vlaneseq
      %v2173 = vshrl.u32 %v2172, 7
      %v2174 = vsub.s32 2, %v2173
      %v2175 = vrot.slane %v2162, %v2174
      %v2176 = vlaneseq
      %v2177 = vshrl.u32 %v2176, 7
      %v2178 = vsub.s32 3, %v2177
      %v2179 = vrot.slane %v2162, %v2178
      %v2184 = vmul.f32 %v2161, %v2167
      %v2185 = vmul.f32 %v2160, %v2171
      %v2186 = vmul.f32 %v2159, %v2175
      %v2187 = vmul.f32 %v2158, %v2179
      %2188 = vst [vmem:[#allocation2 + $0xe0] sm:$0xff] %v2184
      %2189 = vst [vmem:[#allocation2 + $0xe8] sm:$0xff] %v2185
      %2190 = vst [vmem:[#allocation2 + $0xf0] sm:$0xff] %v2186
      %2191 = vst [vmem:[#allocation2 + $0xf8] sm:$0xff] %v2187
      %2192 = vrot.lane.b32.xlu0 %v1852, 55
      %v2193 = vpop.permute.xlu0 %2192
      %2194 = vrot.lane.b32.xlu0 %v1853, 55
      %v2195 = vpop.permute.xlu0 %2194
      %2196 = vrot.lane.b32.xlu0 %v1854, 55
      %v2197 = vpop.permute.xlu0 %2196
      %2198 = vrot.lane.b32.xlu0 %v1855, 55
      %v2199 = vpop.permute.xlu0 %2198
      %v2200 = vsel %vm563, %v2197, %v2199
      %v2201 = vsel %vm563, %v2195, %v2197
      %v2202 = vsel %vm563, %v2193, %v2195
      %v2203 = vsel %vm563, %v2199, %v2193
      %v2204 = vld [vmem:[%s568] ss:$8 sm:$0xf]
      %v2206 = vlaneseq
      %v2207 = vshrl.u32 %v2206, 7
      %v2208 = vsub.s32 0, %v2207
      %v2209 = vrot.slane %v2204, %v2208
      %v2210 = vlaneseq
      %v2211 = vshrl.u32 %v2210, 7
      %v2212 = vsub.s32 1, %v2211
      %v2213 = vrot.slane %v2204, %v2212
      %v2214 = vlaneseq
      %v2215 = vshrl.u32 %v2214, 7
      %v2216 = vsub.s32 2, %v2215
      %v2217 = vrot.slane %v2204, %v2216
      %v2218 = vlaneseq
      %v2219 = vshrl.u32 %v2218, 7
      %v2220 = vsub.s32 3, %v2219
      %v2221 = vrot.slane %v2204, %v2220
      %v2226 = vmul.f32 %v2203, %v2209
      %v2227 = vmul.f32 %v2202, %v2213
      %v2228 = vmul.f32 %v2201, %v2217
      %v2229 = vmul.f32 %v2200, %v2221
      %2230 = vst [vmem:[#allocation2 + $0x100] sm:$0xff] %v2226
      %2231 = vst [vmem:[#allocation2 + $0x108] sm:$0xff] %v2227
      %2232 = vst [vmem:[#allocation2 + $0x110] sm:$0xff] %v2228
      %2233 = vst [vmem:[#allocation2 + $0x118] sm:$0xff] %v2229
      %v2234 = vld [vmem:[%s3] sm:$0xff]
      %v2235 = vld [vmem:[#allocation2] sm:$0xff]
      %v2236 = vld [vmem:[#allocation2 + $0x8] sm:$0xff]
      %v2237 = vld [vmem:[#allocation2 + $0x10] sm:$0xff]
      %v2238 = vld [vmem:[#allocation2 + $0x18] sm:$0xff]
      %v2239 = vld [vmem:[#allocation2 + $0x20] sm:$0xff]
      %v2240 = vld [vmem:[#allocation2 + $0x28] sm:$0xff]
      %v2241 = vld [vmem:[#allocation2 + $0x30] sm:$0xff]
      %v2242 = vld [vmem:[#allocation2 + $0x38] sm:$0xff]
      %v2243 = vld [vmem:[#allocation2 + $0x40] sm:$0xff]
      %v2244 = vld [vmem:[#allocation2 + $0x48] sm:$0xff]
      %v2245 = vld [vmem:[#allocation2 + $0x50] sm:$0xff]
      %v2246 = vld [vmem:[#allocation2 + $0x58] sm:$0xff]
      %v2247 = vld [vmem:[#allocation2 + $0x60] sm:$0xff]
      %v2248 = vld [vmem:[#allocation2 + $0x68] sm:$0xff]
      %v2249 = vld [vmem:[#allocation2 + $0x70] sm:$0xff]
      %v2250 = vld [vmem:[#allocation2 + $0x78] sm:$0xff]
      %v2251 = vld [vmem:[#allocation2 + $0x80] sm:$0xff]
      %v2252 = vld [vmem:[#allocation2 + $0x88] sm:$0xff]
      %v2253 = vld [vmem:[#allocation2 + $0x90] sm:$0xff]
      %v2254 = vld [vmem:[#allocation2 + $0x98] sm:$0xff]
      %v2255 = vld [vmem:[#allocation2 + $0xa0] sm:$0xff]
      %v2256 = vld [vmem:[#allocation2 + $0xa8] sm:$0xff]
      %v2257 = vld [vmem:[#allocation2 + $0xb0] sm:$0xff]
      %v2258 = vld [vmem:[#allocation2 + $0xb8] sm:$0xff]
      %v2259 = vld [vmem:[#allocation2 + $0xc0] sm:$0xff]
      %v2260 = vld [vmem:[#allocation2 + $0xc8] sm:$0xff]
      %v2261 = vld [vmem:[#allocation2 + $0xd0] sm:$0xff]
      %v2262 = vld [vmem:[#allocation2 + $0xd8] sm:$0xff]
      %v2263 = vld [vmem:[#allocation2 + $0xe0] sm:$0xff]
      %v2264 = vld [vmem:[#allocation2 + $0xe8] sm:$0xff]
      %v2265 = vld [vmem:[#allocation2 + $0xf0] sm:$0xff]
      %v2266 = vld [vmem:[#allocation2 + $0xf8] sm:$0xff]
      %v2267 = vld [vmem:[#allocation2 + $0x100] sm:$0xff]
      %v2268 = vld [vmem:[#allocation2 + $0x108] sm:$0xff]
      %v2269 = vld [vmem:[#allocation2 + $0x110] sm:$0xff]
      %v2270 = vld [vmem:[#allocation2 + $0x118] sm:$0xff]
      %2271 = vrot.lane.b32.xlu0 %v1852, 9
      %v2272 = vpop.permute.xlu0 %2271
      %2273 = vrot.lane.b32.xlu0 %v1853, 9
      %v2274 = vpop.permute.xlu0 %2273
      %2275 = vrot.lane.b32.xlu0 %v1854, 9
      %v2276 = vpop.permute.xlu0 %2275
      %2277 = vrot.lane.b32.xlu0 %v1855, 9
      %v2278 = vpop.permute.xlu0 %2277
      %v2279 = vsel %vm644, %v2276, %v2278
      %v2280 = vsel %vm644, %v2274, %v2276
      %v2281 = vsel %vm644, %v2272, %v2274
      %v2282 = vsel %vm644, %v2278, %v2272
      %v2283 = vld [vmem:[%s649] ss:$8 sm:$0xf]
      %v2285 = vlaneseq
      %v2286 = vshrl.u32 %v2285, 7
      %v2287 = vsub.s32 0, %v2286
      %v2288 = vrot.slane %v2283, %v2287
      %v2289 = vlaneseq
      %v2290 = vshrl.u32 %v2289, 7
      %v2291 = vsub.s32 1, %v2290
      %v2292 = vrot.slane %v2283, %v2291
      %v2293 = vlaneseq
      %v2294 = vshrl.u32 %v2293, 7
      %v2295 = vsub.s32 2, %v2294
      %v2296 = vrot.slane %v2283, %v2295
      %v2297 = vlaneseq
      %v2298 = vshrl.u32 %v2297, 7
      %v2299 = vsub.s32 3, %v2298
      %v2300 = vrot.slane %v2283, %v2299
      %v2305 = vmul.f32 %v2282, %v2288
      %v2306 = vmul.f32 %v2281, %v2292
      %v2307 = vmul.f32 %v2280, %v2296
      %v2308 = vmul.f32 %v2279, %v2300
      %2309 = vst [vmem:[%s676] sm:$0xff] %v2305
      %2310 = vst [vmem:[%s676 + $0x8] sm:$0xff] %v2306
      %2311 = vst [vmem:[%s676 + $0x10] sm:$0xff] %v2307
      %2312 = vst [vmem:[%s676 + $0x18] sm:$0xff] %v2308
      %2313 = vrot.lane.b32.xlu0 %v1852, 8
      %v2314 = vpop.permute.xlu0 %2313
      %2315 = vrot.lane.b32.xlu0 %v1853, 8
      %v2316 = vpop.permute.xlu0 %2315
      %2317 = vrot.lane.b32.xlu0 %v1854, 8
      %v2318 = vpop.permute.xlu0 %2317
      %2319 = vrot.lane.b32.xlu0 %v1855, 8
      %v2320 = vpop.permute.xlu0 %2319
      %v2321 = vsel %vm689, %v2318, %v2320
      %v2322 = vsel %vm689, %v2316, %v2318
      %v2323 = vsel %vm689, %v2314, %v2316
      %v2324 = vsel %vm689, %v2320, %v2314
      %v2325 = vld [vmem:[%s694] ss:$8 sm:$0xf]
      %v2327 = vlaneseq
      %v2328 = vshrl.u32 %v2327, 7
      %v2329 = vsub.s32 0, %v2328
      %v2330 = vrot.slane %v2325, %v2329
      %v2331 = vlaneseq
      %v2332 = vshrl.u32 %v2331, 7
      %v2333 = vsub.s32 1, %v2332
      %v2334 = vrot.slane %v2325, %v2333
      %v2335 = vlaneseq
      %v2336 = vshrl.u32 %v2335, 7
      %v2337 = vsub.s32 2, %v2336
      %v2338 = vrot.slane %v2325, %v2337
      %v2339 = vlaneseq
      %v2340 = vshrl.u32 %v2339, 7
      %v2341 = vsub.s32 3, %v2340
      %v2342 = vrot.slane %v2325, %v2341
      %v2347 = vmul.f32 %v2324, %v2330
      %v2348 = vmul.f32 %v2323, %v2334
      %v2349 = vmul.f32 %v2322, %v2338
      %v2350 = vmul.f32 %v2321, %v2342
      %2351 = vst [vmem:[%s676 + $0x20] sm:$0xff] %v2347
      %2352 = vst [vmem:[%s676 + $0x28] sm:$0xff] %v2348
      %2353 = vst [vmem:[%s676 + $0x30] sm:$0xff] %v2349
      %2354 = vst [vmem:[%s676 + $0x38] sm:$0xff] %v2350
      %2355 = vrot.lane.b32.xlu0 %v1852, 7
      %v2356 = vpop.permute.xlu0 %2355
      %2357 = vrot.lane.b32.xlu0 %v1853, 7
      %v2358 = vpop.permute.xlu0 %2357
      %2359 = vrot.lane.b32.xlu0 %v1854, 7
      %v2360 = vpop.permute.xlu0 %2359
      %2361 = vrot.lane.b32.xlu0 %v1855, 7
      %v2362 = vpop.permute.xlu0 %2361
      %v2363 = vsel %vm733, %v2360, %v2362
      %v2364 = vsel %vm733, %v2358, %v2360
      %v2365 = vsel %vm733, %v2356, %v2358
      %v2366 = vsel %vm733, %v2362, %v2356
      %v2367 = vld [vmem:[%s738] ss:$8 sm:$0xf]
      %v2369 = vlaneseq
      %v2370 = vshrl.u32 %v2369, 7
      %v2371 = vsub.s32 0, %v2370
      %v2372 = vrot.slane %v2367, %v2371
      %v2373 = vlaneseq
      %v2374 = vshrl.u32 %v2373, 7
      %v2375 = vsub.s32 1, %v2374
      %v2376 = vrot.slane %v2367, %v2375
      %v2377 = vlaneseq
      %v2378 = vshrl.u32 %v2377, 7
      %v2379 = vsub.s32 2, %v2378
      %v2380 = vrot.slane %v2367, %v2379
      %v2381 = vlaneseq
      %v2382 = vshrl.u32 %v2381, 7
      %v2383 = vsub.s32 3, %v2382
      %v2384 = vrot.slane %v2367, %v2383
      %v2389 = vmul.f32 %v2366, %v2372
      %v2390 = vmul.f32 %v2365, %v2376
      %v2391 = vmul.f32 %v2364, %v2380
      %v2392 = vmul.f32 %v2363, %v2384
      %2393 = vst [vmem:[%s676 + $0x40] sm:$0xff] %v2389
      %2394 = vst [vmem:[%s676 + $0x48] sm:$0xff] %v2390
      %2395 = vst [vmem:[%s676 + $0x50] sm:$0xff] %v2391
      %2396 = vst [vmem:[%s676 + $0x58] sm:$0xff] %v2392
      %2397 = vrot.lane.b32.xlu0 %v1852, 1
      %v2398 = vpop.permute.xlu0 %2397
      %2399 = vrot.lane.b32.xlu0 %v1853, 1
      %v2400 = vpop.permute.xlu0 %2399
      %2401 = vrot.lane.b32.xlu0 %v1854, 1
      %v2402 = vpop.permute.xlu0 %2401
      %2403 = vrot.lane.b32.xlu0 %v1855, 1
      %v2404 = vpop.permute.xlu0 %2403
      %v2405 = vsel %vm777, %v2402, %v2404
      %v2406 = vsel %vm777, %v2400, %v2402
      %v2407 = vsel %vm777, %v2398, %v2400
      %v2408 = vsel %vm777, %v2404, %v2398
      %v2409 = vld [vmem:[%s782] ss:$8 sm:$0xf]
      %v2411 = vlaneseq
      %v2412 = vshrl.u32 %v2411, 7
      %v2413 = vsub.s32 0, %v2412
      %v2414 = vrot.slane %v2409, %v2413
      %v2415 = vlaneseq
      %v2416 = vshrl.u32 %v2415, 7
      %v2417 = vsub.s32 1, %v2416
      %v2418 = vrot.slane %v2409, %v2417
      %v2419 = vlaneseq
      %v2420 = vshrl.u32 %v2419, 7
      %v2421 = vsub.s32 2, %v2420
      %v2422 = vrot.slane %v2409, %v2421
      %v2423 = vlaneseq
      %v2424 = vshrl.u32 %v2423, 7
      %v2425 = vsub.s32 3, %v2424
      %v2426 = vrot.slane %v2409, %v2425
      %v2431 = vmul.f32 %v2408, %v2414
      %v2432 = vmul.f32 %v2407, %v2418
      %v2433 = vmul.f32 %v2406, %v2422
      %v2434 = vmul.f32 %v2405, %v2426
      %2435 = vst [vmem:[%s676 + $0x60] sm:$0xff] %v2431
      %2436 = vst [vmem:[%s676 + $0x68] sm:$0xff] %v2432
      %2437 = vst [vmem:[%s676 + $0x70] sm:$0xff] %v2433
      %2438 = vst [vmem:[%s676 + $0x78] sm:$0xff] %v2434
      %v2439 = vld [vmem:[%s813] ss:$8 sm:$0xf]
      %v2441 = vlaneseq
      %v2442 = vshrl.u32 %v2441, 7
      %v2443 = vsub.s32 0, %v2442
      %v2444 = vrot.slane %v2439, %v2443
      %v2445 = vlaneseq
      %v2446 = vshrl.u32 %v2445, 7
      %v2447 = vsub.s32 1, %v2446
      %v2448 = vrot.slane %v2439, %v2447
      %v2449 = vlaneseq
      %v2450 = vshrl.u32 %v2449, 7
      %v2451 = vsub.s32 2, %v2450
      %v2452 = vrot.slane %v2439, %v2451
      %v2453 = vlaneseq
      %v2454 = vshrl.u32 %v2453, 7
      %v2455 = vsub.s32 3, %v2454
      %v2456 = vrot.slane %v2439, %v2455
      %v2461 = vmul.f32 %v1852, %v2444
      %v2462 = vmul.f32 %v1853, %v2448
      %v2463 = vmul.f32 %v1854, %v2452
      %v2464 = vmul.f32 %v1855, %v2456
      %2465 = vst [vmem:[%s676 + $0x80] sm:$0xff] %v2461
      %2466 = vst [vmem:[%s676 + $0x88] sm:$0xff] %v2462
      %2467 = vst [vmem:[%s676 + $0x90] sm:$0xff] %v2463
      %2468 = vst [vmem:[%s676 + $0x98] sm:$0xff] %v2464
      %2469 = vrot.lane.b32.xlu0 %v1852, 127
      %v2470 = vpop.permute.xlu0 %2469
      %2471 = vrot.lane.b32.xlu0 %v1853, 127
      %v2472 = vpop.permute.xlu0 %2471
      %2473 = vrot.lane.b32.xlu0 %v1854, 127
      %v2474 = vpop.permute.xlu0 %2473
      %2475 = vrot.lane.b32.xlu0 %v1855, 127
      %v2476 = vpop.permute.xlu0 %2475
      %v2477 = vsel %vm852, %v2474, %v2476
      %v2478 = vsel %vm852, %v2472, %v2474
      %v2479 = vsel %vm852, %v2470, %v2472
      %v2480 = vsel %vm852, %v2476, %v2470
      %v2481 = vld [vmem:[%s857] ss:$8 sm:$0xf]
      %v2483 = vlaneseq
      %v2484 = vshrl.u32 %v2483, 7
      %v2485 = vsub.s32 0, %v2484
      %v2486 = vrot.slane %v2481, %v2485
      %v2487 = vlaneseq
      %v2488 = vshrl.u32 %v2487, 7
      %v2489 = vsub.s32 1, %v2488
      %v2490 = vrot.slane %v2481, %v2489
      %v2491 = vlaneseq
      %v2492 = vshrl.u32 %v2491, 7
      %v2493 = vsub.s32 2, %v2492
      %v2494 = vrot.slane %v2481, %v2493
      %v2495 = vlaneseq
      %v2496 = vshrl.u32 %v2495, 7
      %v2497 = vsub.s32 3, %v2496
      %v2498 = vrot.slane %v2481, %v2497
      %v2503 = vmul.f32 %v2479, %v2486
      %v2504 = vmul.f32 %v2478, %v2490
      %v2505 = vmul.f32 %v2477, %v2494
      %v2506 = vmul.f32 %v2480, %v2498
      %2507 = vst [vmem:[%s676 + $0xa0] sm:$0xff] %v2503
      %2508 = vst [vmem:[%s676 + $0xa8] sm:$0xff] %v2504
      %2509 = vst [vmem:[%s676 + $0xb0] sm:$0xff] %v2505
      %2510 = vst [vmem:[%s676 + $0xb8] sm:$0xff] %v2506
      %2511 = vrot.lane.b32.xlu0 %v1852, 121
      %v2512 = vpop.permute.xlu0 %2511
      %2513 = vrot.lane.b32.xlu0 %v1853, 121
      %v2514 = vpop.permute.xlu0 %2513
      %2515 = vrot.lane.b32.xlu0 %v1854, 121
      %v2516 = vpop.permute.xlu0 %2515
      %2517 = vrot.lane.b32.xlu0 %v1855, 121
      %v2518 = vpop.permute.xlu0 %2517
      %v2519 = vsel %vm896, %v2516, %v2518
      %v2520 = vsel %vm896, %v2514, %v2516
      %v2521 = vsel %vm896, %v2512, %v2514
      %v2522 = vsel %vm896, %v2518, %v2512
      %v2523 = vld [vmem:[%s901] ss:$8 sm:$0xf]
      %v2525 = vlaneseq
      %v2526 = vshrl.u32 %v2525, 7
      %v2527 = vsub.s32 0, %v2526
      %v2528 = vrot.slane %v2523, %v2527
      %v2529 = vlaneseq
      %v2530 = vshrl.u32 %v2529, 7
      %v2531 = vsub.s32 1, %v2530
      %v2532 = vrot.slane %v2523, %v2531
      %v2533 = vlaneseq
      %v2534 = vshrl.u32 %v2533, 7
      %v2535 = vsub.s32 2, %v2534
      %v2536 = vrot.slane %v2523, %v2535
      %v2537 = vlaneseq
      %v2538 = vshrl.u32 %v2537, 7
      %v2539 = vsub.s32 3, %v2538
      %v2540 = vrot.slane %v2523, %v2539
      %v2545 = vmul.f32 %v2521, %v2528
      %v2546 = vmul.f32 %v2520, %v2532
      %v2547 = vmul.f32 %v2519, %v2536
      %v2548 = vmul.f32 %v2522, %v2540
      %2549 = vst [vmem:[%s676 + $0xc0] sm:$0xff] %v2545
      %2550 = vst [vmem:[%s676 + $0xc8] sm:$0xff] %v2546
      %2551 = vst [vmem:[%s676 + $0xd0] sm:$0xff] %v2547
      %2552 = vst [vmem:[%s676 + $0xd8] sm:$0xff] %v2548
      %2553 = vrot.lane.b32.xlu0 %v1852, 120
      %v2554 = vpop.permute.xlu0 %2553
      %2555 = vrot.lane.b32.xlu0 %v1853, 120
      %v2556 = vpop.permute.xlu0 %2555
      %2557 = vrot.lane.b32.xlu0 %v1854, 120
      %v2558 = vpop.permute.xlu0 %2557
      %2559 = vrot.lane.b32.xlu0 %v1855, 120
      %v2560 = vpop.permute.xlu0 %2559
      %v2561 = vsel %vm940, %v2558, %v2560
      %v2562 = vsel %vm940, %v2556, %v2558
      %v2563 = vsel %vm940, %v2554, %v2556
      %v2564 = vsel %vm940, %v2560, %v2554
      %v2565 = vld [vmem:[%s945] ss:$8 sm:$0xf]
      %v2567 = vlaneseq
      %v2568 = vshrl.u32 %v2567, 7
      %v2569 = vsub.s32 0, %v2568
      %v2570 = vrot.slane %v2565, %v2569
      %v2571 = vlaneseq
      %v2572 = vshrl.u32 %v2571, 7
      %v2573 = vsub.s32 1, %v2572
      %v2574 = vrot.slane %v2565, %v2573
      %v2575 = vlaneseq
      %v2576 = vshrl.u32 %v2575, 7
      %v2577 = vsub.s32 2, %v2576
      %v2578 = vrot.slane %v2565, %v2577
      %v2579 = vlaneseq
      %v2580 = vshrl.u32 %v2579, 7
      %v2581 = vsub.s32 3, %v2580
      %v2582 = vrot.slane %v2565, %v2581
      %v2587 = vmul.f32 %v2563, %v2570
      %v2588 = vmul.f32 %v2562, %v2574
      %v2589 = vmul.f32 %v2561, %v2578
      %v2590 = vmul.f32 %v2564, %v2582
      %2591 = vst [vmem:[%s676 + $0xe0] sm:$0xff] %v2587
      %2592 = vst [vmem:[%s676 + $0xe8] sm:$0xff] %v2588
      %2593 = vst [vmem:[%s676 + $0xf0] sm:$0xff] %v2589
      %2594 = vst [vmem:[%s676 + $0xf8] sm:$0xff] %v2590
      %2595 = vrot.lane.b32.xlu0 %v1852, 119
      %v2596 = vpop.permute.xlu0 %2595
      %2597 = vrot.lane.b32.xlu0 %v1853, 119
      %v2598 = vpop.permute.xlu0 %2597
      %2599 = vrot.lane.b32.xlu0 %v1854, 119
      %v2600 = vpop.permute.xlu0 %2599
      %2601 = vrot.lane.b32.xlu0 %v1855, 119
      %v2602 = vpop.permute.xlu0 %2601
      %v2603 = vsel %vm984, %v2600, %v2602
      %v2604 = vsel %vm984, %v2598, %v2600
      %v2605 = vsel %vm984, %v2596, %v2598
      %v2606 = vsel %vm984, %v2602, %v2596
      %v2607 = vld [vmem:[%s989] ss:$8 sm:$0xf]
      %v2609 = vlaneseq
      %v2610 = vshrl.u32 %v2609, 7
      %v2611 = vsub.s32 0, %v2610
      %v2612 = vrot.slane %v2607, %v2611
      %v2613 = vlaneseq
      %v2614 = vshrl.u32 %v2613, 7
      %v2615 = vsub.s32 1, %v2614
      %v2616 = vrot.slane %v2607, %v2615
      %v2617 = vlaneseq
      %v2618 = vshrl.u32 %v2617, 7
      %v2619 = vsub.s32 2, %v2618
      %v2620 = vrot.slane %v2607, %v2619
      %v2621 = vlaneseq
      %v2622 = vshrl.u32 %v2621, 7
      %v2623 = vsub.s32 3, %v2622
      %v2624 = vrot.slane %v2607, %v2623
      %v2629 = vmul.f32 %v2605, %v2612
      %v2630 = vmul.f32 %v2604, %v2616
      %v2631 = vmul.f32 %v2603, %v2620
      %v2632 = vmul.f32 %v2606, %v2624
      %2633 = vst [vmem:[%s676 + $0x100] sm:$0xff] %v2629
      %2634 = vst [vmem:[%s676 + $0x108] sm:$0xff] %v2630
      %2635 = vst [vmem:[%s676 + $0x110] sm:$0xff] %v2631
      %2636 = vst [vmem:[%s676 + $0x118] sm:$0xff] %v2632
      %s2637 = scalar_lea.vmem %s3, 8
      %v2638 = vld [vmem:[%s2637] sm:$0xff]
      %v2639 = vld [vmem:[%s676] sm:$0xff]
      %v2640 = vld [vmem:[%s676 + $0x8] sm:$0xff]
      %v2641 = vld [vmem:[%s676 + $0x10] sm:$0xff]
      %v2642 = vld [vmem:[%s676 + $0x18] sm:$0xff]
      %v2643 = vld [vmem:[%s676 + $0x20] sm:$0xff]
      %v2644 = vld [vmem:[%s676 + $0x28] sm:$0xff]
      %v2645 = vld [vmem:[%s676 + $0x30] sm:$0xff]
      %v2646 = vld [vmem:[%s676 + $0x38] sm:$0xff]
      %v2647 = vld [vmem:[%s676 + $0x40] sm:$0xff]
      %v2648 = vld [vmem:[%s676 + $0x48] sm:$0xff]
      %v2649 = vld [vmem:[%s676 + $0x50] sm:$0xff]
      %v2650 = vld [vmem:[%s676 + $0x58] sm:$0xff]
      %v2651 = vld [vmem:[%s676 + $0x60] sm:$0xff]
      %v2652 = vld [vmem:[%s676 + $0x68] sm:$0xff]
      %v2653 = vld [vmem:[%s676 + $0x70] sm:$0xff]
      %v2654 = vld [vmem:[%s676 + $0x78] sm:$0xff]
      %v2655 = vld [vmem:[%s676 + $0x80] sm:$0xff]
      %v2656 = vld [vmem:[%s676 + $0x88] sm:$0xff]
      %v2657 = vld [vmem:[%s676 + $0x90] sm:$0xff]
      %v2658 = vld [vmem:[%s676 + $0x98] sm:$0xff]
      %v2659 = vld [vmem:[%s676 + $0xa0] sm:$0xff]
      %v2660 = vld [vmem:[%s676 + $0xa8] sm:$0xff]
      %v2661 = vld [vmem:[%s676 + $0xb0] sm:$0xff]
      %v2662 = vld [vmem:[%s676 + $0xb8] sm:$0xff]
      %v2663 = vld [vmem:[%s676 + $0xc0] sm:$0xff]
      %v2664 = vld [vmem:[%s676 + $0xc8] sm:$0xff]
      %v2665 = vld [vmem:[%s676 + $0xd0] sm:$0xff]
      %v2666 = vld [vmem:[%s676 + $0xd8] sm:$0xff]
      %v2667 = vld [vmem:[%s676 + $0xe0] sm:$0xff]
      %v2668 = vld [vmem:[%s676 + $0xe8] sm:$0xff]
      %v2669 = vld [vmem:[%s676 + $0xf0] sm:$0xff]
      %v2670 = vld [vmem:[%s676 + $0xf8] sm:$0xff]
      %v2671 = vld [vmem:[%s676 + $0x100] sm:$0xff]
      %v2672 = vld [vmem:[%s676 + $0x108] sm:$0xff]
      %v2673 = vld [vmem:[%s676 + $0x110] sm:$0xff]
      %v2674 = vld [vmem:[%s676 + $0x118] sm:$0xff]
      %v2676 = vsel %vm1058, %v2638, 0
      %2678 = vmatprep.subr.mxu0 %v2640
      %2679 = vmatpush1.msra.mxu0 %v2639
      %2680 = vmatprep.subr.mxu0 %v2644
      %2681 = vmatpush1.msra.mxu0 %v2643
      %2682 = vmatprep.subr.mxu0 %v2648
      %2683 = vmatpush1.msra.mxu0 %v2647
      %2684 = vmatprep.subr.mxu0 %v2652
      %2685 = vmatpush1.msra.mxu0 %v2651
      %2686 = vmatprep.subr.mxu0 %v2656
      %2687 = vmatpush1.msra.mxu0 %v2655
      %2688 = vmatprep.subr.mxu0 %v2660
      %2689 = vmatpush1.msra.mxu0 %v2659
      %2690 = vmatprep.subr.mxu0 %v2664
      %2691 = vmatpush1.msra.mxu0 %v2663
      %2692 = vmatprep.subr.mxu0 %v2668
      %2693 = vmatpush1.msra.mxu0 %v2667
      %2694 = vmatprep.subr.mxu0 %v2672
      %2695 = vmatpush1.msra.mxu0 %v2671
      %2696 = vmatprep.subr.mxu0 0.0
      %2697 = vmatpush1.msra.mxu0 0.0
      %2698 = vmatprep.subr.mxu0 0.0
      %2699 = vmatpush1.msra.mxu0 0.0
      %2700 = vmatprep.subr.mxu0 0.0
      %2701 = vmatpush1.msra.mxu0 0.0
      %2702 = vmatprep.subr.mxu0 0.0
      %2703 = vmatpush1.msra.mxu0 0.0
      %2704 = vmatprep.subr.mxu0 0.0
      %2705 = vmatpush1.msra.mxu0 0.0
      %2706 = vmatprep.subr.mxu0 0.0
      %2707 = vmatpush1.msra.mxu0 0.0
      %2708 = vmatprep.subr.mxu0 0.0
      %2709 = vmatpush1.msra.mxu0 0.0
      %2710 = vmatprep.subr.mxu0 0.0
      %2711 = vmatpush1.msra.mxu0 0.0
      %2712 = vmatprep.subr.mxu0 0.0
      %2713 = vmatpush1.msra.mxu0 0.0
      %2714 = vmatprep.subr.mxu0 0.0
      %2715 = vmatpush1.msra.mxu0 0.0
      %2716 = vmatprep.subr.mxu0 0.0
      %2717 = vmatpush1.msra.mxu0 0.0
      %2718 = vmatprep.subr.mxu0 0.0
      %2719 = vmatpush1.msra.mxu0 0.0
      %2720 = vmatprep.subr.mxu0 0.0
      %2721 = vmatpush1.msra.mxu0 0.0
      %2722 = vmatprep.subr.mxu0 0.0
      %2723 = vmatpush1.msra.mxu0 0.0
      %2724 = vmatprep.subr.mxu0 0.0
      %2725 = vmatpush1.msra.mxu0 0.0
      %2726 = vmatprep.subr.mxu0 0.0
      %2727 = vmatpush1.msra.mxu0 0.0
      %2728 = vmatprep.subr.mxu0 0.0
      %2729 = vmatpush1.msra.mxu0 0.0
      %2730 = vmatprep.subr.mxu0 0.0
      %2731 = vmatpush1.msra.mxu0 0.0
      %2732 = vmatprep.subr.mxu0 0.0
      %2733 = vmatpush1.msra.mxu0 0.0
      %2734 = vmatprep.subr.mxu0 0.0
      %2735 = vmatpush1.msra.mxu0 0.0
      %2736 = vmatprep.subr.mxu0 0.0
      %2737 = vmatpush1.msra.mxu0 0.0
      %2738 = vmatprep.subr.mxu0 0.0
      %2739 = vmatpush1.msra.mxu0 0.0
      %2740 = vmatprep.subr.mxu0 0.0
      %2741 = vmatpush1.msra.mxu0 0.0
      %2742 = vmatprep.mubr.f32.mxu0 0.0
      %2743 = vmatmul.mubr.f32.gmra.mrb[0].mxu0 %v2676
      %v2744 = vpop.f32.mrb[0].mxu0
      %v2745 = vadd.f32 0.0, %v2744
      %v2746 = vpop.f32.mrb[0].mxu0
      %v2747 = vadd.f32 0.0, %v2746
      %2748 = vdwg.mxu0
      %2749 = vmatprep.subr.mxu0 %v2642
      %2750 = vmatpush1.msra.mxu0 %v2641
      %2751 = vmatprep.subr.mxu0 %v2646
      %2752 = vmatpush1.msra.mxu0 %v2645
      %2753 = vmatprep.subr.mxu0 %v2650
      %2754 = vmatpush1.msra.mxu0 %v2649
      %2755 = vmatprep.subr.mxu0 %v2654
      %2756 = vmatpush1.msra.mxu0 %v2653
      %2757 = vmatprep.subr.mxu0 %v2658
      %2758 = vmatpush1.msra.mxu0 %v2657
      %2759 = vmatprep.subr.mxu0 %v2662
      %2760 = vmatpush1.msra.mxu0 %v2661
      %2761 = vmatprep.subr.mxu0 %v2666
      %2762 = vmatpush1.msra.mxu0 %v2665
      %2763 = vmatprep.subr.mxu0 %v2670
      %2764 = vmatpush1.msra.mxu0 %v2669
      %2765 = vmatprep.subr.mxu0 %v2674
      %2766 = vmatpush1.msra.mxu0 %v2673
      %2767 = vmatprep.subr.mxu0 0.0
      %2768 = vmatpush1.msra.mxu0 0.0
      %2769 = vmatprep.subr.mxu0 0.0
      %2770 = vmatpush1.msra.mxu0 0.0
      %2771 = vmatprep.subr.mxu0 0.0
      %2772 = vmatpush1.msra.mxu0 0.0
      %2773 = vmatprep.subr.mxu0 0.0
      %2774 = vmatpush1.msra.mxu0 0.0
      %2775 = vmatprep.subr.mxu0 0.0
      %2776 = vmatpush1.msra.mxu0 0.0
      %2777 = vmatprep.subr.mxu0 0.0
      %2778 = vmatpush1.msra.mxu0 0.0
      %2779 = vmatprep.subr.mxu0 0.0
      %2780 = vmatpush1.msra.mxu0 0.0
      %2781 = vmatprep.subr.mxu0 0.0
      %2782 = vmatpush1.msra.mxu0 0.0
      %2783 = vmatprep.subr.mxu0 0.0
      %2784 = vmatpush1.msra.mxu0 0.0
      %2785 = vmatprep.subr.mxu0 0.0
      %2786 = vmatpush1.msra.mxu0 0.0
      %2787 = vmatprep.subr.mxu0 0.0
      %2788 = vmatpush1.msra.mxu0 0.0
      %2789 = vmatprep.subr.mxu0 0.0
      %2790 = vmatpush1.msra.mxu0 0.0
      %2791 = vmatprep.subr.mxu0 0.0
      %2792 = vmatpush1.msra.mxu0 0.0
      %2793 = vmatprep.subr.mxu0 0.0
      %2794 = vmatpush1.msra.mxu0 0.0
      %2795 = vmatprep.subr.mxu0 0.0
      %2796 = vmatpush1.msra.mxu0 0.0
      %2797 = vmatprep.subr.mxu0 0.0
      %2798 = vmatpush1.msra.mxu0 0.0
      %2799 = vmatprep.subr.mxu0 0.0
      %2800 = vmatpush1.msra.mxu0 0.0
      %2801 = vmatprep.subr.mxu0 0.0
      %2802 = vmatpush1.msra.mxu0 0.0
      %2803 = vmatprep.subr.mxu0 0.0
      %2804 = vmatpush1.msra.mxu0 0.0
      %2805 = vmatprep.subr.mxu0 0.0
      %2806 = vmatpush1.msra.mxu0 0.0
      %2807 = vmatprep.subr.mxu0 0.0
      %2808 = vmatpush1.msra.mxu0 0.0
      %2809 = vmatprep.subr.mxu0 0.0
      %2810 = vmatpush1.msra.mxu0 0.0
      %2811 = vmatprep.subr.mxu0 0.0
      %2812 = vmatpush1.msra.mxu0 0.0
      %2813 = vmatprep.mubr.f32.mxu0 0.0
      %2814 = vmatmul.mubr.f32.gmra.mrb[0].mxu0 %v2676
      %v2815 = vpop.f32.mrb[0].mxu0
      %v2816 = vadd.f32 0.0, %v2815
      %v2817 = vpop.f32.mrb[0].mxu0
      %v2818 = vadd.f32 0.0, %v2817
      %2819 = vdwg.mxu0
      %v2821 = vsel %vm1058, %v2234, 0
      %2823 = vmatprep.subr.mxu0 %v2236
      %2824 = vmatpush1.msra.mxu0 %v2235
      %2825 = vmatprep.subr.mxu0 %v2240
      %2826 = vmatpush1.msra.mxu0 %v2239
      %2827 = vmatprep.subr.mxu0 %v2244
      %2828 = vmatpush1.msra.mxu0 %v2243
      %2829 = vmatprep.subr.mxu0 %v2248
      %2830 = vmatpush1.msra.mxu0 %v2247
      %2831 = vmatprep.subr.mxu0 %v2252
      %2832 = vmatpush1.msra.mxu0 %v2251
      %2833 = vmatprep.subr.mxu0 %v2256
      %2834 = vmatpush1.msra.mxu0 %v2255
      %2835 = vmatprep.subr.mxu0 %v2260
      %2836 = vmatpush1.msra.mxu0 %v2259
      %2837 = vmatprep.subr.mxu0 %v2264
      %2838 = vmatpush1.msra.mxu0 %v2263
      %2839 = vmatprep.subr.mxu0 %v2268
      %2840 = vmatpush1.msra.mxu0 %v2267
      %2841 = vmatprep.subr.mxu0 0.0
      %2842 = vmatpush1.msra.mxu0 0.0
      %2843 = vmatprep.subr.mxu0 0.0
      %2844 = vmatpush1.msra.mxu0 0.0
      %2845 = vmatprep.subr.mxu0 0.0
      %2846 = vmatpush1.msra.mxu0 0.0
      %2847 = vmatprep.subr.mxu0 0.0
      %2848 = vmatpush1.msra.mxu0 0.0
      %2849 = vmatprep.subr.mxu0 0.0
      %2850 = vmatpush1.msra.mxu0 0.0
      %2851 = vmatprep.subr.mxu0 0.0
      %2852 = vmatpush1.msra.mxu0 0.0
      %2853 = vmatprep.subr.mxu0 0.0
      %2854 = vmatpush1.msra.mxu0 0.0
      %2855 = vmatprep.subr.mxu0 0.0
      %2856 = vmatpush1.msra.mxu0 0.0
      %2857 = vmatprep.subr.mxu0 0.0
      %2858 = vmatpush1.msra.mxu0 0.0
      %2859 = vmatprep.subr.mxu0 0.0
      %2860 = vmatpush1.msra.mxu0 0.0
      %2861 = vmatprep.subr.mxu0 0.0
      %2862 = vmatpush1.msra.mxu0 0.0
      %2863 = vmatprep.subr.mxu0 0.0
      %2864 = vmatpush1.msra.mxu0 0.0
      %2865 = vmatprep.subr.mxu0 0.0
      %2866 = vmatpush1.msra.mxu0 0.0
      %2867 = vmatprep.subr.mxu0 0.0
      %2868 = vmatpush1.msra.mxu0 0.0
      %2869 = vmatprep.subr.mxu0 0.0
      %2870 = vmatpush1.msra.mxu0 0.0
      %2871 = vmatprep.subr.mxu0 0.0
      %2872 = vmatpush1.msra.mxu0 0.0
      %2873 = vmatprep.subr.mxu0 0.0
      %2874 = vmatpush1.msra.mxu0 0.0
      %2875 = vmatprep.subr.mxu0 0.0
      %2876 = vmatpush1.msra.mxu0 0.0
      %2877 = vmatprep.subr.mxu0 0.0
      %2878 = vmatpush1.msra.mxu0 0.0
      %2879 = vmatprep.subr.mxu0 0.0
      %2880 = vmatpush1.msra.mxu0 0.0
      %2881 = vmatprep.subr.mxu0 0.0
      %2882 = vmatpush1.msra.mxu0 0.0
      %2883 = vmatprep.subr.mxu0 0.0
      %2884 = vmatpush1.msra.mxu0 0.0
      %2885 = vmatprep.subr.mxu0 0.0
      %2886 = vmatpush1.msra.mxu0 0.0
      %2887 = vmatprep.mubr.f32.mxu0 0.0
      %2888 = vmatmul.mubr.f32.gmra.mrb[0].mxu0 %v2821
      %v2889 = vpop.f32.mrb[0].mxu0
      %v2890 = vadd.f32 %v2745, %v2889
      %v2891 = vpop.f32.mrb[0].mxu0
      %v2892 = vadd.f32 %v2747, %v2891
      %2893 = vdwg.mxu0
      %2894 = vmatprep.subr.mxu0 %v2238
      %2895 = vmatpush1.msra.mxu0 %v2237
      %2896 = vmatprep.subr.mxu0 %v2242
      %2897 = vmatpush1.msra.mxu0 %v2241
      %2898 = vmatprep.subr.mxu0 %v2246
      %2899 = vmatpush1.msra.mxu0 %v2245
      %2900 = vmatprep.subr.mxu0 %v2250
      %2901 = vmatpush1.msra.mxu0 %v2249
      %2902 = vmatprep.subr.mxu0 %v2254
      %2903 = vmatpush1.msra.mxu0 %v2253
      %2904 = vmatprep.subr.mxu0 %v2258
      %2905 = vmatpush1.msra.mxu0 %v2257
      %2906 = vmatprep.subr.mxu0 %v2262
      %2907 = vmatpush1.msra.mxu0 %v2261
      %2908 = vmatprep.subr.mxu0 %v2266
      %2909 = vmatpush1.msra.mxu0 %v2265
      %2910 = vmatprep.subr.mxu0 %v2270
      %2911 = vmatpush1.msra.mxu0 %v2269
      %2912 = vmatprep.subr.mxu0 0.0
      %2913 = vmatpush1.msra.mxu0 0.0
      %2914 = vmatprep.subr.mxu0 0.0
      %2915 = vmatpush1.msra.mxu0 0.0
      %2916 = vmatprep.subr.mxu0 0.0
      %2917 = vmatpush1.msra.mxu0 0.0
      %2918 = vmatprep.subr.mxu0 0.0
      %2919 = vmatpush1.msra.mxu0 0.0
      %2920 = vmatprep.subr.mxu0 0.0
      %2921 = vmatpush1.msra.mxu0 0.0
      %2922 = vmatprep.subr.mxu0 0.0
      %2923 = vmatpush1.msra.mxu0 0.0
      %2924 = vmatprep.subr.mxu0 0.0
      %2925 = vmatpush1.msra.mxu0 0.0
      %2926 = vmatprep.subr.mxu0 0.0
      %2927 = vmatpush1.msra.mxu0 0.0
      %2928 = vmatprep.subr.mxu0 0.0
      %2929 = vmatpush1.msra.mxu0 0.0
      %2930 = vmatprep.subr.mxu0 0.0
      %2931 = vmatpush1.msra.mxu0 0.0
      %2932 = vmatprep.subr.mxu0 0.0
      %2933 = vmatpush1.msra.mxu0 0.0
      %2934 = vmatprep.subr.mxu0 0.0
      %2935 = vmatpush1.msra.mxu0 0.0
      %2936 = vmatprep.subr.mxu0 0.0
      %2937 = vmatpush1.msra.mxu0 0.0
      %2938 = vmatprep.subr.mxu0 0.0
      %2939 = vmatpush1.msra.mxu0 0.0
      %2940 = vmatprep.subr.mxu0 0.0
      %2941 = vmatpush1.msra.mxu0 0.0
      %2942 = vmatprep.subr.mxu0 0.0
      %2943 = vmatpush1.msra.mxu0 0.0
      %2944 = vmatprep.subr.mxu0 0.0
      %2945 = vmatpush1.msra.mxu0 0.0
      %2946 = vmatprep.subr.mxu0 0.0
      %2947 = vmatpush1.msra.mxu0 0.0
      %2948 = vmatprep.subr.mxu0 0.0
      %2949 = vmatpush1.msra.mxu0 0.0
      %2950 = vmatprep.subr.mxu0 0.0
      %2951 = vmatpush1.msra.mxu0 0.0
      %2952 = vmatprep.subr.mxu0 0.0
      %2953 = vmatpush1.msra.mxu0 0.0
      %2954 = vmatprep.subr.mxu0 0.0
      %2955 = vmatpush1.msra.mxu0 0.0
      %2956 = vmatprep.subr.mxu0 0.0
      %2957 = vmatpush1.msra.mxu0 0.0
      %2958 = vmatprep.mubr.f32.mxu0 0.0
      %2959 = vmatmul.mubr.f32.gmra.mrb[0].mxu0 %v2821
      %v2960 = vpop.f32.mrb[0].mxu0
      %v2961 = vadd.f32 %v2816, %v2960
      %v2962 = vpop.f32.mrb[0].mxu0
      %v2963 = vadd.f32 %v2818, %v2962
      %2964 = vdwg.mxu0
      %v2965 = vld [vmem:[%s1349] ss:$8 sm:$0xf]
      %v2967 = vlaneseq
      %v2968 = vshrl.u32 %v2967, 7
      %v2969 = vsub.s32 0, %v2968
      %v2970 = vrot.slane %v2965, %v2969
      %v2971 = vlaneseq
      %v2972 = vshrl.u32 %v2971, 7
      %v2973 = vsub.s32 1, %v2972
      %v2974 = vrot.slane %v2965, %v2973
      %v2975 = vlaneseq
      %v2976 = vshrl.u32 %v2975, 7
      %v2977 = vsub.s32 2, %v2976
      %v2978 = vrot.slane %v2965, %v2977
      %v2979 = vlaneseq
      %v2980 = vshrl.u32 %v2979, 7
      %v2981 = vsub.s32 3, %v2980
      %v2982 = vrot.slane %v2965, %v2981
      %v2987 = vmul.f32 %v1866, %v2970
      %v2988 = vmul.f32 %v1865, %v2974
      %v2989 = vmul.f32 %v1864, %v2978
      %v2990 = vmul.f32 %v1867, %v2982
      %2991 = vst [vmem:[#allocation2] sm:$0xff] %v2987
      %2992 = vst [vmem:[#allocation2 + $0x8] sm:$0xff] %v2988
      %2993 = vst [vmem:[#allocation2 + $0x10] sm:$0xff] %v2989
      %2994 = vst [vmem:[#allocation2 + $0x18] sm:$0xff] %v2990
      %v2995 = vld [vmem:[%s1380] ss:$8 sm:$0xf]
      %v2997 = vlaneseq
      %v2998 = vshrl.u32 %v2997, 7
      %v2999 = vsub.s32 0, %v2998
      %v3000 = vrot.slane %v2995, %v2999
      %v3001 = vlaneseq
      %v3002 = vshrl.u32 %v3001, 7
      %v3003 = vsub.s32 1, %v3002
      %v3004 = vrot.slane %v2995, %v3003
      %v3005 = vlaneseq
      %v3006 = vshrl.u32 %v3005, 7
      %v3007 = vsub.s32 2, %v3006
      %v3008 = vrot.slane %v2995, %v3007
      %v3009 = vlaneseq
      %v3010 = vshrl.u32 %v3009, 7
      %v3011 = vsub.s32 3, %v3010
      %v3012 = vrot.slane %v2995, %v3011
      %v3017 = vmul.f32 %v1908, %v3000
      %v3018 = vmul.f32 %v1907, %v3004
      %v3019 = vmul.f32 %v1906, %v3008
      %v3020 = vmul.f32 %v1909, %v3012
      %3021 = vst [vmem:[#allocation2 + $0x20] sm:$0xff] %v3017
      %3022 = vst [vmem:[#allocation2 + $0x28] sm:$0xff] %v3018
      %3023 = vst [vmem:[#allocation2 + $0x30] sm:$0xff] %v3019
      %3024 = vst [vmem:[#allocation2 + $0x38] sm:$0xff] %v3020
      %v3025 = vld [vmem:[%s1411] ss:$8 sm:$0xf]
      %v3027 = vlaneseq
      %v3028 = vshrl.u32 %v3027, 7
      %v3029 = vsub.s32 0, %v3028
      %v3030 = vrot.slane %v3025, %v3029
      %v3031 = vlaneseq
      %v3032 = vshrl.u32 %v3031, 7
      %v3033 = vsub.s32 1, %v3032
      %v3034 = vrot.slane %v3025, %v3033
      %v3035 = vlaneseq
      %v3036 = vshrl.u32 %v3035, 7
      %v3037 = vsub.s32 2, %v3036
      %v3038 = vrot.slane %v3025, %v3037
      %v3039 = vlaneseq
      %v3040 = vshrl.u32 %v3039, 7
      %v3041 = vsub.s32 3, %v3040
      %v3042 = vrot.slane %v3025, %v3041
      %v3047 = vmul.f32 %v1950, %v3030
      %v3048 = vmul.f32 %v1949, %v3034
      %v3049 = vmul.f32 %v1948, %v3038
      %v3050 = vmul.f32 %v1951, %v3042
      %3051 = vst [vmem:[#allocation2 + $0x40] sm:$0xff] %v3047
      %3052 = vst [vmem:[#allocation2 + $0x48] sm:$0xff] %v3048
      %3053 = vst [vmem:[#allocation2 + $0x50] sm:$0xff] %v3049
      %3054 = vst [vmem:[#allocation2 + $0x58] sm:$0xff] %v3050
      %v3055 = vld [vmem:[%s1442] ss:$8 sm:$0xf]
      %v3057 = vlaneseq
      %v3058 = vshrl.u32 %v3057, 7
      %v3059 = vsub.s32 0, %v3058
      %v3060 = vrot.slane %v3055, %v3059
      %v3061 = vlaneseq
      %v3062 = vshrl.u32 %v3061, 7
      %v3063 = vsub.s32 1, %v3062
      %v3064 = vrot.slane %v3055, %v3063
      %v3065 = vlaneseq
      %v3066 = vshrl.u32 %v3065, 7
      %v3067 = vsub.s32 2, %v3066
      %v3068 = vrot.slane %v3055, %v3067
      %v3069 = vlaneseq
      %v3070 = vshrl.u32 %v3069, 7
      %v3071 = vsub.s32 3, %v3070
      %v3072 = vrot.slane %v3055, %v3071
      %v3077 = vmul.f32 %v1992, %v3060
      %v3078 = vmul.f32 %v1991, %v3064
      %v3079 = vmul.f32 %v1990, %v3068
      %v3080 = vmul.f32 %v1993, %v3072
      %3081 = vst [vmem:[#allocation2 + $0x60] sm:$0xff] %v3077
      %3082 = vst [vmem:[#allocation2 + $0x68] sm:$0xff] %v3078
      %3083 = vst [vmem:[#allocation2 + $0x70] sm:$0xff] %v3079
      %3084 = vst [vmem:[#allocation2 + $0x78] sm:$0xff] %v3080
      %v3085 = vld [vmem:[%s1473] ss:$8 sm:$0xf]
      %v3087 = vlaneseq
      %v3088 = vshrl.u32 %v3087, 7
      %v3089 = vsub.s32 0, %v3088
      %v3090 = vrot.slane %v3085, %v3089
      %v3091 = vlaneseq
      %v3092 = vshrl.u32 %v3091, 7
      %v3093 = vsub.s32 1, %v3092
      %v3094 = vrot.slane %v3085, %v3093
      %v3095 = vlaneseq
      %v3096 = vshrl.u32 %v3095, 7
      %v3097 = vsub.s32 2, %v3096
      %v3098 = vrot.slane %v3085, %v3097
      %v3099 = vlaneseq
      %v3100 = vshrl.u32 %v3099, 7
      %v3101 = vsub.s32 3, %v3100
      %v3102 = vrot.slane %v3085, %v3101
      %v3107 = vmul.f32 %v2034, %v3090
      %v3108 = vmul.f32 %v2033, %v3094
      %v3109 = vmul.f32 %v2032, %v3098
      %v3110 = vmul.f32 %v2035, %v3102
      %3111 = vst [vmem:[#allocation2 + $0x80] sm:$0xff] %v3107
      %3112 = vst [vmem:[#allocation2 + $0x88] sm:$0xff] %v3108
      %3113 = vst [vmem:[#allocation2 + $0x90] sm:$0xff] %v3109
      %3114 = vst [vmem:[#allocation2 + $0x98] sm:$0xff] %v3110
      %v3115 = vld [vmem:[%s1504] ss:$8 sm:$0xf]
      %v3117 = vlaneseq
      %v3118 = vshrl.u32 %v3117, 7
      %v3119 = vsub.s32 0, %v3118
      %v3120 = vrot.slane %v3115, %v3119
      %v3121 = vlaneseq
      %v3122 = vshrl.u32 %v3121, 7
      %v3123 = vsub.s32 1, %v3122
      %v3124 = vrot.slane %v3115, %v3123
      %v3125 = vlaneseq
      %v3126 = vshrl.u32 %v3125, 7
      %v3127 = vsub.s32 2, %v3126
      %v3128 = vrot.slane %v3115, %v3127
      %v3129 = vlaneseq
      %v3130 = vshrl.u32 %v3129, 7
      %v3131 = vsub.s32 3, %v3130
      %v3132 = vrot.slane %v3115, %v3131
      %v3137 = vmul.f32 %v2076, %v3120
      %v3138 = vmul.f32 %v2075, %v3124
      %v3139 = vmul.f32 %v2074, %v3128
      %v3140 = vmul.f32 %v2077, %v3132
      %3141 = vst [vmem:[#allocation2 + $0xa0] sm:$0xff] %v3137
      %3142 = vst [vmem:[#allocation2 + $0xa8] sm:$0xff] %v3138
      %3143 = vst [vmem:[#allocation2 + $0xb0] sm:$0xff] %v3139
      %3144 = vst [vmem:[#allocation2 + $0xb8] sm:$0xff] %v3140
      %v3145 = vld [vmem:[%s1535] ss:$8 sm:$0xf]
      %v3147 = vlaneseq
      %v3148 = vshrl.u32 %v3147, 7
      %v3149 = vsub.s32 0, %v3148
      %v3150 = vrot.slane %v3145, %v3149
      %v3151 = vlaneseq
      %v3152 = vshrl.u32 %v3151, 7
      %v3153 = vsub.s32 1, %v3152
      %v3154 = vrot.slane %v3145, %v3153
      %v3155 = vlaneseq
      %v3156 = vshrl.u32 %v3155, 7
      %v3157 = vsub.s32 2, %v3156
      %v3158 = vrot.slane %v3145, %v3157
      %v3159 = vlaneseq
      %v3160 = vshrl.u32 %v3159, 7
      %v3161 = vsub.s32 3, %v3160
      %v3162 = vrot.slane %v3145, %v3161
      %v3167 = vmul.f32 %v2118, %v3150
      %v3168 = vmul.f32 %v2117, %v3154
      %v3169 = vmul.f32 %v2116, %v3158
      %v3170 = vmul.f32 %v2119, %v3162
      %3171 = vst [vmem:[#allocation2 + $0xc0] sm:$0xff] %v3167
      %3172 = vst [vmem:[#allocation2 + $0xc8] sm:$0xff] %v3168
      %3173 = vst [vmem:[#allocation2 + $0xd0] sm:$0xff] %v3169
      %3174 = vst [vmem:[#allocation2 + $0xd8] sm:$0xff] %v3170
      %v3175 = vld [vmem:[%s1566] ss:$8 sm:$0xf]
      %v3177 = vlaneseq
      %v3178 = vshrl.u32 %v3177, 7
      %v3179 = vsub.s32 0, %v3178
      %v3180 = vrot.slane %v3175, %v3179
      %v3181 = vlaneseq
      %v3182 = vshrl.u32 %v3181, 7
      %v3183 = vsub.s32 1, %v3182
      %v3184 = vrot.slane %v3175, %v3183
      %v3185 = vlaneseq
      %v3186 = vshrl.u32 %v3185, 7
      %v3187 = vsub.s32 2, %v3186
      %v3188 = vrot.slane %v3175, %v3187
      %v3189 = vlaneseq
      %v3190 = vshrl.u32 %v3189, 7
      %v3191 = vsub.s32 3, %v3190
      %v3192 = vrot.slane %v3175, %v3191
      %v3197 = vmul.f32 %v2160, %v3180
      %v3198 = vmul.f32 %v2159, %v3184
      %v3199 = vmul.f32 %v2158, %v3188
      %v3200 = vmul.f32 %v2161, %v3192
      %3201 = vst [vmem:[#allocation2 + $0xe0] sm:$0xff] %v3197
      %3202 = vst [vmem:[#allocation2 + $0xe8] sm:$0xff] %v3198
      %3203 = vst [vmem:[#allocation2 + $0xf0] sm:$0xff] %v3199
      %3204 = vst [vmem:[#allocation2 + $0xf8] sm:$0xff] %v3200
      %v3205 = vld [vmem:[%s1597] ss:$8 sm:$0xf]
      %v3207 = vlaneseq
      %v3208 = vshrl.u32 %v3207, 7
      %v3209 = vsub.s32 0, %v3208
      %v3210 = vrot.slane %v3205, %v3209
      %v3211 = vlaneseq
      %v3212 = vshrl.u32 %v3211, 7
      %v3213 = vsub.s32 1, %v3212
      %v3214 = vrot.slane %v3205, %v3213
      %v3215 = vlaneseq
      %v3216 = vshrl.u32 %v3215, 7
      %v3217 = vsub.s32 2, %v3216
      %v3218 = vrot.slane %v3205, %v3217
      %v3219 = vlaneseq
      %v3220 = vshrl.u32 %v3219, 7
      %v3221 = vsub.s32 3, %v3220
      %v3222 = vrot.slane %v3205, %v3221
      %v3227 = vmul.f32 %v2202, %v3210
      %v3228 = vmul.f32 %v2201, %v3214
      %v3229 = vmul.f32 %v2200, %v3218
      %v3230 = vmul.f32 %v2203, %v3222
      %3231 = vst [vmem:[#allocation2 + $0x100] sm:$0xff] %v3227
      %3232 = vst [vmem:[#allocation2 + $0x108] sm:$0xff] %v3228
      %3233 = vst [vmem:[#allocation2 + $0x110] sm:$0xff] %v3229
      %3234 = vst [vmem:[#allocation2 + $0x118] sm:$0xff] %v3230
      %s3235 = scalar_lea.vmem %s3, 16
      %v3236 = vld [vmem:[%s3235] sm:$0xff]
      %v3237 = vld [vmem:[#allocation2] sm:$0xff]
      %v3238 = vld [vmem:[#allocation2 + $0x8] sm:$0xff]
      %v3239 = vld [vmem:[#allocation2 + $0x10] sm:$0xff]
      %v3240 = vld [vmem:[#allocation2 + $0x18] sm:$0xff]
      %v3241 = vld [vmem:[#allocation2 + $0x20] sm:$0xff]
      %v3242 = vld [vmem:[#allocation2 + $0x28] sm:$0xff]
      %v3243 = vld [vmem:[#allocation2 + $0x30] sm:$0xff]
      %v3244 = vld [vmem:[#allocation2 + $0x38] sm:$0xff]
      %v3245 = vld [vmem:[#allocation2 + $0x40] sm:$0xff]
      %v3246 = vld [vmem:[#allocation2 + $0x48] sm:$0xff]
      %v3247 = vld [vmem:[#allocation2 + $0x50] sm:$0xff]
      %v3248 = vld [vmem:[#allocation2 + $0x58] sm:$0xff]
      %v3249 = vld [vmem:[#allocation2 + $0x60] sm:$0xff]
      %v3250 = vld [vmem:[#allocation2 + $0x68] sm:$0xff]
      %v3251 = vld [vmem:[#allocation2 + $0x70] sm:$0xff]
      %v3252 = vld [vmem:[#allocation2 + $0x78] sm:$0xff]
      %v3253 = vld [vmem:[#allocation2 + $0x80] sm:$0xff]
      %v3254 = vld [vmem:[#allocation2 + $0x88] sm:$0xff]
      %v3255 = vld [vmem:[#allocation2 + $0x90] sm:$0xff]
      %v3256 = vld [vmem:[#allocation2 + $0x98] sm:$0xff]
      %v3257 = vld [vmem:[#allocation2 + $0xa0] sm:$0xff]
      %v3258 = vld [vmem:[#allocation2 + $0xa8] sm:$0xff]
      %v3259 = vld [vmem:[#allocation2 + $0xb0] sm:$0xff]
      %v3260 = vld [vmem:[#allocation2 + $0xb8] sm:$0xff]
      %v3261 = vld [vmem:[#allocation2 + $0xc0] sm:$0xff]
      %v3262 = vld [vmem:[#allocation2 + $0xc8] sm:$0xff]
      %v3263 = vld [vmem:[#allocation2 + $0xd0] sm:$0xff]
      %v3264 = vld [vmem:[#allocation2 + $0xd8] sm:$0xff]
      %v3265 = vld [vmem:[#allocation2 + $0xe0] sm:$0xff]
      %v3266 = vld [vmem:[#allocation2 + $0xe8] sm:$0xff]
      %v3267 = vld [vmem:[#allocation2 + $0xf0] sm:$0xff]
      %v3268 = vld [vmem:[#allocation2 + $0xf8] sm:$0xff]
      %v3269 = vld [vmem:[#allocation2 + $0x100] sm:$0xff]
      %v3270 = vld [vmem:[#allocation2 + $0x108] sm:$0xff]
      %v3271 = vld [vmem:[#allocation2 + $0x110] sm:$0xff]
      %v3272 = vld [vmem:[#allocation2 + $0x118] sm:$0xff]
      %v3274 = vsel %vm1058, %v3236, 0
      %3276 = vmatprep.subr.mxu0 %v3238
      %3277 = vmatpush1.msra.mxu0 %v3237
      %3278 = vmatprep.subr.mxu0 %v3242
      %3279 = vmatpush1.msra.mxu0 %v3241
      %3280 = vmatprep.subr.mxu0 %v3246
      %3281 = vmatpush1.msra.mxu0 %v3245
      %3282 = vmatprep.subr.mxu0 %v3250
      %3283 = vmatpush1.msra.mxu0 %v3249
      %3284 = vmatprep.subr.mxu0 %v3254
      %3285 = vmatpush1.msra.mxu0 %v3253
      %3286 = vmatprep.subr.mxu0 %v3258
      %3287 = vmatpush1.msra.mxu0 %v3257
      %3288 = vmatprep.subr.mxu0 %v3262
      %3289 = vmatpush1.msra.mxu0 %v3261
      %3290 = vmatprep.subr.mxu0 %v3266
      %3291 = vmatpush1.msra.mxu0 %v3265
      %3292 = vmatprep.subr.mxu0 %v3270
      %3293 = vmatpush1.msra.mxu0 %v3269
      %3294 = vmatprep.subr.mxu0 0.0
      %3295 = vmatpush1.msra.mxu0 0.0
      %3296 = vmatprep.subr.mxu0 0.0
      %3297 = vmatpush1.msra.mxu0 0.0
      %3298 = vmatprep.subr.mxu0 0.0
      %3299 = vmatpush1.msra.mxu0 0.0
      %3300 = vmatprep.subr.mxu0 0.0
      %3301 = vmatpush1.msra.mxu0 0.0
      %3302 = vmatprep.subr.mxu0 0.0
      %3303 = vmatpush1.msra.mxu0 0.0
      %3304 = vmatprep.subr.mxu0 0.0
      %3305 = vmatpush1.msra.mxu0 0.0
      %3306 = vmatprep.subr.mxu0 0.0
      %3307 = vmatpush1.msra.mxu0 0.0
      %3308 = vmatprep.subr.mxu0 0.0
      %3309 = vmatpush1.msra.mxu0 0.0
      %3310 = vmatprep.subr.mxu0 0.0
      %3311 = vmatpush1.msra.mxu0 0.0
      %3312 = vmatprep.subr.mxu0 0.0
      %3313 = vmatpush1.msra.mxu0 0.0
      %3314 = vmatprep.subr.mxu0 0.0
      %3315 = vmatpush1.msra.mxu0 0.0
      %3316 = vmatprep.subr.mxu0 0.0
      %3317 = vmatpush1.msra.mxu0 0.0
      %3318 = vmatprep.subr.mxu0 0.0
      %3319 = vmatpush1.msra.mxu0 0.0
      %3320 = vmatprep.subr.mxu0 0.0
      %3321 = vmatpush1.msra.mxu0 0.0
      %3322 = vmatprep.subr.mxu0 0.0
      %3323 = vmatpush1.msra.mxu0 0.0
      %3324 = vmatprep.subr.mxu0 0.0
      %3325 = vmatpush1.msra.mxu0 0.0
      %3326 = vmatprep.subr.mxu0 0.0
      %3327 = vmatpush1.msra.mxu0 0.0
      %3328 = vmatprep.subr.mxu0 0.0
      %3329 = vmatpush1.msra.mxu0 0.0
      %3330 = vmatprep.subr.mxu0 0.0
      %3331 = vmatpush1.msra.mxu0 0.0
      %3332 = vmatprep.subr.mxu0 0.0
      %3333 = vmatpush1.msra.mxu0 0.0
      %3334 = vmatprep.subr.mxu0 0.0
      %3335 = vmatpush1.msra.mxu0 0.0
      %3336 = vmatprep.subr.mxu0 0.0
      %3337 = vmatpush1.msra.mxu0 0.0
      %3338 = vmatprep.subr.mxu0 0.0
      %3339 = vmatpush1.msra.mxu0 0.0
      %3340 = vmatprep.mubr.f32.mxu0 0.0
      %3341 = vmatmul.mubr.f32.gmra.mrb[0].mxu0 %v3274
      %v3342 = vpop.f32.mrb[0].mxu0
      %v3343 = vadd.f32 0.0, %v3342
      %v3344 = vpop.f32.mrb[0].mxu0
      %v3345 = vadd.f32 0.0, %v3344
      %3346 = vdwg.mxu0
      %3347 = vmatprep.subr.mxu0 %v3240
      %3348 = vmatpush1.msra.mxu0 %v3239
      %3349 = vmatprep.subr.mxu0 %v3244
      %3350 = vmatpush1.msra.mxu0 %v3243
      %3351 = vmatprep.subr.mxu0 %v3248
      %3352 = vmatpush1.msra.mxu0 %v3247
      %3353 = vmatprep.subr.mxu0 %v3252
      %3354 = vmatpush1.msra.mxu0 %v3251
      %3355 = vmatprep.subr.mxu0 %v3256
      %3356 = vmatpush1.msra.mxu0 %v3255
      %3357 = vmatprep.subr.mxu0 %v3260
      %3358 = vmatpush1.msra.mxu0 %v3259
      %3359 = vmatprep.subr.mxu0 %v3264
      %3360 = vmatpush1.msra.mxu0 %v3263
      %3361 = vmatprep.subr.mxu0 %v3268
      %3362 = vmatpush1.msra.mxu0 %v3267
      %3363 = vmatprep.subr.mxu0 %v3272
      %3364 = vmatpush1.msra.mxu0 %v3271
      %3365 = vmatprep.subr.mxu0 0.0
      %3366 = vmatpush1.msra.mxu0 0.0
      %3367 = vmatprep.subr.mxu0 0.0
      %3368 = vmatpush1.msra.mxu0 0.0
      %3369 = vmatprep.subr.mxu0 0.0
      %3370 = vmatpush1.msra.mxu0 0.0
      %3371 = vmatprep.subr.mxu0 0.0
      %3372 = vmatpush1.msra.mxu0 0.0
      %3373 = vmatprep.subr.mxu0 0.0
      %3374 = vmatpush1.msra.mxu0 0.0
      %3375 = vmatprep.subr.mxu0 0.0
      %3376 = vmatpush1.msra.mxu0 0.0
      %3377 = vmatprep.subr.mxu0 0.0
      %3378 = vmatpush1.msra.mxu0 0.0
      %3379 = vmatprep.subr.mxu0 0.0
      %3380 = vmatpush1.msra.mxu0 0.0
      %3381 = vmatprep.subr.mxu0 0.0
      %3382 = vmatpush1.msra.mxu0 0.0
      %3383 = vmatprep.subr.mxu0 0.0
      %3384 = vmatpush1.msra.mxu0 0.0
      %3385 = vmatprep.subr.mxu0 0.0
      %3386 = vmatpush1.msra.mxu0 0.0
      %3387 = vmatprep.subr.mxu0 0.0
      %3388 = vmatpush1.msra.mxu0 0.0
      %3389 = vmatprep.subr.mxu0 0.0
      %3390 = vmatpush1.msra.mxu0 0.0
      %3391 = vmatprep.subr.mxu0 0.0
      %3392 = vmatpush1.msra.mxu0 0.0
      %3393 = vmatprep.subr.mxu0 0.0
      %3394 = vmatpush1.msra.mxu0 0.0
      %3395 = vmatprep.subr.mxu0 0.0
      %3396 = vmatpush1.msra.mxu0 0.0
      %3397 = vmatprep.subr.mxu0 0.0
      %3398 = vmatpush1.msra.mxu0 0.0
      %3399 = vmatprep.subr.mxu0 0.0
      %3400 = vmatpush1.msra.mxu0 0.0
      %3401 = vmatprep.subr.mxu0 0.0
      %3402 = vmatpush1.msra.mxu0 0.0
      %3403 = vmatprep.subr.mxu0 0.0
      %3404 = vmatpush1.msra.mxu0 0.0
      %3405 = vmatprep.subr.mxu0 0.0
      %3406 = vmatpush1.msra.mxu0 0.0
      %3407 = vmatprep.subr.mxu0 0.0
      %3408 = vmatpush1.msra.mxu0 0.0
      %3409 = vmatprep.subr.mxu0 0.0
      %3410 = vmatpush1.msra.mxu0 0.0
      %3411 = vmatprep.mubr.f32.mxu0 0.0
      %3412 = vmatmul.mubr.f32.gmra.mrb[0].mxu0 %v3274
      %v3413 = vpop.f32.mrb[0].mxu0
      %v3414 = vadd.f32 0.0, %v3413
      %v3415 = vpop.f32.mrb[0].mxu0
      %v3416 = vadd.f32 0.0, %v3415
      %3417 = vdwg.mxu0
      %v3418 = vadd.f32 %v2890, %v3343
      %v3419 = vadd.f32 %v2892, %v3345
      %v3420 = vadd.f32 %v2961, %v3414
      %v3421 = vadd.f32 %v2963, %v3416
      %v3422 = vadd.f32 %v3418, %v3419
      %v3423 = vadd.f32 %v3422, %v3420
      %v3424 = vadd.f32 %v3423, %v3421
      %3425 = vadd.xlane.f32.xlu0 %v3424
      %v3426 = vpop.xlane.xlu0 %3425
      %v3427 = vmul.f32 %v3418, %v3418
      %v3428 = vmul.f32 %v3419, %v3419
      %v3429 = vmul.f32 %v3420, %v3420
      %v3430 = vmul.f32 %v3421, %v3421
      %v3431 = vadd.f32 %v3427, %v3428
      %v3432 = vadd.f32 %v3431, %v3429
      %v3433 = vadd.f32 %v3432, %v3430
      %3434 = vadd.xlane.f32.xlu0 %v3433
      %v3435 = vpop.xlane.xlu0 %3434
      %v3436 = vmul.f32 %v3426, 0.001953125
      %v3437 = vmul.f32 %v3435, 0.001953125
      %v3438 = vmul.f32 %v3436, %v3436
      %v3439 = vsub.f32 %v3437, %v3438
      %v3440 = vmax.f32 %v3439, 0.0
      %v3441 = vsub.f32 %v3418, %v3436
      %v3442 = vsub.f32 %v3419, %v3436
      %v3443 = vsub.f32 %v3420, %v3436
      %v3444 = vsub.f32 %v3421, %v3436
      %v3445 = vadd.f32 %v3440, 1e-05
      %v3446 = vrsqrt.pop %v3445
      %v3447 = vmul.f32 %v3441, %v3446
      %v3448 = vmul.f32 %v3442, %v3446
      %v3449 = vmul.f32 %v3443, %v3446
      %v3450 = vmul.f32 %v3444, %v3446
      %v3451 = vld [vmem:[%s192] sm:$0xff]
      %v3452 = vld [vmem:[%s192 + $0x8] sm:$0xff]
      %v3453 = vld [vmem:[%s192 + $0x10] sm:$0xff]
      %v3454 = vld [vmem:[%s192 + $0x18] sm:$0xff]
      %v3455 = vadd.f32 %v3451, %v3447
      %v3456 = vadd.f32 %v3452, %v3448
      %v3457 = vadd.f32 %v3453, %v3449
      %v3458 = vadd.f32 %v3454, %v3450
      %3459 = vst [vmem:[%s197] sm:$0xff] %v3455
      %3460 = vst [vmem:[%s197 + $0x8] sm:$0xff] %v3456
      %3461 = vst [vmem:[%s197 + $0x10] sm:$0xff] %v3457
      %3462 = vst [vmem:[%s197 + $0x18] sm:$0xff] %v3458
      %p3463 = scmp.lt.s32.totalorder %s15, 1
      %s3464 = scalar_select %p3463, %s15, 1
      %s3465 = smul.addr %s3464, 4
      %s3466 = smul.addr %s3465, 8
      %s3467 = scalar_lea.vmem %s4, %s3466
      // Predicated region
      $region37: #{resnet_block_forward.1} parent=35 // pred_check
        %p3468 = pneg %p122
      $region38: #{resnet_block_forward.1} parent=35 // pred_check_branch
        %3470 = sbr.rel (%p3468) target = $region40
      $region39: #{resnet_block_forward.1} parent=35 // pred_region
        _
      $region40: #{resnet_block_forward.1} parent=35 // pred_fallthru
        _
    $region36: #{resnet_block_forward.1} parent=5 // pred_fallthru
      _
    %p3471 = scmp.le.s32.totalorder 2, %s10
    // Predicated region
    $region41: #{resnet_block_forward.1} parent=5 // pred_check
      %p3472 = pneg %p3471
    $region42: #{resnet_block_forward.1} parent=5 // pred_check_branch
      %3474 = sbr.rel (%p3472) target = $region44
    $region43: #{resnet_block_forward.1} parent=5 // pred_region
      %s3475 = ssub.s32 %s10, 2
      // Predicated region
      $region45: #{resnet_block_forward.1} parent=43 // pred_check
        %p3476 = pneg %p128
      $region46: #{resnet_block_forward.1} parent=43 // pred_check_branch
        %3478 = sbr.rel (%p3476) target = $region48
      $region47: #{resnet_block_forward.1} parent=43 // pred_region
        %p3479 = scmp.lt.s32.totalorder %s16, 1
        %s3480 = scalar_select %p3479, %s16, 1
        %s3481 = smul.addr %s3480, 4
        %s3482 = smul.addr %s3481, 8
        %s3483 = scalar_lea.vmem %s4, %s3482
      $region48: #{resnet_block_forward.1} parent=43 // pred_fallthru
        _
    $region44: #{resnet_block_forward.1} parent=5 // pred_fallthru
      _
  $region6: #{resnet_block_forward.1} parent=0 // loop_footer
    %s14 = sadd.s32 1, %s10
  $region7: #{resnet_block_forward.1} parent=0 // loop_footer_branch
    %9 = sbr.rel target = $region3
  $region8: #{resnet_block_forward.1} parent=0 // loop_exit
    _

</llo_original>
